<compile_context>
chip_gen: v5e
topology: v5e:2x2
jax: 0.10.0
libtpu: 0.0.40
codegen_flags: <defaults>
</compile_context>

<pallas_src>
import functools

import jax
import jax.numpy as jnp
from jax.experimental import pallas as pl
from jax.experimental.pallas import tpu as pltpu

NEG_SLOPE = 0.2
BN_EPS = 1e-5

VMEM_TILE_BUDGET = 16 * 1024 * 1024   # byte budget for auto-pipelined buffers
VMEM_LIMIT_BYTES = 32 * 1024 * 1024   # explicit scoped-VMEM limit (safe on v5e/v6e/v7x)
K_TILE_CAP = 2048                     # max K tile (bf16): keeps resident weights small


# ----------------------------- Pallas kernel -----------------------------

def _conv_kernel(*refs, nk, has_prologue, has_bias, apply_act, emit_stats,
                 m_total, tm, neg):
    """im2col-matmul tile: [BN+LeakyReLU prologue] -> MXU -> [bias][act][stats]."""
    it = iter(refs)
    x_ref = next(it)                                  # (tm, tk) bf16 patches
    w_ref = next(it)                                  # (tk, c)  bf16 weights
    ps_ref = next(it) if has_prologue else None       # (1, tk)  f32 BN scale (per tap)
    psh_ref = next(it) if has_prologue else None      # (1, tk)  f32 BN shift (per tap)
    b_ref = next(it) if has_bias else None            # (1, c)   f32 bias
    o_ref = next(it)                                  # (tm, c)  bf16/f32 output
    s1_ref = next(it) if emit_stats else None         # (1, 1, c) f32 sum
    s2_ref = next(it) if emit_stats else None         # (1, 1, c) f32 sum of squares
    acc_ref = next(it) if nk > 1 else None            # (tm, c)  f32 accumulator

    x = x_ref[...]
    if has_prologue:
        # Fused BatchNorm affine + LeakyReLU of the *previous* layer, applied to the
        # im2col'd tile in f32 before it hits the MXU.
        xf = x.astype(jnp.float32) * ps_ref[...] + psh_ref[...]
        xf = jnp.where(xf >= 0.0, xf, neg * xf)
        x = xf.astype(jnp.bfloat16)

    part = jnp.dot(x, w_ref[...], preferred_element_type=jnp.float32)

    def finalize(acc):
        y = acc
        if has_bias:
            y = y + b_ref[...]
        if apply_act:
            y = jnp.where(y >= 0.0, y, neg * y)
        o_ref[...] = y.astype(o_ref.dtype)
        if emit_stats:
            # Per-channel sum / sum-of-squares for BatchNorm; mask rows past the
            # real M so ragged last tiles keep the statistics exact.
            row = (pl.program_id(0) * tm
                   + jax.lax.broadcasted_iota(jnp.int32, acc.shape, 0))
            ym = jnp.where(row < m_total, acc, 0.0)
            s1_ref[...] = jnp.sum(ym, axis=0, keepdims=True)[None]
            s2_ref[...] = jnp.sum(ym * ym, axis=0, keepdims=True)[None]

    if nk == 1:
        finalize(part)
    else:
        @pl.when(pl.program_id(1) == 0)
        def _():
            acc_ref[...] = jnp.zeros_like(acc_ref)
        acc_ref[...] += part

        @pl.when(pl.program_id(1) == nk - 1)
        def _():
            finalize(acc_ref[...])


# ----------------------------- tiling helpers -----------------------------

def _choose_k_tile(k, cap=K_TILE_CAP):
    """K tile: full K when small, else largest 128-multiple divisor <= cap."""
    if k <= cap:
        return k, 1
    tk = cap
    while tk >= 128:
        if k % tk == 0 and tk % 128 == 0:
            return tk, k // tk
        tk -= 128
    return k, 1


def _choose_m_tile(m, tk, c, budget=VMEM_TILE_BUDGET):
    """Byte-budgeted M tile (not row-count capped): fits v5e/v6e/v7x scoped VMEM.

    Budget ~= 2*(tm*tk)*2B (x, double-buffered bf16) + 2*(tk*c)*2B (weights)
            + 2*(tm*c)*2B (out) + tm*c*4B (f32 accumulator scratch).
    """
    fixed = 4 * tk * c
    per_row = 4 * tk + 8 * c
    tm = max((budget - fixed) // per_row, 8)
    tm = min(tm, 1024, m)
    if tm < m:
        tm = max((tm // 8) * 8, 8)      # blocked dim must be a multiple of 8
    nm = -(-m // tm)
    return tm, nm


# ----------------------------- pallas_call wrapper -----------------------------

def _conv_matmul(patches, w_mat, *, bias=None, prologue=None, apply_act=False,
                 emit_stats=False, out_dtype=jnp.bfloat16, neg=NEG_SLOPE):
    m, K = patches.shape
    c = w_mat.shape[1]
    tk, nk = _choose_k_tile(K)
    tm, nm = _choose_m_tile(m, tk, c)

    operands = [patches.astype(jnp.bfloat16), w_mat.astype(jnp.bfloat16)]
    in_specs = [pl.BlockSpec((tm, tk), lambda i, k: (i, k)),
                pl.BlockSpec((tk, c), lambda i, k: (k, 0))]
    if prologue is not None:
        ps, psh = prologue
        operands += [ps, psh]
        in_specs += [pl.BlockSpec((1, tk), lambda i, k: (0, k)),
                     pl.BlockSpec((1, tk), lambda i, k: (0, k))]
    if bias is not None:
        operands.append(jnp.asarray(bias, jnp.float32).reshape(1, c))
        in_specs.append(pl.BlockSpec((1, c), lambda i, k: (0, 0)))

    out_shapes = [jax.ShapeDtypeStruct((m, c), out_dtype)]
    out_specs = [pl.BlockSpec((tm, c), lambda i, k: (i, 0))]
    if emit_stats:
        out_shapes += [jax.ShapeDtypeStruct((nm, 1, c), jnp.float32)] * 2
        out_specs += [pl.BlockSpec((1, 1, c), lambda i, k: (i, 0, 0)),
                      pl.BlockSpec((1, 1, c), lambda i, k: (i, 0, 0))]

    scratch = []
    if nk > 1:
        scratch.append(pltpu.VMEM((tm, c), jnp.float32))

    kern = functools.partial(
        _conv_kernel, nk=nk, has_prologue=prologue is not None,
        has_bias=bias is not None, apply_act=apply_act, emit_stats=emit_stats,
        m_total=m, tm=tm, neg=neg)

    res = pl.pallas_call(
        kern,
        out_shape=tuple(out_shapes),
        grid=(nm, nk),
        in_specs=in_specs,
        out_specs=tuple(out_specs),
        scratch_shapes=scratch,
        compiler_params=pltpu.CompilerParams(
            dimension_semantics=("parallel", "arbitrary"),
            vmem_limit_bytes=VMEM_LIMIT_BYTES),
    )(*operands)

    if emit_stats:
        return res[0], res[1], res[2]
    return res[0], None, None


# ----------------------------- conv / model glue -----------------------------

def _im2col(x, *, stride, k=4, pad=1, pad_value=None):
    """(N,H,W,C) bf16 -> bf16 patches (N*Ho*Wo, 16*C), tap order (kh, kw, cin)."""
    N, H, W, C = x.shape
    if pad_value is None:
        xp = jnp.pad(x, ((0, 0), (pad, pad), (pad, pad), (0, 0)))
    else:
        pv = pad_value.astype(x.dtype).reshape(1, 1, 1, C)
        xp = jnp.broadcast_to(pv, (N, H + 2 * pad, W + 2 * pad, C))
        xp = xp.at[:, pad:pad + H, pad:pad + W, :].set(x)
    Ho = (H + 2 * pad - k) // stride + 1
    Wo = (W + 2 * pad - k) // stride + 1
    cols = []
    for di in range(k):
        for dj in range(k):
            cols.append(xp[:, di:di + Ho * stride:stride,
                           dj:dj + Wo * stride:stride, :])
    patches = jnp.concatenate(cols, axis=-1).reshape(N * Ho * Wo, k * k * C)
    return patches, Ho, Wo


def _conv_layer(x_nhwc, w_oikk, *, stride, bias=None, prologue_cs=None,
                apply_act=False, emit_stats=False, out_dtype=jnp.bfloat16,
                pad_cout_to=None):
    """One Conv2d(k=4, pad=1) layer; w_oikk is PyTorch (Cout, Cin, 4, 4)."""
    N = x_nhwc.shape[0]
    Cout, Cin = w_oikk.shape[0], w_oikk.shape[1]

    pad_value = None
    prologue = None
    if prologue_cs is not None:
        scale, shift = prologue_cs
        # Pad the raw (pre-BN) activation with -shift/scale so the fused BN+LeakyReLU
        # prologue maps padded taps to exactly 0 (matching zero-pad of the BN'd
        # activation in the reference).  Degenerate gamma == 0 only guards the div.
        safe_scale = jnp.where(jnp.abs(scale) > 0, scale, 1.0)
        pad_value = -shift / safe_scale
        prologue = (jnp.tile(scale, 16).astype(jnp.float32).reshape(1, -1),
                    jnp.tile(shift, 16).astype(jnp.float32).reshape(1, -1))

    patches, Ho, Wo = _im2col(x_nhwc, stride=stride, pad_value=pad_value)
    K = 16 * Cin
    # (Cout, Cin, kh, kw) -> (kh, kw, Cin, Cout) -> (K, Cout)  (matches im2col order)
    w_mat = jnp.transpose(w_oikk, (2, 3, 1, 0)).reshape(K, Cout)

    c_eff, b_vec = Cout, bias
    if pad_cout_to is not None and Cout < pad_cout_to:
        # Lane-dense store for tiny Cout (final 1-channel conv): pad columns to 128.
        c_eff = pad_cout_to
        w_mat = jnp.pad(w_mat, ((0, 0), (0, c_eff - Cout)))
        if b_vec is not None:
            b_vec = jnp.pad(b_vec, (0, c_eff - Cout))

    out, s1, s2 = _conv_matmul(patches, w_mat, bias=b_vec, prologue=prologue,
                               apply_act=apply_act, emit_stats=emit_stats,
                               out_dtype=out_dtype)
    if c_eff != Cout:
        out = out[:, :Cout]
    return out.reshape(N, Ho, Wo, Cout), (s1, s2)


def init_discriminator_params(key, nc, ndf, n_layers=3):
    params = []

    def normal(key, shape, scale=0.05):
        key, sub = jax.random.split(key)
        return key, jax.random.normal(sub, shape, jnp.float32) * scale

    # layer 0: conv(nc -> ndf, s2, bias) + LeakyReLU
    key, w0 = normal(key, (ndf, nc, 4, 4))
    key, b0 = normal(key, (ndf,))
    params.append(dict(kind="conv_act", w=w0, b=b0, stride=2))

    ndf_mult, ndf_mult_prev = 1, 1
    for n in range(1, n_layers):
        ndf_mult_prev, ndf_mult = ndf_mult, min(2 ** n, 8)
        key, w = normal(key, (ndf * ndf_mult, ndf * ndf_mult_prev, 4, 4))
        key, g = normal(key, (ndf * ndf_mult,), 0.1)
        key, b = normal(key, (ndf * ndf_mult,), 0.1)
        params.append(dict(kind="conv_bn_act", w=w, stride=2,
                           gamma=1.0 + g, beta=b))

    ndf_mult_prev, ndf_mult = ndf_mult, min(2 ** n_layers, 8)
    key, w = normal(key, (ndf * ndf_mult, ndf * ndf_mult_prev, 4, 4))
    key, g = normal(key, (ndf * ndf_mult,), 0.1)
    key, b = normal(key, (ndf * ndf_mult,), 0.1)
    params.append(dict(kind="conv_bn_act", w=w, stride=1,
                       gamma=1.0 + g, beta=b))

    # final conv -> 1 channel, bias, no activation
    key, wl = normal(key, (1, ndf * ndf_mult, 4, 4))
    key, bl = normal(key, (1,))
    params.append(dict(kind="conv", w=wl, b=bl, stride=1))
    return params


def discriminator_forward(x_nchw, params):
    x = jnp.transpose(x_nchw, (0, 2, 3, 1)).astype(jnp.bfloat16)   # -> NHWC bf16
    pending_bn = None   # (scale, shift) of the last BN layer, fused into the next conv
    for layer in params:
        kind = layer["kind"]
        if kind == "conv_act":
            x, _ = _conv_layer(x, layer["w"], stride=layer["stride"], bias=layer["b"],
                               prologue_cs=pending_bn, apply_act=True)
            pending_bn = None
        elif kind == "conv_bn_act":
            y, (s1, s2) = _conv_layer(x, layer["w"], stride=layer["stride"],
                                      prologue_cs=pending_bn, emit_stats=True)
            pending_bn = None
            n, ho, wo, _ = y.shape
            m = float(n * ho * wo)
            mean = jnp.sum(s1[:, 0, :], axis=0) / m
            # NOTE: E[x^2]-E[x]^2 in f32 (single pass); fine at these magnitudes.
            var = jnp.maximum(jnp.sum(s2[:, 0, :], axis=0) / m - mean * mean, 0.0)
            scale = layer["gamma"] * jax.lax.rsqrt(var + BN_EPS)
            shift = layer["beta"] - mean * scale
            pending_bn = (scale, shift)   # applied as prologue of the next conv
            x = y
        else:   # final 1-channel conv: previous BN fused as prologue; bias; no act
            x, _ = _conv_layer(x, layer["w"], stride=layer["stride"], bias=layer["b"],
                               prologue_cs=pending_bn, out_dtype=jnp.float32,
                               pad_cout_to=128)
            pending_bn = None
    return jnp.transpose(x, (0, 3, 1, 2)).astype(jnp.float32)       # back to NCHW


# ----------------------------- pure-JAX reference -----------------------------

def _reference_forward(x_nchw, params):
    x = jnp.transpose(x_nchw, (0, 2, 3, 1)).astype(jnp.float32)
    dn = ("NHWC", "HWIO", "NHWC")

    def conv(x, w, stride, b=None):
        wt = jnp.transpose(w, (2, 3, 1, 0)).astype(jnp.float32)
        y = jax.lax.conv_general_dilated(x, wt, (stride, stride),
                                         [(1, 1), (1, 1)], dimension_numbers=dn)
        if b is not None:
            y = y + b.reshape(1, 1, 1, -1)
        return y

    def lrelu(v):
        return jnp.where(v >= 0, v, NEG_SLOPE * v)

    for layer in params:
        if layer["kind"] == "conv_act":
            x = lrelu(conv(x, layer["w"], layer["stride"], layer["b"]))
        elif layer["kind"] == "conv_bn_act":
            y = conv(x, layer["w"], layer["stride"])
            mean = jnp.mean(y, axis=(0, 1, 2))
            var = jnp.mean((y - mean) ** 2, axis=(0, 1, 2))
            yn = (y - mean) * jax.lax.rsqrt(var + BN_EPS)
            x = lrelu(yn * layer["gamma"] + layer["beta"])
        else:
            x = conv(x, layer["w"], layer["stride"], layer["b"])
    return jnp.transpose(x, (0, 3, 1, 2))


# ----------------------------- main -----------------------------

if __name__ == "__main__":
    nc, ndf, n_layers = 3, 8, 3
    batch, spatial = 2, 32   # 32 -> 16 -> 8 -> 4 -> 3 -> 2 spatial

    key = jax.random.PRNGKey(0)
    key, xkey = jax.random.split(key)
    x = jax.random.normal(xkey, (batch, nc, spatial, spatial), jnp.float32)
    params = init_discriminator_params(key, nc, ndf, n_layers)

    fwd = jax.jit(functools.partial(discriminator_forward, params=params))
    out = jax.block_until_ready(fwd(x))

    assert out.shape == (batch, 1, 2, 2), out.shape
    assert bool(jnp.all(jnp.isfinite(out)))

    ref = _reference_forward(x, params)
    max_err = float(jnp.max(jnp.abs(out - ref)))
    tol = 0.1 * float(jnp.max(jnp.abs(ref))) + 0.1   # bf16 MXU operands
    assert max_err < tol, (max_err, tol)

    print("KERNEL_OK")
</pallas_src>

<mosaic_0001>
module attributes {stable_mosaic.version = 11 : i64} {
  func.func @_conv_kernel(%arg0: i32, %arg1: i32, %arg2: memref<512x48xbf16, #tpu.memory_space<vmem>>, %arg3: memref<48x8xbf16, #tpu.memory_space<vmem>>, %arg4: memref<1x8xf32, #tpu.memory_space<vmem>>, %arg5: memref<512x8xbf16, #tpu.memory_space<vmem>>) attributes {dimension_semantics = [#tpu.dimension_semantics<parallel>, #tpu.dimension_semantics<arbitrary>], iteration_bounds = array<i64: 1, 1>, scalar_prefetch = 0 : i64, scratch_operands = 0 : i64, tpu.core_type = #tpu.core_type<tc>, window_params = [{transform_indices = @transform_0, window_bounds = array<i64: 512, 48>}, {transform_indices = @transform_1, window_bounds = array<i64: 48, 8>}, {pipeline_mode = #tpu.pipeline_mode<synchronous>, transform_indices = @transform_2, window_bounds = array<i64: 1, 8>}, {transform_indices = @transform_3, window_bounds = array<i64: 512, 8>}]} {
    %c0 = arith.constant 0 : index
    %c0_0 = arith.constant 0 : index
    %0 = vector.load %arg2[%c0, %c0_0] : memref<512x48xbf16, #tpu.memory_space<vmem>>, vector<512x48xbf16>
    %c0_1 = arith.constant 0 : index
    %c0_2 = arith.constant 0 : index
    %1 = vector.load %arg3[%c0_1, %c0_2] : memref<48x8xbf16, #tpu.memory_space<vmem>>, vector<48x8xbf16>
    %cst = arith.constant dense<0.000000e+00> : vector<512x8xf32>
    %2 = tpu.matmul %0, %1, %cst {dimension_numbers = #tpu.dot_dimension_numbers<[1], [0], [0], [1], [0, 0, 1, 1], [], []>} : vector<512x48xbf16>, vector<48x8xbf16>, vector<512x8xf32> -> vector<512x8xf32>
    %c0_3 = arith.constant 0 : index
    %c0_4 = arith.constant 0 : index
    %3 = vector.load %arg4[%c0_3, %c0_4] : memref<1x8xf32, #tpu.memory_space<vmem>>, vector<1x8xf32>
    %4 = vector.broadcast %3 : vector<1x8xf32> to vector<512x8xf32>
    %5 = arith.addf %2, %4 : vector<512x8xf32>
    %cst_5 = arith.constant 0.000000e+00 : f32
    %6 = vector.broadcast %cst_5 : f32 to vector<512x8xf32>
    %7 = arith.cmpf oge, %5, %6 : vector<512x8xf32>
    %cst_6 = arith.constant 2.000000e-01 : f32
    %8 = vector.broadcast %cst_6 : f32 to vector<512x8xf32>
    %9 = arith.mulf %8, %5 : vector<512x8xf32>
    %10 = arith.select %7, %5, %9 : vector<512x8xi1>, vector<512x8xf32>
    %11 = arith.truncf %10 : vector<512x8xf32> to vector<512x8xbf16>
    %c0_7 = arith.constant 0 : index
    %c0_8 = arith.constant 0 : index
    %12 = vector.load %arg5[%c0_7, %c0_8] : memref<512x8xbf16, #tpu.memory_space<vmem>>, vector<512x8xbf16>
    tpu.vector_store %arg5[%c0_7, %c0_8], %11 {strides = array<i32>} : memref<512x8xbf16, #tpu.memory_space<vmem>>, vector<512x8xbf16>,
    return
  }
  func.func @transform_0(%arg0: i32, %arg1: i32) -> (i32, i32) {
    %c0_i32 = arith.constant 0 : i32
    return %arg0, %arg1 : i32, i32
  }
  func.func @transform_1(%arg0: i32, %arg1: i32) -> (i32, i32) {
    %c0_i32 = arith.constant 0 : i32
    %c0_i32_0 = arith.constant 0 : i32
    return %arg1, %c0_i32 : i32, i32
  }
  func.func @transform_2(%arg0: i32, %arg1: i32) -> (i32, i32) {
    %c0_i32 = arith.constant 0 : i32
    %c0_i32_0 = arith.constant 0 : i32
    %c0_i32_1 = arith.constant 0 : i32
    return %c0_i32, %c0_i32_0 : i32, i32
  }
  func.func @transform_3(%arg0: i32, %arg1: i32) -> (i32, i32) {
    %c0_i32 = arith.constant 0 : i32
    %c0_i32_0 = arith.constant 0 : i32
    return %arg0, %c0_i32 : i32, i32
  }
}

module attributes {stable_mosaic.version = 11 : i64} {
  func.func @_conv_kernel(%arg0: i32, %arg1: i32, %arg2: memref<128x128xbf16, #tpu.memory_space<vmem>>, %arg3: memref<128x16xbf16, #tpu.memory_space<vmem>>, %arg4: memref<128x16xbf16, #tpu.memory_space<vmem>>, %arg5: memref<1x1x16xf32, #tpu.memory_space<vmem>>, %arg6: memref<1x1x16xf32, #tpu.memory_space<vmem>>) attributes {dimension_semantics = [#tpu.dimension_semantics<parallel>, #tpu.dimension_semantics<arbitrary>], iteration_bounds = array<i64: 1, 1>, scalar_prefetch = 0 : i64, scratch_operands = 0 : i64, tpu.core_type = #tpu.core_type<tc>, window_params = [{transform_indices = @transform_0, window_bounds = array<i64: 128, 128>}, {transform_indices = @transform_1, window_bounds = array<i64: 128, 16>}, {transform_indices = @transform_2, window_bounds = array<i64: 128, 16>}, {transform_indices = @transform_3, window_bounds = array<i64: 1, 1, 16>}, {transform_indices = @transform_4, window_bounds = array<i64: 1, 1, 16>}]} {
    %c0 = arith.constant 0 : index
    %c0_0 = arith.constant 0 : index
    %0 = vector.load %arg2[%c0, %c0_0] : memref<128x128xbf16, #tpu.memory_space<vmem>>, vector<128x128xbf16>
    %c0_1 = arith.constant 0 : index
    %c0_2 = arith.constant 0 : index
    %1 = vector.load %arg3[%c0_1, %c0_2] : memref<128x16xbf16, #tpu.memory_space<vmem>>, vector<128x16xbf16>
    %cst = arith.constant dense<0.000000e+00> : vector<128x16xf32>
    %2 = tpu.matmul %0, %1, %cst {dimension_numbers = #tpu.dot_dimension_numbers<[1], [0], [0], [1], [0, 0, 1, 1], [], []>} : vector<128x128xbf16>, vector<128x16xbf16>, vector<128x16xf32> -> vector<128x16xf32>
    %3 = arith.truncf %2 : vector<128x16xf32> to vector<128x16xbf16>
    %c0_3 = arith.constant 0 : index
    %c0_4 = arith.constant 0 : index
    %4 = vector.load %arg4[%c0_3, %c0_4] : memref<128x16xbf16, #tpu.memory_space<vmem>>, vector<128x16xbf16>
    tpu.vector_store %arg4[%c0_3, %c0_4], %3 {strides = array<i32>} : memref<128x16xbf16, #tpu.memory_space<vmem>>, vector<128x16xbf16>,
    %c128_i32 = arith.constant 128 : i32
    %5 = arith.muli %arg0, %c128_i32 : i32
    %6 = tpu.iota {dimensions = array<i32: 0>} : vector<128x16xi32>
    %7 = vector.broadcast %5 : i32 to vector<128x16xi32>
    %8 = arith.addi %7, %6 : vector<128x16xi32>
    %c128_i32_5 = arith.constant 128 : i32
    %9 = vector.broadcast %c128_i32_5 : i32 to vector<128x16xi32>
    %10 = arith.cmpi slt, %8, %9 : vector<128x16xi32>
    %cst_6 = arith.constant 0.000000e+00 : f32
    %11 = vector.broadcast %cst_6 : f32 to vector<128x16xf32>
    %12 = arith.select %10, %2, %11 : vector<128x16xi1>, vector<128x16xf32>
    %cst_7 = arith.constant dense<0.000000e+00> : vector<16xf32>
    %13 = vector.multi_reduction <add>, %12, %cst_7 [0] : vector<128x16xf32> to vector<16xf32>
    %14 = vector.shape_cast %13 : vector<16xf32> to vector<1x16xf32>
    %15 = vector.shape_cast %14 : vector<1x16xf32> to vector<1x1x16xf32>
    %c0_8 = arith.constant 0 : index
    %c0_9 = arith.constant 0 : index
    %c0_10 = arith.constant 0 : index
    %16 = vector.load %arg5[%c0_8, %c0_9, %c0_10] : memref<1x1x16xf32, #tpu.memory_space<vmem>>, vector<1x1x16xf32>
    tpu.vector_store %arg5[%c0_8, %c0_9, %c0_10], %15 {strides = array<i32>} : memref<1x1x16xf32, #tpu.memory_space<vmem>>, vector<1x1x16xf32>,
    %17 = arith.mulf %12, %12 : vector<128x16xf32>
    %cst_11 = arith.constant dense<0.000000e+00> : vector<16xf32>
    %18 = vector.multi_reduction <add>, %17, %cst_11 [0] : vector<128x16xf32> to vector<16xf32>
    %19 = vector.shape_cast %18 : vector<16xf32> to vector<1x16xf32>
    %20 = vector.shape_cast %19 : vector<1x16xf32> to vector<1x1x16xf32>
    %c0_12 = arith.constant 0 : index
    %c0_13 = arith.constant 0 : index
    %c0_14 = arith.constant 0 : index
    %21 = vector.load %arg6[%c0_12, %c0_13, %c0_14] : memref<1x1x16xf32, #tpu.memory_space<vmem>>, vector<1x1x16xf32>
    tpu.vector_store %arg6[%c0_12, %c0_13, %c0_14], %20 {strides = array<i32>} : memref<1x1x16xf32, #tpu.memory_space<vmem>>, vector<1x1x16xf32>,
    return
  }
  func.func @transform_0(%arg0: i32, %arg1: i32) -> (i32, i32) {
    %c0_i32 = arith.constant 0 : i32
    return %arg0, %arg1 : i32, i32
  }
  func.func @transform_1(%arg0: i32, %arg1: i32) -> (i32, i32) {
    %c0_i32 = arith.constant 0 : i32
    %c0_i32_0 = arith.constant 0 : i32
    return %arg1, %c0_i32 : i32, i32
  }
  func.func @transform_2(%arg0: i32, %arg1: i32) -> (i32, i32) {
    %c0_i32 = arith.constant 0 : i32
    %c0_i32_0 = arith.constant 0 : i32
    return %arg0, %c0_i32 : i32, i32
  }
  func.func @transform_3(%arg0: i32, %arg1: i32) -> (i32, i32, i32) {
    %c0_i32 = arith.constant 0 : i32
    %c0_i32_0 = arith.constant 0 : i32
    %c0_i32_1 = arith.constant 0 : i32
    return %arg0, %c0_i32, %c0_i32_0 : i32, i32, i32
  }
  func.func @transform_4(%arg0: i32, %arg1: i32) -> (i32, i32, i32) {
    %c0_i32 = arith.constant 0 : i32
    %c0_i32_0 = arith.constant 0 : i32
    %c0_i32_1 = arith.constant 0 : i32
    return %arg0, %c0_i32, %c0_i32_0 : i32, i32, i32
  }
}

module attributes {stable_mosaic.version = 11 : i64} {
  func.func @_conv_kernel(%arg0: i32, %arg1: i32, %arg2: memref<32x256xbf16, #tpu.memory_space<vmem>>, %arg3: memref<256x32xbf16, #tpu.memory_space<vmem>>, %arg4: memref<1x256xf32, #tpu.memory_space<vmem>>, %arg5: memref<1x256xf32, #tpu.memory_space<vmem>>, %arg6: memref<32x32xbf16, #tpu.memory_space<vmem>>, %arg7: memref<1x1x32xf32, #tpu.memory_space<vmem>>, %arg8: memref<1x1x32xf32, #tpu.memory_space<vmem>>) attributes {dimension_semantics = [#tpu.dimension_semantics<parallel>, #tpu.dimension_semantics<arbitrary>], iteration_bounds = array<i64: 1, 1>, scalar_prefetch = 0 : i64, scratch_operands = 0 : i64, tpu.core_type = #tpu.core_type<tc>, window_params = [{transform_indices = @transform_0, window_bounds = array<i64: 32, 256>}, {transform_indices = @transform_1, window_bounds = array<i64: 256, 32>}, {transform_indices = @transform_2, window_bounds = array<i64: 1, 256>}, {transform_indices = @transform_3, window_bounds = array<i64: 1, 256>}, {transform_indices = @transform_4, window_bounds = array<i64: 32, 32>}, {transform_indices = @transform_5, window_bounds = array<i64: 1, 1, 32>}, {transform_indices = @transform_6, window_bounds = array<i64: 1, 1, 32>}]} {
    %c0 = arith.constant 0 : index
    %c0_0 = arith.constant 0 : index
    %0 = vector.load %arg2[%c0, %c0_0] : memref<32x256xbf16, #tpu.memory_space<vmem>>, vector<32x256xbf16>
    %1 = arith.extf %0 : vector<32x256xbf16> to vector<32x256xf32>
    %c0_1 = arith.constant 0 : index
    %c0_2 = arith.constant 0 : index
    %2 = vector.load %arg4[%c0_1, %c0_2] : memref<1x256xf32, #tpu.memory_space<vmem>>, vector<1x256xf32>
    %3 = vector.broadcast %2 : vector<1x256xf32> to vector<32x256xf32>
    %4 = arith.mulf %1, %3 : vector<32x256xf32>
    %c0_3 = arith.constant 0 : index
    %c0_4 = arith.constant 0 : index
    %5 = vector.load %arg5[%c0_3, %c0_4] : memref<1x256xf32, #tpu.memory_space<vmem>>, vector<1x256xf32>
    %6 = vector.broadcast %5 : vector<1x256xf32> to vector<32x256xf32>
    %7 = arith.addf %4, %6 : vector<32x256xf32>
    %cst = arith.constant 0.000000e+00 : f32
    %8 = vector.broadcast %cst : f32 to vector<32x256xf32>
    %9 = arith.cmpf oge, %7, %8 : vector<32x256xf32>
    %cst_5 = arith.constant 2.000000e-01 : f32
    %10 = vector.broadcast %cst_5 : f32 to vector<32x256xf32>
    %11 = arith.mulf %10, %7 : vector<32x256xf32>
    %12 = arith.select %9, %7, %11 : vector<32x256xi1>, vector<32x256xf32>
    %13 = arith.truncf %12 : vector<32x256xf32> to vector<32x256xbf16>
    %c0_6 = arith.constant 0 : index
    %c0_7 = arith.constant 0 : index
    %14 = vector.load %arg3[%c0_6, %c0_7] : memref<256x32xbf16, #tpu.memory_space<vmem>>, vector<256x32xbf16>
    %cst_8 = arith.constant dense<0.000000e+00> : vector<32x32xf32>
    %15 = tpu.matmul %13, %14, %cst_8 {dimension_numbers = #tpu.dot_dimension_numbers<[1], [0], [0], [1], [0, 0, 1, 1], [], []>} : vector<32x256xbf16>, vector<256x32xbf16>, vector<32x32xf32> -> vector<32x32xf32>
    %16 = arith.truncf %15 : vector<32x32xf32> to vector<32x32xbf16>
    %c0_9 = arith.constant 0 : index
    %c0_10 = arith.constant 0 : index
    %17 = vector.load %arg6[%c0_9, %c0_10] : memref<32x32xbf16, #tpu.memory_space<vmem>>, vector<32x32xbf16>
    tpu.vector_store %arg6[%c0_9, %c0_10], %16 {strides = array<i32>} : memref<32x32xbf16, #tpu.memory_space<vmem>>, vector<32x32xbf16>,
    %c32_i32 = arith.constant 32 : i32
    %18 = arith.muli %arg0, %c32_i32 : i32
    %19 = tpu.iota {dimensions = array<i32: 0>} : vector<32x32xi32>
    %20 = vector.broadcast %18 : i32 to vector<32x32xi32>
    %21 = arith.addi %20, %19 : vector<32x32xi32>
    %c32_i32_11 = arith.constant 32 : i32
    %22 = vector.broadcast %c32_i32_11 : i32 to vector<32x32xi32>
    %23 = arith.cmpi slt, %21, %22 : vector<32x32xi32>
    %cst_12 = arith.constant 0.000000e+00 : f32
    %24 = vector.broadcast %cst_12 : f32 to vector<32x32xf32>
    %25 = arith.select %23, %15, %24 : vector<32x32xi1>, vector<32x32xf32>
    %cst_13 = arith.constant dense<0.000000e+00> : vector<32xf32>
    %26 = vector.multi_reduction <add>, %25, %cst_13 [0] : vector<32x32xf32> to vector<32xf32>
    %27 = vector.shape_cast %26 : vector<32xf32> to vector<1x32xf32>
    %28 = vector.shape_cast %27 : vector<1x32xf32> to vector<1x1x32xf32>
    %c0_14 = arith.constant 0 : index
    %c0_15 = arith.constant 0 : index
    %c0_16 = arith.constant 0 : index
    %29 = vector.load %arg7[%c0_14, %c0_15, %c0_16] : memref<1x1x32xf32, #tpu.memory_space<vmem>>, vector<1x1x32xf32>
    tpu.vector_store %arg7[%c0_14, %c0_15, %c0_16], %28 {strides = array<i32>} : memref<1x1x32xf32, #tpu.memory_space<vmem>>, vector<1x1x32xf32>,
    %30 = arith.mulf %25, %25 : vector<32x32xf32>
    %cst_17 = arith.constant dense<0.000000e+00> : vector<32xf32>
    %31 = vector.multi_reduction <add>, %30, %cst_17 [0] : vector<32x32xf32> to vector<32xf32>
    %32 = vector.shape_cast %31 : vector<32xf32> to vector<1x32xf32>
    %33 = vector.shape_cast %32 : vector<1x32xf32> to vector<1x1x32xf32>
    %c0_18 = arith.constant 0 : index
    %c0_19 = arith.constant 0 : index
    %c0_20 = arith.constant 0 : index
    %34 = vector.load %arg8[%c0_18, %c0_19, %c0_20] : memref<1x1x32xf32, #tpu.memory_space<vmem>>, vector<1x1x32xf32>
    tpu.vector_store %arg8[%c0_18, %c0_19, %c0_20], %33 {strides = array<i32>} : memref<1x1x32xf32, #tpu.memory_space<vmem>>, vector<1x1x32xf32>,
    return
  }
  func.func @transform_0(%arg0: i32, %arg1: i32) -> (i32, i32) {
    %c0_i32 = arith.constant 0 : i32
    return %arg0, %arg1 : i32, i32
  }
  func.func @transform_1(%arg0: i32, %arg1: i32) -> (i32, i32) {
    %c0_i32 = arith.constant 0 : i32
    %c0_i32_0 = arith.constant 0 : i32
    return %arg1, %c0_i32 : i32, i32
  }
  func.func @transform_2(%arg0: i32, %arg1: i32) -> (i32, i32) {
    %c0_i32 = arith.constant 0 : i32
    %c0_i32_0 = arith.constant 0 : i32
    return %c0_i32, %arg1 : i32, i32
  }
  func.func @transform_3(%arg0: i32, %arg1: i32) -> (i32, i32) {
    %c0_i32 = arith.constant 0 : i32
    %c0_i32_0 = arith.constant 0 : i32
    return %c0_i32, %arg1 : i32, i32
  }
  func.func @transform_4(%arg0: i32, %arg1: i32) -> (i32, i32) {
    %c0_i32 = arith.constant 0 : i32
    %c0_i32_0 = arith.constant 0 : i32
    return %arg0, %c0_i32 : i32, i32
  }
  func.func @transform_5(%arg0: i32, %arg1: i32) -> (i32, i32, i32) {
    %c0_i32 = arith.constant 0 : i32
    %c0_i32_0 = arith.constant 0 : i32
    %c0_i32_1 = arith.constant 0 : i32
    return %arg0, %c0_i32, %c0_i32_0 : i32, i32, i32
  }
  func.func @transform_6(%arg0: i32, %arg1: i32) -> (i32, i32, i32) {
    %c0_i32 = arith.constant 0 : i32
    %c0_i32_0 = arith.constant 0 : i32
    %c0_i32_1 = arith.constant 0 : i32
    return %arg0, %c0_i32, %c0_i32_0 : i32, i32, i32
  }
}

module attributes {stable_mosaic.version = 11 : i64} {
  func.func @_conv_kernel(%arg0: i32, %arg1: i32, %arg2: memref<18x512xbf16, #tpu.memory_space<vmem>>, %arg3: memref<512x64xbf16, #tpu.memory_space<vmem>>, %arg4: memref<1x512xf32, #tpu.memory_space<vmem>>, %arg5: memref<1x512xf32, #tpu.memory_space<vmem>>, %arg6: memref<18x64xbf16, #tpu.memory_space<vmem>>, %arg7: memref<1x1x64xf32, #tpu.memory_space<vmem>>, %arg8: memref<1x1x64xf32, #tpu.memory_space<vmem>>) attributes {dimension_semantics = [#tpu.dimension_semantics<parallel>, #tpu.dimension_semantics<arbitrary>], iteration_bounds = array<i64: 1, 1>, scalar_prefetch = 0 : i64, scratch_operands = 0 : i64, tpu.core_type = #tpu.core_type<tc>, window_params = [{transform_indices = @transform_0, window_bounds = array<i64: 18, 512>}, {transform_indices = @transform_1, window_bounds = array<i64: 512, 64>}, {transform_indices = @transform_2, window_bounds = array<i64: 1, 512>}, {transform_indices = @transform_3, window_bounds = array<i64: 1, 512>}, {transform_indices = @transform_4, window_bounds = array<i64: 18, 64>}, {transform_indices = @transform_5, window_bounds = array<i64: 1, 1, 64>}, {transform_indices = @transform_6, window_bounds = array<i64: 1, 1, 64>}]} {
    %c0 = arith.constant 0 : index
    %c0_0 = arith.constant 0 : index
    %0 = vector.load %arg2[%c0, %c0_0] : memref<18x512xbf16, #tpu.memory_space<vmem>>, vector<18x512xbf16>
    %1 = arith.extf %0 : vector<18x512xbf16> to vector<18x512xf32>
    %c0_1 = arith.constant 0 : index
    %c0_2 = arith.constant 0 : index
    %2 = vector.load %arg4[%c0_1, %c0_2] : memref<1x512xf32, #tpu.memory_space<vmem>>, vector<1x512xf32>
    %3 = vector.broadcast %2 : vector<1x512xf32> to vector<18x512xf32>
    %4 = arith.mulf %1, %3 : vector<18x512xf32>
    %c0_3 = arith.constant 0 : index
    %c0_4 = arith.constant 0 : index
    %5 = vector.load %arg5[%c0_3, %c0_4] : memref<1x512xf32, #tpu.memory_space<vmem>>, vector<1x512xf32>
    %6 = vector.broadcast %5 : vector<1x512xf32> to vector<18x512xf32>
    %7 = arith.addf %4, %6 : vector<18x512xf32>
    %cst = arith.constant 0.000000e+00 : f32
    %8 = vector.broadcast %cst : f32 to vector<18x512xf32>
    %9 = arith.cmpf oge, %7, %8 : vector<18x512xf32>
    %cst_5 = arith.constant 2.000000e-01 : f32
    %10 = vector.broadcast %cst_5 : f32 to vector<18x512xf32>
    %11 = arith.mulf %10, %7 : vector<18x512xf32>
    %12 = arith.select %9, %7, %11 : vector<18x512xi1>, vector<18x512xf32>
    %13 = arith.truncf %12 : vector<18x512xf32> to vector<18x512xbf16>
    %c0_6 = arith.constant 0 : index
    %c0_7 = arith.constant 0 : index
    %14 = vector.load %arg3[%c0_6, %c0_7] : memref<512x64xbf16, #tpu.memory_space<vmem>>, vector<512x64xbf16>
    %cst_8 = arith.constant dense<0.000000e+00> : vector<18x64xf32>
    %15 = tpu.matmul %13, %14, %cst_8 {dimension_numbers = #tpu.dot_dimension_numbers<[1], [0], [0], [1], [0, 0, 1, 1], [], []>} : vector<18x512xbf16>, vector<512x64xbf16>, vector<18x64xf32> -> vector<18x64xf32>
    %16 = arith.truncf %15 : vector<18x64xf32> to vector<18x64xbf16>
    %c0_9 = arith.constant 0 : index
    %c0_10 = arith.constant 0 : index
    %17 = vector.load %arg6[%c0_9, %c0_10] : memref<18x64xbf16, #tpu.memory_space<vmem>>, vector<18x64xbf16>
    tpu.vector_store %arg6[%c0_9, %c0_10], %16 {strides = array<i32>} : memref<18x64xbf16, #tpu.memory_space<vmem>>, vector<18x64xbf16>,
    %c18_i32 = arith.constant 18 : i32
    %18 = arith.muli %arg0, %c18_i32 : i32
    %19 = tpu.iota {dimensions = array<i32: 0>} : vector<18x64xi32>
    %20 = vector.broadcast %18 : i32 to vector<18x64xi32>
    %21 = arith.addi %20, %19 : vector<18x64xi32>
    %c18_i32_11 = arith.constant 18 : i32
    %22 = vector.broadcast %c18_i32_11 : i32 to vector<18x64xi32>
    %23 = arith.cmpi slt, %21, %22 : vector<18x64xi32>
    %cst_12 = arith.constant 0.000000e+00 : f32
    %24 = vector.broadcast %cst_12 : f32 to vector<18x64xf32>
    %25 = arith.select %23, %15, %24 : vector<18x64xi1>, vector<18x64xf32>
    %cst_13 = arith.constant dense<0.000000e+00> : vector<64xf32>
    %26 = vector.multi_reduction <add>, %25, %cst_13 [0] : vector<18x64xf32> to vector<64xf32>
    %27 = vector.shape_cast %26 : vector<64xf32> to vector<1x64xf32>
    %28 = vector.shape_cast %27 : vector<1x64xf32> to vector<1x1x64xf32>
    %c0_14 = arith.constant 0 : index
    %c0_15 = arith.constant 0 : index
    %c0_16 = arith.constant 0 : index
    %29 = vector.load %arg7[%c0_14, %c0_15, %c0_16] : memref<1x1x64xf32, #tpu.memory_space<vmem>>, vector<1x1x64xf32>
    tpu.vector_store %arg7[%c0_14, %c0_15, %c0_16], %28 {strides = array<i32>} : memref<1x1x64xf32, #tpu.memory_space<vmem>>, vector<1x1x64xf32>,
    %30 = arith.mulf %25, %25 : vector<18x64xf32>
    %cst_17 = arith.constant dense<0.000000e+00> : vector<64xf32>
    %31 = vector.multi_reduction <add>, %30, %cst_17 [0] : vector<18x64xf32> to vector<64xf32>
    %32 = vector.shape_cast %31 : vector<64xf32> to vector<1x64xf32>
    %33 = vector.shape_cast %32 : vector<1x64xf32> to vector<1x1x64xf32>
    %c0_18 = arith.constant 0 : index
    %c0_19 = arith.constant 0 : index
    %c0_20 = arith.constant 0 : index
    %34 = vector.load %arg8[%c0_18, %c0_19, %c0_20] : memref<1x1x64xf32, #tpu.memory_space<vmem>>, vector<1x1x64xf32>
    tpu.vector_store %arg8[%c0_18, %c0_19, %c0_20], %33 {strides = array<i32>} : memref<1x1x64xf32, #tpu.memory_space<vmem>>, vector<1x1x64xf32>,
    return
  }
  func.func @transform_0(%arg0: i32, %arg1: i32) -> (i32, i32) {
    %c0_i32 = arith.constant 0 : i32
    return %arg0, %arg1 : i32, i32
  }
  func.func @transform_1(%arg0: i32, %arg1: i32) -> (i32, i32) {
    %c0_i32 = arith.constant 0 : i32
    %c0_i32_0 = arith.constant 0 : i32
    return %arg1, %c0_i32 : i32, i32
  }
  func.func @transform_2(%arg0: i32, %arg1: i32) -> (i32, i32) {
    %c0_i32 = arith.constant 0 : i32
    %c0_i32_0 = arith.constant 0 : i32
    return %c0_i32, %arg1 : i32, i32
  }
  func.func @transform_3(%arg0: i32, %arg1: i32) -> (i32, i32) {
    %c0_i32 = arith.constant 0 : i32
    %c0_i32_0 = arith.constant 0 : i32
    return %c0_i32, %arg1 : i32, i32
  }
  func.func @transform_4(%arg0: i32, %arg1: i32) -> (i32, i32) {
    %c0_i32 = arith.constant 0 : i32
    %c0_i32_0 = arith.constant 0 : i32
    return %arg0, %c0_i32 : i32, i32
  }
  func.func @transform_5(%arg0: i32, %arg1: i32) -> (i32, i32, i32) {
    %c0_i32 = arith.constant 0 : i32
    %c0_i32_0 = arith.constant 0 : i32
    %c0_i32_1 = arith.constant 0 : i32
    return %arg0, %c0_i32, %c0_i32_0 : i32, i32, i32
  }
  func.func @transform_6(%arg0: i32, %arg1: i32) -> (i32, i32, i32) {
    %c0_i32 = arith.constant 0 : i32
    %c0_i32_0 = arith.constant 0 : i32
    %c0_i32_1 = arith.constant 0 : i32
    return %arg0, %c0_i32, %c0_i32_0 : i32, i32, i32
  }
}

module attributes {stable_mosaic.version = 11 : i64} {
  func.func @_conv_kernel(%arg0: i32, %arg1: i32, %arg2: memref<8x1024xbf16, #tpu.memory_space<vmem>>, %arg3: memref<1024x128xbf16, #tpu.memory_space<vmem>>, %arg4: memref<1x1024xf32, #tpu.memory_space<vmem>>, %arg5: memref<1x1024xf32, #tpu.memory_space<vmem>>, %arg6: memref<1x128xf32, #tpu.memory_space<vmem>>, %arg7: memref<8x128xf32, #tpu.memory_space<vmem>>) attributes {dimension_semantics = [#tpu.dimension_semantics<parallel>, #tpu.dimension_semantics<arbitrary>], iteration_bounds = array<i64: 1, 1>, scalar_prefetch = 0 : i64, scratch_operands = 0 : i64, tpu.core_type = #tpu.core_type<tc>, window_params = [{transform_indices = @transform_0, window_bounds = array<i64: 8, 1024>}, {transform_indices = @transform_1, window_bounds = array<i64: 1024, 128>}, {transform_indices = @transform_2, window_bounds = array<i64: 1, 1024>}, {transform_indices = @transform_3, window_bounds = array<i64: 1, 1024>}, {pipeline_mode = #tpu.pipeline_mode<synchronous>, transform_indices = @transform_4, window_bounds = array<i64: 1, 128>}, {transform_indices = @transform_5, window_bounds = array<i64: 8, 128>}]} {
    %c0 = arith.constant 0 : index
    %c0_0 = arith.constant 0 : index
    %0 = vector.load %arg2[%c0, %c0_0] : memref<8x1024xbf16, #tpu.memory_space<vmem>>, vector<8x1024xbf16>
    %1 = arith.extf %0 : vector<8x1024xbf16> to vector<8x1024xf32>
    %c0_1 = arith.constant 0 : index
    %c0_2 = arith.constant 0 : index
    %2 = vector.load %arg4[%c0_1, %c0_2] : memref<1x1024xf32, #tpu.memory_space<vmem>>, vector<1x1024xf32>
    %3 = vector.broadcast %2 : vector<1x1024xf32> to vector<8x1024xf32>
    %4 = arith.mulf %1, %3 : vector<8x1024xf32>
    %c0_3 = arith.constant 0 : index
    %c0_4 = arith.constant 0 : index
    %5 = vector.load %arg5[%c0_3, %c0_4] : memref<1x1024xf32, #tpu.memory_space<vmem>>, vector<1x1024xf32>
    %6 = vector.broadcast %5 : vector<1x1024xf32> to vector<8x1024xf32>
    %7 = arith.addf %4, %6 : vector<8x1024xf32>
    %cst = arith.constant 0.000000e+00 : f32
    %8 = vector.broadcast %cst : f32 to vector<8x1024xf32>
    %9 = arith.cmpf oge, %7, %8 : vector<8x1024xf32>
    %cst_5 = arith.constant 2.000000e-01 : f32
    %10 = vector.broadcast %cst_5 : f32 to vector<8x1024xf32>
    %11 = arith.mulf %10, %7 : vector<8x1024xf32>
    %12 = arith.select %9, %7, %11 : vector<8x1024xi1>, vector<8x1024xf32>
    %13 = arith.truncf %12 : vector<8x1024xf32> to vector<8x1024xbf16>
    %c0_6 = arith.constant 0 : index
    %c0_7 = arith.constant 0 : index
    %14 = vector.load %arg3[%c0_6, %c0_7] : memref<1024x128xbf16, #tpu.memory_space<vmem>>, vector<1024x128xbf16>
    %cst_8 = arith.constant dense<0.000000e+00> : vector<8x128xf32>
    %15 = tpu.matmul %13, %14, %cst_8 {dimension_numbers = #tpu.dot_dimension_numbers<[1], [0], [0], [1], [0, 0, 1, 1], [], []>} : vector<8x1024xbf16>, vector<1024x128xbf16>, vector<8x128xf32> -> vector<8x128xf32>
    %c0_9 = arith.constant 0 : index
    %c0_10 = arith.constant 0 : index
    %16 = vector.load %arg6[%c0_9, %c0_10] : memref<1x128xf32, #tpu.memory_space<vmem>>, vector<1x128xf32>
    %17 = vector.broadcast %16 : vector<1x128xf32> to vector<8x128xf32>
    %18 = arith.addf %15, %17 : vector<8x128xf32>
    %c0_11 = arith.constant 0 : index
    %c0_12 = arith.constant 0 : index
    %19 = vector.load %arg7[%c0_11, %c0_12] : memref<8x128xf32, #tpu.memory_space<vmem>>, vector<8x128xf32>
    tpu.vector_store %arg7[%c0_11, %c0_12], %18 {strides = array<i32>} : memref<8x128xf32, #tpu.memory_space<vmem>>, vector<8x128xf32>,
    return
  }
  func.func @transform_0(%arg0: i32, %arg1: i32) -> (i32, i32) {
    %c0_i32 = arith.constant 0 : i32
    return %arg0, %arg1 : i32, i32
  }
  func.func @transform_1(%arg0: i32, %arg1: i32) -> (i32, i32) {
    %c0_i32 = arith.constant 0 : i32
    %c0_i32_0 = arith.constant 0 : i32
    return %arg1, %c0_i32 : i32, i32
  }
  func.func @transform_2(%arg0: i32, %arg1: i32) -> (i32, i32) {
    %c0_i32 = arith.constant 0 : i32
    %c0_i32_0 = arith.constant 0 : i32
    return %c0_i32, %arg1 : i32, i32
  }
  func.func @transform_3(%arg0: i32, %arg1: i32) -> (i32, i32) {
    %c0_i32 = arith.constant 0 : i32
    %c0_i32_0 = arith.constant 0 : i32
    return %c0_i32, %arg1 : i32, i32
  }
  func.func @transform_4(%arg0: i32, %arg1: i32) -> (i32, i32) {
    %c0_i32 = arith.constant 0 : i32
    %c0_i32_0 = arith.constant 0 : i32
    %c0_i32_1 = arith.constant 0 : i32
    return %c0_i32, %c0_i32_0 : i32, i32
  }
  func.func @transform_5(%arg0: i32, %arg1: i32) -> (i32, i32) {
    %c0_i32 = arith.constant 0 : i32
    %c0_i32_0 = arith.constant 0 : i32
    return %arg0, %c0_i32 : i32, i32
  }
}

</mosaic_0001>

<llo_original>
// kernel: discriminator_forward.5
$region0: #{discriminator_forward.5}
  #allocation0 [shape = 'u32[]', space=smem, size = 0x4, offset = 0x4, fixed_abs, tag = 'smem constant byte address 0x4 - core index']
  #allocation1 [shape = 'u32[72,128]{1,0:T(1,128)}', space=vmem, size = 0x9000, scoped, tag = 'internal scratch']
  %s0 = inlined_call_operand.vmem [shape: bf16[512,48], index: 0, kind: input, shape index: {}]
  %s1 = inlined_call_operand.vmem [shape: bf16[48,8], index: 1, kind: input, shape index: {}]
  %s2 = inlined_call_operand.vmem [shape: f32[1,8], index: 2, kind: input, shape index: {}]
  %s3 = inlined_call_operand.vmem [shape: bf16[512,8], index: 3, kind: output, shape index: {}]
  %s4 = sld [smem:[#allocation0]]
  $region22: #{discriminator_forward.5} parent=0
    _
  %s6 = ssub.s32 1, %s4
  %s7 = scalar_select 0, %s6, %s4
  // Predicated region
  $region2: #{discriminator_forward.5} parent=0 // pred_check
    _
  $region3: #{discriminator_forward.5} parent=0 // pred_check_branch
    %9 = sbr.rel (0) target = $region5
  $region4: #{discriminator_forward.5} parent=0 // pred_region
    _
  $region5: #{discriminator_forward.5} parent=0 // pred_fallthru
    _
  // Predicated region
  $region6: #{discriminator_forward.5} parent=0 // pred_check
    _
  $region7: #{discriminator_forward.5} parent=0 // pred_check_branch
    %11 = sbr.rel (0) target = $region9
  $region8: #{discriminator_forward.5} parent=0 // pred_region
    _
  $region9: #{discriminator_forward.5} parent=0 // pred_fallthru
    _
  // Predicated region
  $region10: #{discriminator_forward.5} parent=0 // pred_check
    _
  $region11: #{discriminator_forward.5} parent=0 // pred_check_branch
    %13 = sbr.rel (0) target = $region13
  $region12: #{discriminator_forward.5} parent=0 // pred_region
    _
  $region13: #{discriminator_forward.5} parent=0 // pred_fallthru
    _
  %v15 = vld [vmem:[%s0] sm:$0xf]
  %v16 = vld [vmem:[%s0 + $0x4] sm:$0xf]
  %v17 = vld [vmem:[%s0 + $0x8] sm:$0xf]
  %v18 = vld [vmem:[%s0 + $0xc] sm:$0xf]
  %v19 = vld [vmem:[%s0 + $0x10] sm:$0xf]
  %v20 = vld [vmem:[%s0 + $0x14] sm:$0xf]
  %v21 = vld [vmem:[%s0 + $0x18] sm:$0xf]
  %v22 = vld [vmem:[%s0 + $0x1c] sm:$0xf]
  %v23 = vld [vmem:[%s0 + $0x20] sm:$0xf]
  %v24 = vld [vmem:[%s0 + $0x24] sm:$0xf]
  %v25 = vld [vmem:[%s0 + $0x28] sm:$0xf]
  %v26 = vld [vmem:[%s0 + $0x2c] sm:$0xf]
  %v27 = vld [vmem:[%s0 + $0x30] sm:$0xf]
  %v28 = vld [vmem:[%s0 + $0x34] sm:$0xf]
  %v29 = vld [vmem:[%s0 + $0x38] sm:$0xf]
  %v30 = vld [vmem:[%s0 + $0x3c] sm:$0xf]
  %v31 = vld [vmem:[%s0 + $0x40] sm:$0xf]
  %v32 = vld [vmem:[%s0 + $0x44] sm:$0xf]
  %v33 = vld [vmem:[%s0 + $0x48] sm:$0xf]
  %v34 = vld [vmem:[%s0 + $0x4c] sm:$0xf]
  %v35 = vld [vmem:[%s0 + $0x50] sm:$0xf]
  %v36 = vld [vmem:[%s0 + $0x54] sm:$0xf]
  %v37 = vld [vmem:[%s0 + $0x58] sm:$0xf]
  %v38 = vld [vmem:[%s0 + $0x5c] sm:$0xf]
  %v39 = vld [vmem:[%s0 + $0x60] sm:$0xf]
  %v40 = vld [vmem:[%s0 + $0x64] sm:$0xf]
  %v41 = vld [vmem:[%s0 + $0x68] sm:$0xf]
  %v42 = vld [vmem:[%s0 + $0x6c] sm:$0xf]
  %v43 = vld [vmem:[%s0 + $0x70] sm:$0xf]
  %v44 = vld [vmem:[%s0 + $0x74] sm:$0xf]
  %v45 = vld [vmem:[%s0 + $0x78] sm:$0xf]
  %v46 = vld [vmem:[%s0 + $0x7c] sm:$0xf]
  %v47 = vld [vmem:[%s0 + $0x80] sm:$0xf]
  %v48 = vld [vmem:[%s0 + $0x84] sm:$0xf]
  %v49 = vld [vmem:[%s0 + $0x88] sm:$0xf]
  %v50 = vld [vmem:[%s0 + $0x8c] sm:$0xf]
  %v51 = vld [vmem:[%s0 + $0x90] sm:$0xf]
  %v52 = vld [vmem:[%s0 + $0x94] sm:$0xf]
  %v53 = vld [vmem:[%s0 + $0x98] sm:$0xf]
  %v54 = vld [vmem:[%s0 + $0x9c] sm:$0xf]
  %v55 = vld [vmem:[%s0 + $0xa0] sm:$0xf]
  %v56 = vld [vmem:[%s0 + $0xa4] sm:$0xf]
  %v57 = vld [vmem:[%s0 + $0xa8] sm:$0xf]
  %v58 = vld [vmem:[%s0 + $0xac] sm:$0xf]
  %v59 = vld [vmem:[%s0 + $0xb0] sm:$0xf]
  %v60 = vld [vmem:[%s0 + $0xb4] sm:$0xf]
  %v61 = vld [vmem:[%s0 + $0xb8] sm:$0xf]
  %v62 = vld [vmem:[%s0 + $0xbc] sm:$0xf]
  %v63 = vld [vmem:[%s0 + $0xc0] sm:$0xf]
  %v64 = vld [vmem:[%s0 + $0xc4] sm:$0xf]
  %v65 = vld [vmem:[%s0 + $0xc8] sm:$0xf]
  %v66 = vld [vmem:[%s0 + $0xcc] sm:$0xf]
  %v67 = vld [vmem:[%s0 + $0xd0] sm:$0xf]
  %v68 = vld [vmem:[%s0 + $0xd4] sm:$0xf]
  %v69 = vld [vmem:[%s0 + $0xd8] sm:$0xf]
  %v70 = vld [vmem:[%s0 + $0xdc] sm:$0xf]
  %v71 = vld [vmem:[%s0 + $0xe0] sm:$0xf]
  %v72 = vld [vmem:[%s0 + $0xe4] sm:$0xf]
  %v73 = vld [vmem:[%s0 + $0xe8] sm:$0xf]
  %v74 = vld [vmem:[%s0 + $0xec] sm:$0xf]
  %v75 = vld [vmem:[%s0 + $0xf0] sm:$0xf]
  %v76 = vld [vmem:[%s0 + $0xf4] sm:$0xf]
  %v77 = vld [vmem:[%s0 + $0xf8] sm:$0xf]
  %v78 = vld [vmem:[%s0 + $0xfc] sm:$0xf]
  %v79 = vld [vmem:[%s1] sm:$0xf]
  %v80 = vld [vmem:[%s1 + $0x4] sm:$0xf]
  %v81 = vld [vmem:[%s1 + $0x8] sm:$0xf]
  %v82 = vld [vmem:[%s1 + $0xc] sm:$0xf]
  %v83 = vld [vmem:[%s1 + $0x10] sm:$0xf]
  %v84 = vld [vmem:[%s1 + $0x14] sm:$0xf]
  %v85 = vld [vmem:[%s2] sm:$0x1]
  %v87 = vperm.slane %v85, 0
  %v153 = vunpack.c.l.b16 %v15
  %v154 = vunpack.c.l.b16 %v16
  %v155 = vunpack.c.l.b16 %v17
  %v156 = vunpack.c.l.b16 %v18
  %v157 = vunpack.c.l.b16 %v19
  %v158 = vunpack.c.l.b16 %v20
  %v159 = vunpack.c.l.b16 %v21
  %v160 = vunpack.c.l.b16 %v22
  %v161 = vunpack.c.l.b16 %v23
  %v162 = vunpack.c.l.b16 %v24
  %v163 = vunpack.c.l.b16 %v25
  %v164 = vunpack.c.l.b16 %v26
  %v165 = vunpack.c.l.b16 %v27
  %v166 = vunpack.c.l.b16 %v28
  %v167 = vunpack.c.l.b16 %v29
  %v168 = vunpack.c.l.b16 %v30
  %v169 = vunpack.c.l.b16 %v31
  %v170 = vunpack.c.l.b16 %v32
  %v171 = vunpack.c.l.b16 %v33
  %v172 = vunpack.c.l.b16 %v34
  %v173 = vunpack.c.l.b16 %v35
  %v174 = vunpack.c.l.b16 %v36
  %v175 = vunpack.c.l.b16 %v37
  %v176 = vunpack.c.l.b16 %v38
  %v177 = vunpack.c.l.b16 %v39
  %v178 = vunpack.c.l.b16 %v40
  %v179 = vunpack.c.l.b16 %v41
  %v180 = vunpack.c.l.b16 %v42
  %v181 = vunpack.c.l.b16 %v43
  %v182 = vunpack.c.l.b16 %v44
  %v183 = vunpack.c.l.b16 %v45
  %v184 = vunpack.c.l.b16 %v46
  %v185 = vunpack.c.l.b16 %v47
  %v186 = vunpack.c.l.b16 %v48
  %v187 = vunpack.c.l.b16 %v49
  %v188 = vunpack.c.l.b16 %v50
  %v189 = vunpack.c.l.b16 %v51
  %v190 = vunpack.c.l.b16 %v52
  %v191 = vunpack.c.l.b16 %v53
  %v192 = vunpack.c.l.b16 %v54
  %v193 = vunpack.c.l.b16 %v55
  %v194 = vunpack.c.l.b16 %v56
  %v195 = vunpack.c.l.b16 %v57
  %v196 = vunpack.c.l.b16 %v58
  %v197 = vunpack.c.l.b16 %v59
  %v198 = vunpack.c.l.b16 %v60
  %v199 = vunpack.c.l.b16 %v61
  %v200 = vunpack.c.l.b16 %v62
  %v201 = vunpack.c.l.b16 %v63
  %v202 = vunpack.c.l.b16 %v64
  %v203 = vunpack.c.l.b16 %v65
  %v204 = vunpack.c.l.b16 %v66
  %v205 = vunpack.c.l.b16 %v67
  %v206 = vunpack.c.l.b16 %v68
  %v207 = vunpack.c.l.b16 %v69
  %v208 = vunpack.c.l.b16 %v70
  %v209 = vunpack.c.l.b16 %v71
  %v210 = vunpack.c.l.b16 %v72
  %v211 = vunpack.c.l.b16 %v73
  %v212 = vunpack.c.l.b16 %v74
  %v213 = vunpack.c.l.b16 %v75
  %v214 = vunpack.c.l.b16 %v76
  %v215 = vunpack.c.l.b16 %v77
  %v216 = vunpack.c.l.b16 %v78
  %v217 = vpack.c.b16 %v154, %v153
  %v218 = vpack.c.b16 %v156, %v155
  %v219 = vpack.c.b16 %v158, %v157
  %v220 = vpack.c.b16 %v160, %v159
  %v221 = vpack.c.b16 %v162, %v161
  %v222 = vpack.c.b16 %v164, %v163
  %v223 = vpack.c.b16 %v166, %v165
  %v224 = vpack.c.b16 %v168, %v167
  %v225 = vpack.c.b16 %v170, %v169
  %v226 = vpack.c.b16 %v172, %v171
  %v227 = vpack.c.b16 %v174, %v173
  %v228 = vpack.c.b16 %v176, %v175
  %v229 = vpack.c.b16 %v178, %v177
  %v230 = vpack.c.b16 %v180, %v179
  %v231 = vpack.c.b16 %v182, %v181
  %v232 = vpack.c.b16 %v184, %v183
  %v233 = vpack.c.b16 %v186, %v185
  %v234 = vpack.c.b16 %v188, %v187
  %v235 = vpack.c.b16 %v190, %v189
  %v236 = vpack.c.b16 %v192, %v191
  %v237 = vpack.c.b16 %v194, %v193
  %v238 = vpack.c.b16 %v196, %v195
  %v239 = vpack.c.b16 %v198, %v197
  %v240 = vpack.c.b16 %v200, %v199
  %v241 = vpack.c.b16 %v202, %v201
  %v242 = vpack.c.b16 %v204, %v203
  %v243 = vpack.c.b16 %v206, %v205
  %v244 = vpack.c.b16 %v208, %v207
  %v245 = vpack.c.b16 %v210, %v209
  %v246 = vpack.c.b16 %v212, %v211
  %v247 = vpack.c.b16 %v214, %v213
  %v248 = vpack.c.b16 %v216, %v215
  %v255 = vunpack.c.l.b16 %v79
  %v256 = vunpack.c.l.b16 %v80
  %v257 = vunpack.c.l.b16 %v81
  %v258 = vunpack.c.l.b16 %v82
  %v259 = vunpack.c.l.b16 %v83
  %v260 = vunpack.c.l.b16 %v84
  %v261 = vpack.c.b16 %v256, %v255
  %v262 = vpack.c.b16 %v258, %v257
  %v263 = vpack.c.b16 %v260, %v259
  %vm267 = vcmask 392192
  %v269 = vsel %vm267, %v217, 0
  %v272 = vsel %vm267, %v218, 0
  %v275 = vsel %vm267, %v219, 0
  %v278 = vsel %vm267, %v220, 0
  %v281 = vsel %vm267, %v221, 0
  %v284 = vsel %vm267, %v222, 0
  %v287 = vsel %vm267, %v223, 0
  %v290 = vsel %vm267, %v224, 0
  %v293 = vsel %vm267, %v225, 0
  %v296 = vsel %vm267, %v226, 0
  %v299 = vsel %vm267, %v227, 0
  %v302 = vsel %vm267, %v228, 0
  %v305 = vsel %vm267, %v229, 0
  %v308 = vsel %vm267, %v230, 0
  %v311 = vsel %vm267, %v231, 0
  %v314 = vsel %vm267, %v232, 0
  %v317 = vsel %vm267, %v233, 0
  %v320 = vsel %vm267, %v234, 0
  %v323 = vsel %vm267, %v235, 0
  %v326 = vsel %vm267, %v236, 0
  %v329 = vsel %vm267, %v237, 0
  %v332 = vsel %vm267, %v238, 0
  %v335 = vsel %vm267, %v239, 0
  %v338 = vsel %vm267, %v240, 0
  %v341 = vsel %vm267, %v241, 0
  %v344 = vsel %vm267, %v242, 0
  %v347 = vsel %vm267, %v243, 0
  %v350 = vsel %vm267, %v244, 0
  %v353 = vsel %vm267, %v245, 0
  %v356 = vsel %vm267, %v246, 0
  %v359 = vsel %vm267, %v247, 0
  %v362 = vsel %vm267, %v248, 0
  %364 = vmatpush.bf16.msra.mxu0 0
  %365 = vmatpush.bf16.msra.mxu0 0
  %366 = vmatpush.bf16.msra.mxu0 0
  %367 = vmatpush.bf16.msra.mxu0 0
  %368 = vmatpush.bf16.msra.mxu0 0
  %369 = vmatpush.bf16.msra.mxu0 %v263
  %370 = vmatpush.bf16.msra.mxu0 %v262
  %371 = vmatpush.bf16.msra.mxu0 %v261
  %372 = vmatmul.bf16.gmra.mxu0 %v269
  %v373 = vpop.f32.mrf.mxu0
  %v374 = vadd.f32 %v87, %v373
  %v375 = vpop.f32.mrf.mxu0
  %v376 = vadd.f32 %v87, %v375
  %377 = vmatmul.bf16.gmra.mxu0 %v272
  %v378 = vpop.f32.mrf.mxu0
  %v379 = vadd.f32 %v87, %v378
  %v380 = vpop.f32.mrf.mxu0
  %v381 = vadd.f32 %v87, %v380
  %382 = vmatmul.bf16.gmra.mxu0 %v275
  %v383 = vpop.f32.mrf.mxu0
  %v384 = vadd.f32 %v87, %v383
  %v385 = vpop.f32.mrf.mxu0
  %v386 = vadd.f32 %v87, %v385
  %387 = vmatmul.bf16.gmra.mxu0 %v278
  %v388 = vpop.f32.mrf.mxu0
  %v389 = vadd.f32 %v87, %v388
  %v390 = vpop.f32.mrf.mxu0
  %v391 = vadd.f32 %v87, %v390
  %392 = vmatmul.bf16.gmra.mxu0 %v281
  %v393 = vpop.f32.mrf.mxu0
  %v394 = vadd.f32 %v87, %v393
  %v395 = vpop.f32.mrf.mxu0
  %v396 = vadd.f32 %v87, %v395
  %397 = vmatmul.bf16.gmra.mxu0 %v284
  %v398 = vpop.f32.mrf.mxu0
  %v399 = vadd.f32 %v87, %v398
  %v400 = vpop.f32.mrf.mxu0
  %v401 = vadd.f32 %v87, %v400
  %402 = vmatmul.bf16.gmra.mxu0 %v287
  %v403 = vpop.f32.mrf.mxu0
  %v404 = vadd.f32 %v87, %v403
  %v405 = vpop.f32.mrf.mxu0
  %v406 = vadd.f32 %v87, %v405
  %407 = vmatmul.bf16.gmra.mxu0 %v290
  %v408 = vpop.f32.mrf.mxu0
  %v409 = vadd.f32 %v87, %v408
  %v410 = vpop.f32.mrf.mxu0
  %v411 = vadd.f32 %v87, %v410
  %412 = vmatmul.bf16.gmra.mxu0 %v293
  %v413 = vpop.f32.mrf.mxu0
  %v414 = vadd.f32 %v87, %v413
  %v415 = vpop.f32.mrf.mxu0
  %v416 = vadd.f32 %v87, %v415
  %417 = vmatmul.bf16.gmra.mxu0 %v296
  %v418 = vpop.f32.mrf.mxu0
  %v419 = vadd.f32 %v87, %v418
  %v420 = vpop.f32.mrf.mxu0
  %v421 = vadd.f32 %v87, %v420
  %422 = vmatmul.bf16.gmra.mxu0 %v299
  %v423 = vpop.f32.mrf.mxu0
  %v424 = vadd.f32 %v87, %v423
  %v425 = vpop.f32.mrf.mxu0
  %v426 = vadd.f32 %v87, %v425
  %427 = vmatmul.bf16.gmra.mxu0 %v302
  %v428 = vpop.f32.mrf.mxu0
  %v429 = vadd.f32 %v87, %v428
  %v430 = vpop.f32.mrf.mxu0
  %v431 = vadd.f32 %v87, %v430
  %432 = vmatmul.bf16.gmra.mxu0 %v305
  %v433 = vpop.f32.mrf.mxu0
  %v434 = vadd.f32 %v87, %v433
  %v435 = vpop.f32.mrf.mxu0
  %v436 = vadd.f32 %v87, %v435
  %437 = vmatmul.bf16.gmra.mxu0 %v308
  %v438 = vpop.f32.mrf.mxu0
  %v439 = vadd.f32 %v87, %v438
  %v440 = vpop.f32.mrf.mxu0
  %v441 = vadd.f32 %v87, %v440
  %442 = vmatmul.bf16.gmra.mxu0 %v311
  %v443 = vpop.f32.mrf.mxu0
  %v444 = vadd.f32 %v87, %v443
  %v445 = vpop.f32.mrf.mxu0
  %v446 = vadd.f32 %v87, %v445
  %447 = vmatmul.bf16.gmra.mxu0 %v314
  %v448 = vpop.f32.mrf.mxu0
  %v449 = vadd.f32 %v87, %v448
  %v450 = vpop.f32.mrf.mxu0
  %v451 = vadd.f32 %v87, %v450
  %452 = vmatmul.bf16.gmra.mxu0 %v317
  %v453 = vpop.f32.mrf.mxu0
  %v454 = vadd.f32 %v87, %v453
  %v455 = vpop.f32.mrf.mxu0
  %v456 = vadd.f32 %v87, %v455
  %457 = vmatmul.bf16.gmra.mxu0 %v320
  %v458 = vpop.f32.mrf.mxu0
  %v459 = vadd.f32 %v87, %v458
  %v460 = vpop.f32.mrf.mxu0
  %v461 = vadd.f32 %v87, %v460
  %462 = vmatmul.bf16.gmra.mxu0 %v323
  %v463 = vpop.f32.mrf.mxu0
  %v464 = vadd.f32 %v87, %v463
  %v465 = vpop.f32.mrf.mxu0
  %v466 = vadd.f32 %v87, %v465
  %467 = vmatmul.bf16.gmra.mxu0 %v326
  %v468 = vpop.f32.mrf.mxu0
  %v469 = vadd.f32 %v87, %v468
  %v470 = vpop.f32.mrf.mxu0
  %v471 = vadd.f32 %v87, %v470
  %472 = vmatmul.bf16.gmra.mxu0 %v329
  %v473 = vpop.f32.mrf.mxu0
  %v474 = vadd.f32 %v87, %v473
  %v475 = vpop.f32.mrf.mxu0
  %v476 = vadd.f32 %v87, %v475
  %477 = vmatmul.bf16.gmra.mxu0 %v332
  %v478 = vpop.f32.mrf.mxu0
  %v479 = vadd.f32 %v87, %v478
  %v480 = vpop.f32.mrf.mxu0
  %v481 = vadd.f32 %v87, %v480
  %482 = vmatmul.bf16.gmra.mxu0 %v335
  %v483 = vpop.f32.mrf.mxu0
  %v484 = vadd.f32 %v87, %v483
  %v485 = vpop.f32.mrf.mxu0
  %v486 = vadd.f32 %v87, %v485
  %487 = vmatmul.bf16.gmra.mxu0 %v338
  %v488 = vpop.f32.mrf.mxu0
  %v489 = vadd.f32 %v87, %v488
  %v490 = vpop.f32.mrf.mxu0
  %v491 = vadd.f32 %v87, %v490
  %492 = vmatmul.bf16.gmra.mxu0 %v341
  %v493 = vpop.f32.mrf.mxu0
  %v494 = vadd.f32 %v87, %v493
  %v495 = vpop.f32.mrf.mxu0
  %v496 = vadd.f32 %v87, %v495
  %497 = vmatmul.bf16.gmra.mxu0 %v344
  %v498 = vpop.f32.mrf.mxu0
  %v499 = vadd.f32 %v87, %v498
  %v500 = vpop.f32.mrf.mxu0
  %v501 = vadd.f32 %v87, %v500
  %502 = vmatmul.bf16.gmra.mxu0 %v347
  %v503 = vpop.f32.mrf.mxu0
  %v504 = vadd.f32 %v87, %v503
  %v505 = vpop.f32.mrf.mxu0
  %v506 = vadd.f32 %v87, %v505
  %507 = vmatmul.bf16.gmra.mxu0 %v350
  %v508 = vpop.f32.mrf.mxu0
  %v509 = vadd.f32 %v87, %v508
  %v510 = vpop.f32.mrf.mxu0
  %v511 = vadd.f32 %v87, %v510
  %512 = vmatmul.bf16.gmra.mxu0 %v353
  %v513 = vpop.f32.mrf.mxu0
  %v514 = vadd.f32 %v87, %v513
  %v515 = vpop.f32.mrf.mxu0
  %v516 = vadd.f32 %v87, %v515
  %517 = vmatmul.bf16.gmra.mxu0 %v356
  %v518 = vpop.f32.mrf.mxu0
  %v519 = vadd.f32 %v87, %v518
  %v520 = vpop.f32.mrf.mxu0
  %v521 = vadd.f32 %v87, %v520
  %522 = vmatmul.bf16.gmra.mxu0 %v359
  %v523 = vpop.f32.mrf.mxu0
  %v524 = vadd.f32 %v87, %v523
  %v525 = vpop.f32.mrf.mxu0
  %v526 = vadd.f32 %v87, %v525
  %527 = vmatmul.bf16.gmra.mxu0 %v362
  %v528 = vpop.f32.mrf.mxu0
  %v529 = vadd.f32 %v87, %v528
  %v530 = vpop.f32.mrf.mxu0
  %v531 = vadd.f32 %v87, %v530
  %532 = vdwg.mxu0
  %vm533 = vcmp.ge.f32.partialorder %v374, 0.0
  %vm534 = vcmp.ge.f32.partialorder %v376, 0.0
  %vm535 = vcmp.ge.f32.partialorder %v379, 0.0
  %vm536 = vcmp.ge.f32.partialorder %v381, 0.0
  %vm537 = vcmp.ge.f32.partialorder %v384, 0.0
  %vm538 = vcmp.ge.f32.partialorder %v386, 0.0
  %vm539 = vcmp.ge.f32.partialorder %v389, 0.0
  %vm540 = vcmp.ge.f32.partialorder %v391, 0.0
  %vm541 = vcmp.ge.f32.partialorder %v394, 0.0
  %vm542 = vcmp.ge.f32.partialorder %v396, 0.0
  %vm543 = vcmp.ge.f32.partialorder %v399, 0.0
  %vm544 = vcmp.ge.f32.partialorder %v401, 0.0
  %vm545 = vcmp.ge.f32.partialorder %v404, 0.0
  %vm546 = vcmp.ge.f32.partialorder %v406, 0.0
  %vm547 = vcmp.ge.f32.partialorder %v409, 0.0
  %vm548 = vcmp.ge.f32.partialorder %v411, 0.0
  %vm549 = vcmp.ge.f32.partialorder %v414, 0.0
  %vm550 = vcmp.ge.f32.partialorder %v416, 0.0
  %vm551 = vcmp.ge.f32.partialorder %v419, 0.0
  %vm552 = vcmp.ge.f32.partialorder %v421, 0.0
  %vm553 = vcmp.ge.f32.partialorder %v424, 0.0
  %vm554 = vcmp.ge.f32.partialorder %v426, 0.0
  %vm555 = vcmp.ge.f32.partialorder %v429, 0.0
  %vm556 = vcmp.ge.f32.partialorder %v431, 0.0
  %vm557 = vcmp.ge.f32.partialorder %v434, 0.0
  %vm558 = vcmp.ge.f32.partialorder %v436, 0.0
  %vm559 = vcmp.ge.f32.partialorder %v439, 0.0
  %vm560 = vcmp.ge.f32.partialorder %v441, 0.0
  %vm561 = vcmp.ge.f32.partialorder %v444, 0.0
  %vm562 = vcmp.ge.f32.partialorder %v446, 0.0
  %vm563 = vcmp.ge.f32.partialorder %v449, 0.0
  %vm564 = vcmp.ge.f32.partialorder %v451, 0.0
  %vm565 = vcmp.ge.f32.partialorder %v454, 0.0
  %vm566 = vcmp.ge.f32.partialorder %v456, 0.0
  %vm567 = vcmp.ge.f32.partialorder %v459, 0.0
  %vm568 = vcmp.ge.f32.partialorder %v461, 0.0
  %vm569 = vcmp.ge.f32.partialorder %v464, 0.0
  %vm570 = vcmp.ge.f32.partialorder %v466, 0.0
  %vm571 = vcmp.ge.f32.partialorder %v469, 0.0
  %vm572 = vcmp.ge.f32.partialorder %v471, 0.0
  %vm573 = vcmp.ge.f32.partialorder %v474, 0.0
  %vm574 = vcmp.ge.f32.partialorder %v476, 0.0
  %vm575 = vcmp.ge.f32.partialorder %v479, 0.0
  %vm576 = vcmp.ge.f32.partialorder %v481, 0.0
  %vm577 = vcmp.ge.f32.partialorder %v484, 0.0
  %vm578 = vcmp.ge.f32.partialorder %v486, 0.0
  %vm579 = vcmp.ge.f32.partialorder %v489, 0.0
  %vm580 = vcmp.ge.f32.partialorder %v491, 0.0
  %vm581 = vcmp.ge.f32.partialorder %v494, 0.0
  %vm582 = vcmp.ge.f32.partialorder %v496, 0.0
  %vm583 = vcmp.ge.f32.partialorder %v499, 0.0
  %vm584 = vcmp.ge.f32.partialorder %v501, 0.0
  %vm585 = vcmp.ge.f32.partialorder %v504, 0.0
  %vm586 = vcmp.ge.f32.partialorder %v506, 0.0
  %vm587 = vcmp.ge.f32.partialorder %v509, 0.0
  %vm588 = vcmp.ge.f32.partialorder %v511, 0.0
  %vm589 = vcmp.ge.f32.partialorder %v514, 0.0
  %vm590 = vcmp.ge.f32.partialorder %v516, 0.0
  %vm591 = vcmp.ge.f32.partialorder %v519, 0.0
  %vm592 = vcmp.ge.f32.partialorder %v521, 0.0
  %vm593 = vcmp.ge.f32.partialorder %v524, 0.0
  %vm594 = vcmp.ge.f32.partialorder %v526, 0.0
  %vm595 = vcmp.ge.f32.partialorder %v529, 0.0
  %vm596 = vcmp.ge.f32.partialorder %v531, 0.0
  %v597 = vmul.f32 %v374, 0.2
  %v598 = vmul.f32 %v376, 0.2
  %v599 = vmul.f32 %v379, 0.2
  %v600 = vmul.f32 %v381, 0.2
  %v601 = vmul.f32 %v384, 0.2
  %v602 = vmul.f32 %v386, 0.2
  %v603 = vmul.f32 %v389, 0.2
  %v604 = vmul.f32 %v391, 0.2
  %v605 = vmul.f32 %v394, 0.2
  %v606 = vmul.f32 %v396, 0.2
  %v607 = vmul.f32 %v399, 0.2
  %v608 = vmul.f32 %v401, 0.2
  %v609 = vmul.f32 %v404, 0.2
  %v610 = vmul.f32 %v406, 0.2
  %v611 = vmul.f32 %v409, 0.2
  %v612 = vmul.f32 %v411, 0.2
  %v613 = vmul.f32 %v414, 0.2
  %v614 = vmul.f32 %v416, 0.2
  %v615 = vmul.f32 %v419, 0.2
  %v616 = vmul.f32 %v421, 0.2
  %v617 = vmul.f32 %v424, 0.2
  %v618 = vmul.f32 %v426, 0.2
  %v619 = vmul.f32 %v429, 0.2
  %v620 = vmul.f32 %v431, 0.2
  %v621 = vmul.f32 %v434, 0.2
  %v622 = vmul.f32 %v436, 0.2
  %v623 = vmul.f32 %v439, 0.2
  %v624 = vmul.f32 %v441, 0.2
  %v625 = vmul.f32 %v444, 0.2
  %v626 = vmul.f32 %v446, 0.2
  %v627 = vmul.f32 %v449, 0.2
  %v628 = vmul.f32 %v451, 0.2
  %v629 = vmul.f32 %v454, 0.2
  %v630 = vmul.f32 %v456, 0.2
  %v631 = vmul.f32 %v459, 0.2
  %v632 = vmul.f32 %v461, 0.2
  %v633 = vmul.f32 %v464, 0.2
  %v634 = vmul.f32 %v466, 0.2
  %v635 = vmul.f32 %v469, 0.2
  %v636 = vmul.f32 %v471, 0.2
  %v637 = vmul.f32 %v474, 0.2
  %v638 = vmul.f32 %v476, 0.2
  %v639 = vmul.f32 %v479, 0.2
  %v640 = vmul.f32 %v481, 0.2
  %v641 = vmul.f32 %v484, 0.2
  %v642 = vmul.f32 %v486, 0.2
  %v643 = vmul.f32 %v489, 0.2
  %v644 = vmul.f32 %v491, 0.2
  %v645 = vmul.f32 %v494, 0.2
  %v646 = vmul.f32 %v496, 0.2
  %v647 = vmul.f32 %v499, 0.2
  %v648 = vmul.f32 %v501, 0.2
  %v649 = vmul.f32 %v504, 0.2
  %v650 = vmul.f32 %v506, 0.2
  %v651 = vmul.f32 %v509, 0.2
  %v652 = vmul.f32 %v511, 0.2
  %v653 = vmul.f32 %v514, 0.2
  %v654 = vmul.f32 %v516, 0.2
  %v655 = vmul.f32 %v519, 0.2
  %v656 = vmul.f32 %v521, 0.2
  %v657 = vmul.f32 %v524, 0.2
  %v658 = vmul.f32 %v526, 0.2
  %v659 = vmul.f32 %v529, 0.2
  %v660 = vmul.f32 %v531, 0.2
  %v661 = vsel %vm533, %v374, %v597
  %v662 = vsel %vm534, %v376, %v598
  %v663 = vsel %vm535, %v379, %v599
  %v664 = vsel %vm536, %v381, %v600
  %v665 = vsel %vm537, %v384, %v601
  %v666 = vsel %vm538, %v386, %v602
  %v667 = vsel %vm539, %v389, %v603
  %v668 = vsel %vm540, %v391, %v604
  %v669 = vsel %vm541, %v394, %v605
  %v670 = vsel %vm542, %v396, %v606
  %v671 = vsel %vm543, %v399, %v607
  %v672 = vsel %vm544, %v401, %v608
  %v673 = vsel %vm545, %v404, %v609
  %v674 = vsel %vm546, %v406, %v610
  %v675 = vsel %vm547, %v409, %v611
  %v676 = vsel %vm548, %v411, %v612
  %v677 = vsel %vm549, %v414, %v613
  %v678 = vsel %vm550, %v416, %v614
  %v679 = vsel %vm551, %v419, %v615
  %v680 = vsel %vm552, %v421, %v616
  %v681 = vsel %vm553, %v424, %v617
  %v682 = vsel %vm554, %v426, %v618
  %v683 = vsel %vm555, %v429, %v619
  %v684 = vsel %vm556, %v431, %v620
  %v685 = vsel %vm557, %v434, %v621
  %v686 = vsel %vm558, %v436, %v622
  %v687 = vsel %vm559, %v439, %v623
  %v688 = vsel %vm560, %v441, %v624
  %v689 = vsel %vm561, %v444, %v625
  %v690 = vsel %vm562, %v446, %v626
  %v691 = vsel %vm563, %v449, %v627
  %v692 = vsel %vm564, %v451, %v628
  %v693 = vsel %vm565, %v454, %v629
  %v694 = vsel %vm566, %v456, %v630
  %v695 = vsel %vm567, %v459, %v631
  %v696 = vsel %vm568, %v461, %v632
  %v697 = vsel %vm569, %v464, %v633
  %v698 = vsel %vm570, %v466, %v634
  %v699 = vsel %vm571, %v469, %v635
  %v700 = vsel %vm572, %v471, %v636
  %v701 = vsel %vm573, %v474, %v637
  %v702 = vsel %vm574, %v476, %v638
  %v703 = vsel %vm575, %v479, %v639
  %v704 = vsel %vm576, %v481, %v640
  %v705 = vsel %vm577, %v484, %v641
  %v706 = vsel %vm578, %v486, %v642
  %v707 = vsel %vm579, %v489, %v643
  %v708 = vsel %vm580, %v491, %v644
  %v709 = vsel %vm581, %v494, %v645
  %v710 = vsel %vm582, %v496, %v646
  %v711 = vsel %vm583, %v499, %v647
  %v712 = vsel %vm584, %v501, %v648
  %v713 = vsel %vm585, %v504, %v649
  %v714 = vsel %vm586, %v506, %v650
  %v715 = vsel %vm587, %v509, %v651
  %v716 = vsel %vm588, %v511, %v652
  %v717 = vsel %vm589, %v514, %v653
  %v718 = vsel %vm590, %v516, %v654
  %v719 = vsel %vm591, %v519, %v655
  %v720 = vsel %vm592, %v521, %v656
  %v721 = vsel %vm593, %v524, %v657
  %v722 = vsel %vm594, %v526, %v658
  %v723 = vsel %vm595, %v529, %v659
  %v724 = vsel %vm596, %v531, %v660
  %v725 = vpack.c.bf16 %v661, %v661
  %v726 = vpack.c.bf16 %v662, %v662
  %v727 = vpack.c.bf16 %v663, %v663
  %v728 = vpack.c.bf16 %v664, %v664
  %v729 = vpack.c.bf16 %v665, %v665
  %v730 = vpack.c.bf16 %v666, %v666
  %v731 = vpack.c.bf16 %v667, %v667
  %v732 = vpack.c.bf16 %v668, %v668
  %v733 = vpack.c.bf16 %v669, %v669
  %v734 = vpack.c.bf16 %v670, %v670
  %v735 = vpack.c.bf16 %v671, %v671
  %v736 = vpack.c.bf16 %v672, %v672
  %v737 = vpack.c.bf16 %v673, %v673
  %v738 = vpack.c.bf16 %v674, %v674
  %v739 = vpack.c.bf16 %v675, %v675
  %v740 = vpack.c.bf16 %v676, %v676
  %v741 = vpack.c.bf16 %v677, %v677
  %v742 = vpack.c.bf16 %v678, %v678
  %v743 = vpack.c.bf16 %v679, %v679
  %v744 = vpack.c.bf16 %v680, %v680
  %v745 = vpack.c.bf16 %v681, %v681
  %v746 = vpack.c.bf16 %v682, %v682
  %v747 = vpack.c.bf16 %v683, %v683
  %v748 = vpack.c.bf16 %v684, %v684
  %v749 = vpack.c.bf16 %v685, %v685
  %v750 = vpack.c.bf16 %v686, %v686
  %v751 = vpack.c.bf16 %v687, %v687
  %v752 = vpack.c.bf16 %v688, %v688
  %v753 = vpack.c.bf16 %v689, %v689
  %v754 = vpack.c.bf16 %v690, %v690
  %v755 = vpack.c.bf16 %v691, %v691
  %v756 = vpack.c.bf16 %v692, %v692
  %v757 = vpack.c.bf16 %v693, %v693
  %v758 = vpack.c.bf16 %v694, %v694
  %v759 = vpack.c.bf16 %v695, %v695
  %v760 = vpack.c.bf16 %v696, %v696
  %v761 = vpack.c.bf16 %v697, %v697
  %v762 = vpack.c.bf16 %v698, %v698
  %v763 = vpack.c.bf16 %v699, %v699
  %v764 = vpack.c.bf16 %v700, %v700
  %v765 = vpack.c.bf16 %v701, %v701
  %v766 = vpack.c.bf16 %v702, %v702
  %v767 = vpack.c.bf16 %v703, %v703
  %v768 = vpack.c.bf16 %v704, %v704
  %v769 = vpack.c.bf16 %v705, %v705
  %v770 = vpack.c.bf16 %v706, %v706
  %v771 = vpack.c.bf16 %v707, %v707
  %v772 = vpack.c.bf16 %v708, %v708
  %v773 = vpack.c.bf16 %v709, %v709
  %v774 = vpack.c.bf16 %v710, %v710
  %v775 = vpack.c.bf16 %v711, %v711
  %v776 = vpack.c.bf16 %v712, %v712
  %v777 = vpack.c.bf16 %v713, %v713
  %v778 = vpack.c.bf16 %v714, %v714
  %v779 = vpack.c.bf16 %v715, %v715
  %v780 = vpack.c.bf16 %v716, %v716
  %v781 = vpack.c.bf16 %v717, %v717
  %v782 = vpack.c.bf16 %v718, %v718
  %v783 = vpack.c.bf16 %v719, %v719
  %v784 = vpack.c.bf16 %v720, %v720
  %v785 = vpack.c.bf16 %v721, %v721
  %v786 = vpack.c.bf16 %v722, %v722
  %v787 = vpack.c.bf16 %v723, %v723
  %v788 = vpack.c.bf16 %v724, %v724
  %vm789 = vcmask 60416
  %790 = vst.msk [vmem:[%s3] sm:$0xf] %vm789, %v725
  %791 = vst.msk [vmem:[%s3 + $0x4] sm:$0xf] %vm789, %v726
  %792 = vst.msk [vmem:[%s3 + $0x8] sm:$0xf] %vm789, %v727
  %793 = vst.msk [vmem:[%s3 + $0xc] sm:$0xf] %vm789, %v728
  %794 = vst.msk [vmem:[%s3 + $0x10] sm:$0xf] %vm789, %v729
  %795 = vst.msk [vmem:[%s3 + $0x14] sm:$0xf] %vm789, %v730
  %796 = vst.msk [vmem:[%s3 + $0x18] sm:$0xf] %vm789, %v731
  %797 = vst.msk [vmem:[%s3 + $0x1c] sm:$0xf] %vm789, %v732
  %798 = vst.msk [vmem:[%s3 + $0x20] sm:$0xf] %vm789, %v733
  %799 = vst.msk [vmem:[%s3 + $0x24] sm:$0xf] %vm789, %v734
  %800 = vst.msk [vmem:[%s3 + $0x28] sm:$0xf] %vm789, %v735
  %801 = vst.msk [vmem:[%s3 + $0x2c] sm:$0xf] %vm789, %v736
  %802 = vst.msk [vmem:[%s3 + $0x30] sm:$0xf] %vm789, %v737
  %803 = vst.msk [vmem:[%s3 + $0x34] sm:$0xf] %vm789, %v738
  %804 = vst.msk [vmem:[%s3 + $0x38] sm:$0xf] %vm789, %v739
  %805 = vst.msk [vmem:[%s3 + $0x3c] sm:$0xf] %vm789, %v740
  %806 = vst.msk [vmem:[%s3 + $0x40] sm:$0xf] %vm789, %v741
  %807 = vst.msk [vmem:[%s3 + $0x44] sm:$0xf] %vm789, %v742
  %808 = vst.msk [vmem:[%s3 + $0x48] sm:$0xf] %vm789, %v743
  %809 = vst.msk [vmem:[%s3 + $0x4c] sm:$0xf] %vm789, %v744
  %810 = vst.msk [vmem:[%s3 + $0x50] sm:$0xf] %vm789, %v745
  %811 = vst.msk [vmem:[%s3 + $0x54] sm:$0xf] %vm789, %v746
  %812 = vst.msk [vmem:[%s3 + $0x58] sm:$0xf] %vm789, %v747
  %813 = vst.msk [vmem:[%s3 + $0x5c] sm:$0xf] %vm789, %v748
  %814 = vst.msk [vmem:[%s3 + $0x60] sm:$0xf] %vm789, %v749
  %815 = vst.msk [vmem:[%s3 + $0x64] sm:$0xf] %vm789, %v750
  %816 = vst.msk [vmem:[%s3 + $0x68] sm:$0xf] %vm789, %v751
  %817 = vst.msk [vmem:[%s3 + $0x6c] sm:$0xf] %vm789, %v752
  %818 = vst.msk [vmem:[%s3 + $0x70] sm:$0xf] %vm789, %v753
  %819 = vst.msk [vmem:[%s3 + $0x74] sm:$0xf] %vm789, %v754
  %820 = vst.msk [vmem:[%s3 + $0x78] sm:$0xf] %vm789, %v755
  %821 = vst.msk [vmem:[%s3 + $0x7c] sm:$0xf] %vm789, %v756
  %822 = vst.msk [vmem:[%s3 + $0x80] sm:$0xf] %vm789, %v757
  %823 = vst.msk [vmem:[%s3 + $0x84] sm:$0xf] %vm789, %v758
  %824 = vst.msk [vmem:[%s3 + $0x88] sm:$0xf] %vm789, %v759
  %825 = vst.msk [vmem:[%s3 + $0x8c] sm:$0xf] %vm789, %v760
  %826 = vst.msk [vmem:[%s3 + $0x90] sm:$0xf] %vm789, %v761
  %827 = vst.msk [vmem:[%s3 + $0x94] sm:$0xf] %vm789, %v762
  %828 = vst.msk [vmem:[%s3 + $0x98] sm:$0xf] %vm789, %v763
  %829 = vst.msk [vmem:[%s3 + $0x9c] sm:$0xf] %vm789, %v764
  %830 = vst.msk [vmem:[%s3 + $0xa0] sm:$0xf] %vm789, %v765
  %831 = vst.msk [vmem:[%s3 + $0xa4] sm:$0xf] %vm789, %v766
  %832 = vst.msk [vmem:[%s3 + $0xa8] sm:$0xf] %vm789, %v767
  %833 = vst.msk [vmem:[%s3 + $0xac] sm:$0xf] %vm789, %v768
  %834 = vst.msk [vmem:[%s3 + $0xb0] sm:$0xf] %vm789, %v769
  %835 = vst.msk [vmem:[%s3 + $0xb4] sm:$0xf] %vm789, %v770
  %836 = vst.msk [vmem:[%s3 + $0xb8] sm:$0xf] %vm789, %v771
  %837 = vst.msk [vmem:[%s3 + $0xbc] sm:$0xf] %vm789, %v772
  %838 = vst.msk [vmem:[%s3 + $0xc0] sm:$0xf] %vm789, %v773
  %839 = vst.msk [vmem:[%s3 + $0xc4] sm:$0xf] %vm789, %v774
  %840 = vst.msk [vmem:[%s3 + $0xc8] sm:$0xf] %vm789, %v775
  %841 = vst.msk [vmem:[%s3 + $0xcc] sm:$0xf] %vm789, %v776
  %842 = vst.msk [vmem:[%s3 + $0xd0] sm:$0xf] %vm789, %v777
  %843 = vst.msk [vmem:[%s3 + $0xd4] sm:$0xf] %vm789, %v778
  %844 = vst.msk [vmem:[%s3 + $0xd8] sm:$0xf] %vm789, %v779
  %845 = vst.msk [vmem:[%s3 + $0xdc] sm:$0xf] %vm789, %v780
  %846 = vst.msk [vmem:[%s3 + $0xe0] sm:$0xf] %vm789, %v781
  %847 = vst.msk [vmem:[%s3 + $0xe4] sm:$0xf] %vm789, %v782
  %848 = vst.msk [vmem:[%s3 + $0xe8] sm:$0xf] %vm789, %v783
  %849 = vst.msk [vmem:[%s3 + $0xec] sm:$0xf] %vm789, %v784
  %850 = vst.msk [vmem:[%s3 + $0xf0] sm:$0xf] %vm789, %v785
  %851 = vst.msk [vmem:[%s3 + $0xf4] sm:$0xf] %vm789, %v786
  %852 = vst.msk [vmem:[%s3 + $0xf8] sm:$0xf] %vm789, %v787
  %853 = vst.msk [vmem:[%s3 + $0xfc] sm:$0xf] %vm789, %v788
  // Predicated region
  $region14: #{discriminator_forward.5} parent=0 // pred_check
    _
  $region15: #{discriminator_forward.5} parent=0 // pred_check_branch
    %855 = sbr.rel (0) target = $region17
  $region16: #{discriminator_forward.5} parent=0 // pred_region
    _
  $region17: #{discriminator_forward.5} parent=0 // pred_fallthru
    _
  // Predicated region
  $region18: #{discriminator_forward.5} parent=0 // pred_check
    _
  $region19: #{discriminator_forward.5} parent=0 // pred_check_branch
    %857 = sbr.rel (0) target = $region21
  $region20: #{discriminator_forward.5} parent=0 // pred_region
    _
  $region21: #{discriminator_forward.5} parent=0 // pred_fallthru
    _

// kernel: tile.33
$region0: #{tile.33}
  #allocation0 [shape = 's32[1]{0}', space=sflag, size = 0x4, scoped, tag = 'scoped memory for tile.33']
  %s0 = inlined_call_operand.vmem [shape: f32[16], index: 0, kind: input, shape index: {}]
  %s1 = inlined_call_operand.vmem [shape: f32[16,16], index: 1, kind: output, shape index: {}]
  // Predicated region
  $region2: #{tile.33} parent=0 // pred_check
    _
  $region3: #{tile.33} parent=0 // pred_check_branch
    %3 = sbr.rel (0) target = $region5
  $region4: #{tile.33} parent=0 // pred_region
    _
  $region5: #{tile.33} parent=0 // pred_fallthru
    _
  %v4 = vld [vmem:[%s0] ss:$0 sm:$0xff]
  %5 = vst [vmem:[%s1] sm:$0xff] %v4
  %s6 = scalar_lea.vmem %s1, 8
  %7 = vst [vmem:[%s6] sm:$0xff] %v4

// kernel: tile.34
$region0: #{tile.34}
  %s0 = inlined_call_operand.vmem [shape: f32[16,16], index: 0, kind: input, shape index: {}]
  %s1 = inlined_call_operand.vmem [shape: f32[1,256], index: 1, kind: output, shape index: {}]
  $region1: #{tile.34} parent=0
    #allocation0 [shape = 'u8[8192]{0}', space=vmem, size = 0x2000, scoped, tag = 'scoped mem for output reshape']
    %s2 = smov 3
    %v3 = vld [vmem:[%s0] ss:$8 sm:%s2]
    %vm4 = vcmask 130048
    %5 = vst.msk [vmem:[#allocation0] ss:$8 sm:$0x3] %vm4, %v3
    %s6 = scalar_lea.vmem %s0, 7
    %s7 = smov 3
    %v8 = vld [vmem:[%s6] ss:$8 sm:%s7]
    %9 = vrot.lane.b32.xlu0 %v8, 112
    %v10 = vpop.permute.xlu0 %9
    %vm11 = vcmask 1048448
    %12 = vst.msk [vmem:[#allocation0] ss:$8 sm:$0x3] %vm11, %v10
    %s13 = scalar_lea.vmem %s0, 6
    %s14 = smov 3
    %v15 = vld [vmem:[%s13] ss:$8 sm:%s14]
    %16 = vrot.lane.b32.xlu0 %v15, 96
    %v17 = vpop.permute.xlu0 %16
    %vm18 = vcmask 917248
    %19 = vst.msk [vmem:[#allocation0] ss:$8 sm:$0x3] %vm18, %v17
    %s20 = scalar_lea.vmem %s0, 5
    %s21 = smov 3
    %v22 = vld [vmem:[%s20] ss:$8 sm:%s21]
    %23 = vrot.lane.b32.xlu0 %v22, 80
    %v24 = vpop.permute.xlu0 %23
    %vm25 = vcmask 786048
    %26 = vst.msk [vmem:[#allocation0] ss:$8 sm:$0x3] %vm25, %v24
    %s27 = scalar_lea.vmem %s0, 4
    %s28 = smov 3
    %v29 = vld [vmem:[%s27] ss:$8 sm:%s28]
    %30 = vrot.lane.b32.xlu0 %v29, 64
    %v31 = vpop.permute.xlu0 %30
    %vm32 = vcmask 654848
    %33 = vst.msk [vmem:[#allocation0] ss:$8 sm:$0x3] %vm32, %v31
    %s34 = scalar_lea.vmem %s0, 3
    %s35 = smov 3
    %v36 = vld [vmem:[%s34] ss:$8 sm:%s35]
    %37 = vrot.lane.b32.xlu0 %v36, 48
    %v38 = vpop.permute.xlu0 %37
    %vm39 = vcmask 523648
    %40 = vst.msk [vmem:[#allocation0] ss:$8 sm:$0x3] %vm39, %v38
    %s41 = scalar_lea.vmem %s0, 2
    %s42 = smov 3
    %v43 = vld [vmem:[%s41] ss:$8 sm:%s42]
    %44 = vrot.lane.b32.xlu0 %v43, 32
    %v45 = vpop.permute.xlu0 %44
    %vm46 = vcmask 392448
    %47 = vst.msk [vmem:[#allocation0] ss:$8 sm:$0x3] %vm46, %v45
    %s48 = scalar_lea.vmem %s0, 1
    %s49 = smov 3
    %v50 = vld [vmem:[%s48] ss:$8 sm:%s49]
    %51 = vrot.lane.b32.xlu0 %v50, 16
    %v52 = vpop.permute.xlu0 %51
    %vm53 = vcmask 261248
    %54 = vst.msk [vmem:[#allocation0] ss:$8 sm:$0x3] %vm53, %v52
    %s56 = ssub.s32 2, 1
    %v57 = vld [vmem:[#allocation0] sm:%s56]
    %s59 = ssub.s32 2, 1
    %60 = vst [vmem:[%s1] sm:%s59] %v57
    %s61 = scalar_lea.vmem [#allocation0], 8
    %v62 = vld [vmem:[%s61] sm:%s56]
    %s64 = ssub.s32 2, 1
    %s65 = scalar_lea.vmem %s1, 1
    %66 = vst [vmem:[%s65] sm:%s64] %v62

// kernel: discriminator_forward.6
$region0: #{discriminator_forward.6}
  #allocation0 [shape = 'u32[]', space=smem, size = 0x4, offset = 0x4, fixed_abs, tag = 'smem constant byte address 0x4 - core index']
  #allocation1 [shape = 'u32[72,128]{1,0:T(1,128)}', space=vmem, size = 0x9000, scoped, tag = 'internal scratch']
  %s0 = inlined_call_operand.vmem [shape: bf16[128,128], index: 0, kind: input, shape index: {}]
  %s1 = inlined_call_operand.vmem [shape: bf16[128,16], index: 1, kind: input, shape index: {}]
  %s2 = inlined_call_operand.vmem [shape: bf16[128,16], index: 2, kind: output, shape index: {0}]
  %s3 = inlined_call_operand.vmem [shape: f32[1,1,16], index: 3, kind: output, shape index: {1}]
  %s4 = inlined_call_operand.vmem [shape: f32[1,1,16], index: 4, kind: output, shape index: {2}]
  %5 = xla_tuple %s2, %s3, %s4
  %s6 = sld [smem:[#allocation0]]
  $region34: #{discriminator_forward.6} parent=0
    _
  %s8 = ssub.s32 1, %s6
  %s9 = scalar_select 0, %s8, %s6
  // Predicated region
  $region2: #{discriminator_forward.6} parent=0 // pred_check
    _
  $region3: #{discriminator_forward.6} parent=0 // pred_check_branch
    %11 = sbr.rel (0) target = $region5
  $region4: #{discriminator_forward.6} parent=0 // pred_region
    _
  $region5: #{discriminator_forward.6} parent=0 // pred_fallthru
    _
  // Predicated region
  $region6: #{discriminator_forward.6} parent=0 // pred_check
    _
  $region7: #{discriminator_forward.6} parent=0 // pred_check_branch
    %13 = sbr.rel (0) target = $region9
  $region8: #{discriminator_forward.6} parent=0 // pred_region
    _
  $region9: #{discriminator_forward.6} parent=0 // pred_fallthru
    _
  %v14 = vld [vmem:[%s0] sm:$0xf]
  %v15 = vld [vmem:[%s0 + $0x4] sm:$0xf]
  %v16 = vld [vmem:[%s0 + $0x8] sm:$0xf]
  %v17 = vld [vmem:[%s0 + $0xc] sm:$0xf]
  %v18 = vld [vmem:[%s0 + $0x10] sm:$0xf]
  %v19 = vld [vmem:[%s0 + $0x14] sm:$0xf]
  %v20 = vld [vmem:[%s0 + $0x18] sm:$0xf]
  %v21 = vld [vmem:[%s0 + $0x1c] sm:$0xf]
  %v22 = vld [vmem:[%s0 + $0x20] sm:$0xf]
  %v23 = vld [vmem:[%s0 + $0x24] sm:$0xf]
  %v24 = vld [vmem:[%s0 + $0x28] sm:$0xf]
  %v25 = vld [vmem:[%s0 + $0x2c] sm:$0xf]
  %v26 = vld [vmem:[%s0 + $0x30] sm:$0xf]
  %v27 = vld [vmem:[%s0 + $0x34] sm:$0xf]
  %v28 = vld [vmem:[%s0 + $0x38] sm:$0xf]
  %v29 = vld [vmem:[%s0 + $0x3c] sm:$0xf]
  %v30 = vld [vmem:[%s1] sm:$0xf]
  %v31 = vld [vmem:[%s1 + $0x4] sm:$0xf]
  %v32 = vld [vmem:[%s1 + $0x8] sm:$0xf]
  %v33 = vld [vmem:[%s1 + $0xc] sm:$0xf]
  %v34 = vld [vmem:[%s1 + $0x10] sm:$0xf]
  %v35 = vld [vmem:[%s1 + $0x14] sm:$0xf]
  %v36 = vld [vmem:[%s1 + $0x18] sm:$0xf]
  %v37 = vld [vmem:[%s1 + $0x1c] sm:$0xf]
  %v38 = vld [vmem:[%s1 + $0x20] sm:$0xf]
  %v39 = vld [vmem:[%s1 + $0x24] sm:$0xf]
  %v40 = vld [vmem:[%s1 + $0x28] sm:$0xf]
  %v41 = vld [vmem:[%s1 + $0x2c] sm:$0xf]
  %v42 = vld [vmem:[%s1 + $0x30] sm:$0xf]
  %v43 = vld [vmem:[%s1 + $0x34] sm:$0xf]
  %v44 = vld [vmem:[%s1 + $0x38] sm:$0xf]
  %v45 = vld [vmem:[%s1 + $0x3c] sm:$0xf]
  %v62 = vunpack.c.l.b16 %v14
  %v63 = vunpack.c.l.b16 %v15
  %v64 = vunpack.c.l.b16 %v16
  %v65 = vunpack.c.l.b16 %v17
  %v66 = vunpack.c.l.b16 %v18
  %v67 = vunpack.c.l.b16 %v19
  %v68 = vunpack.c.l.b16 %v20
  %v69 = vunpack.c.l.b16 %v21
  %v70 = vunpack.c.l.b16 %v22
  %v71 = vunpack.c.l.b16 %v23
  %v72 = vunpack.c.l.b16 %v24
  %v73 = vunpack.c.l.b16 %v25
  %v74 = vunpack.c.l.b16 %v26
  %v75 = vunpack.c.l.b16 %v27
  %v76 = vunpack.c.l.b16 %v28
  %v77 = vunpack.c.l.b16 %v29
  %v78 = vpack.c.b16 %v63, %v62
  %v79 = vpack.c.b16 %v65, %v64
  %v80 = vpack.c.b16 %v67, %v66
  %v81 = vpack.c.b16 %v69, %v68
  %v82 = vpack.c.b16 %v71, %v70
  %v83 = vpack.c.b16 %v73, %v72
  %v84 = vpack.c.b16 %v75, %v74
  %v85 = vpack.c.b16 %v77, %v76
  %v110 = vunpack.c.l.b16 %v30
  %v111 = vunpack.c.l.b16 %v31
  %v112 = vunpack.c.l.b16 %v32
  %v113 = vunpack.c.l.b16 %v33
  %v114 = vunpack.c.l.b16 %v34
  %v115 = vunpack.c.l.b16 %v35
  %v116 = vunpack.c.l.b16 %v36
  %v117 = vunpack.c.l.b16 %v37
  %v118 = vunpack.c.l.b16 %v38
  %v119 = vunpack.c.l.b16 %v39
  %v120 = vunpack.c.l.b16 %v40
  %v121 = vunpack.c.l.b16 %v41
  %v122 = vunpack.c.l.b16 %v42
  %v123 = vunpack.c.l.b16 %v43
  %v124 = vunpack.c.l.b16 %v44
  %v125 = vunpack.c.l.b16 %v45
  %v126 = vpack.c.b16 %v111, %v110
  %v127 = vpack.c.b16 %v113, %v112
  %v128 = vpack.c.b16 %v115, %v114
  %v129 = vpack.c.b16 %v117, %v116
  %v130 = vpack.c.b16 %v119, %v118
  %v131 = vpack.c.b16 %v121, %v120
  %v132 = vpack.c.b16 %v123, %v122
  %v133 = vpack.c.b16 %v125, %v124
  %142 = vmatpush.bf16.msra.mxu0 %v133
  %143 = vmatpush.bf16.msra.mxu0 %v132
  %144 = vmatpush.bf16.msra.mxu0 %v131
  %145 = vmatpush.bf16.msra.mxu0 %v130
  %146 = vmatpush.bf16.msra.mxu0 %v129
  %147 = vmatpush.bf16.msra.mxu0 %v128
  %148 = vmatpush.bf16.msra.mxu0 %v127
  %149 = vmatpush.bf16.msra.mxu0 %v126
  %150 = vmatmul.bf16.gmra.mxu0 %v78
  %v151 = vpop.f32.mrf.mxu0
  %v152 = vadd.f32 0.0, %v151
  %v153 = vpop.f32.mrf.mxu0
  %v154 = vadd.f32 0.0, %v153
  %155 = vmatmul.bf16.gmra.mxu0 %v79
  %v156 = vpop.f32.mrf.mxu0
  %v157 = vadd.f32 0.0, %v156
  %v158 = vpop.f32.mrf.mxu0
  %v159 = vadd.f32 0.0, %v158
  %160 = vmatmul.bf16.gmra.mxu0 %v80
  %v161 = vpop.f32.mrf.mxu0
  %v162 = vadd.f32 0.0, %v161
  %v163 = vpop.f32.mrf.mxu0
  %v164 = vadd.f32 0.0, %v163
  %165 = vmatmul.bf16.gmra.mxu0 %v81
  %v166 = vpop.f32.mrf.mxu0
  %v167 = vadd.f32 0.0, %v166
  %v168 = vpop.f32.mrf.mxu0
  %v169 = vadd.f32 0.0, %v168
  %170 = vmatmul.bf16.gmra.mxu0 %v82
  %v171 = vpop.f32.mrf.mxu0
  %v172 = vadd.f32 0.0, %v171
  %v173 = vpop.f32.mrf.mxu0
  %v174 = vadd.f32 0.0, %v173
  %175 = vmatmul.bf16.gmra.mxu0 %v83
  %v176 = vpop.f32.mrf.mxu0
  %v177 = vadd.f32 0.0, %v176
  %v178 = vpop.f32.mrf.mxu0
  %v179 = vadd.f32 0.0, %v178
  %180 = vmatmul.bf16.gmra.mxu0 %v84
  %v181 = vpop.f32.mrf.mxu0
  %v182 = vadd.f32 0.0, %v181
  %v183 = vpop.f32.mrf.mxu0
  %v184 = vadd.f32 0.0, %v183
  %185 = vmatmul.bf16.gmra.mxu0 %v85
  %v186 = vpop.f32.mrf.mxu0
  %v187 = vadd.f32 0.0, %v186
  %v188 = vpop.f32.mrf.mxu0
  %v189 = vadd.f32 0.0, %v188
  %190 = vdwg.mxu0
  %v191 = vpack.c.bf16 %v152, %v152
  %v192 = vpack.c.bf16 %v154, %v154
  %v193 = vpack.c.bf16 %v157, %v157
  %v194 = vpack.c.bf16 %v159, %v159
  %v195 = vpack.c.bf16 %v162, %v162
  %v196 = vpack.c.bf16 %v164, %v164
  %v197 = vpack.c.bf16 %v167, %v167
  %v198 = vpack.c.bf16 %v169, %v169
  %v199 = vpack.c.bf16 %v172, %v172
  %v200 = vpack.c.bf16 %v174, %v174
  %v201 = vpack.c.bf16 %v177, %v177
  %v202 = vpack.c.bf16 %v179, %v179
  %v203 = vpack.c.bf16 %v182, %v182
  %v204 = vpack.c.bf16 %v184, %v184
  %v205 = vpack.c.bf16 %v187, %v187
  %v206 = vpack.c.bf16 %v189, %v189
  %vm207 = vcmask 125952
  %208 = vst.msk [vmem:[%s2] sm:$0xf] %vm207, %v191
  %209 = vst.msk [vmem:[%s2 + $0x4] sm:$0xf] %vm207, %v192
  %210 = vst.msk [vmem:[%s2 + $0x8] sm:$0xf] %vm207, %v193
  %211 = vst.msk [vmem:[%s2 + $0xc] sm:$0xf] %vm207, %v194
  %212 = vst.msk [vmem:[%s2 + $0x10] sm:$0xf] %vm207, %v195
  %213 = vst.msk [vmem:[%s2 + $0x14] sm:$0xf] %vm207, %v196
  %214 = vst.msk [vmem:[%s2 + $0x18] sm:$0xf] %vm207, %v197
  %215 = vst.msk [vmem:[%s2 + $0x1c] sm:$0xf] %vm207, %v198
  %216 = vst.msk [vmem:[%s2 + $0x20] sm:$0xf] %vm207, %v199
  %217 = vst.msk [vmem:[%s2 + $0x24] sm:$0xf] %vm207, %v200
  %218 = vst.msk [vmem:[%s2 + $0x28] sm:$0xf] %vm207, %v201
  %219 = vst.msk [vmem:[%s2 + $0x2c] sm:$0xf] %vm207, %v202
  %220 = vst.msk [vmem:[%s2 + $0x30] sm:$0xf] %vm207, %v203
  %221 = vst.msk [vmem:[%s2 + $0x34] sm:$0xf] %vm207, %v204
  %222 = vst.msk [vmem:[%s2 + $0x38] sm:$0xf] %vm207, %v205
  %223 = vst.msk [vmem:[%s2 + $0x3c] sm:$0xf] %vm207, %v206
  %s224 = smul.u32 0, 128
  %v225 = vlaneseq
  %v226 = vshrl.u32 %v225, 7
  %v227 = vadd.s32 %v226, 8
  %v228 = vadd.s32 %v226, 16
  %v229 = vadd.s32 %v226, 24
  %v230 = vadd.s32 %v226, 32
  %v231 = vadd.s32 %v226, 40
  %v232 = vadd.s32 %v226, 48
  %v233 = vadd.s32 %v226, 56
  %v234 = vadd.s32 %v226, 64
  %v235 = vadd.s32 %v226, 72
  %v236 = vadd.s32 %v226, 80
  %v237 = vadd.s32 %v226, 88
  %v238 = vadd.s32 %v226, 96
  %v239 = vadd.s32 %v226, 104
  %v240 = vadd.s32 %v226, 112
  %v241 = vadd.s32 %v226, 120
  %v242 = vstv %s224
  %v243 = vadd.s32 %v242, %v226
  %v244 = vadd.s32 %v242, %v227
  %v245 = vadd.s32 %v242, %v228
  %v246 = vadd.s32 %v242, %v229
  %v247 = vadd.s32 %v242, %v230
  %v248 = vadd.s32 %v242, %v231
  %v249 = vadd.s32 %v242, %v232
  %v250 = vadd.s32 %v242, %v233
  %v251 = vadd.s32 %v242, %v234
  %v252 = vadd.s32 %v242, %v235
  %v253 = vadd.s32 %v242, %v236
  %v254 = vadd.s32 %v242, %v237
  %v255 = vadd.s32 %v242, %v238
  %v256 = vadd.s32 %v242, %v239
  %v257 = vadd.s32 %v242, %v240
  %v258 = vadd.s32 %v242, %v241
  %vm259 = vcmp.lt.s32.totalorder %v243, 128
  %vm260 = vcmp.lt.s32.totalorder %v244, 128
  %vm261 = vcmp.lt.s32.totalorder %v245, 128
  %vm262 = vcmp.lt.s32.totalorder %v246, 128
  %vm263 = vcmp.lt.s32.totalorder %v247, 128
  %vm264 = vcmp.lt.s32.totalorder %v248, 128
  %vm265 = vcmp.lt.s32.totalorder %v249, 128
  %vm266 = vcmp.lt.s32.totalorder %v250, 128
  %vm267 = vcmp.lt.s32.totalorder %v251, 128
  %vm268 = vcmp.lt.s32.totalorder %v252, 128
  %vm269 = vcmp.lt.s32.totalorder %v253, 128
  %vm270 = vcmp.lt.s32.totalorder %v254, 128
  %vm271 = vcmp.lt.s32.totalorder %v255, 128
  %vm272 = vcmp.lt.s32.totalorder %v256, 128
  %vm273 = vcmp.lt.s32.totalorder %v257, 128
  %vm274 = vcmp.lt.s32.totalorder %v258, 128
  %v275 = vsel %vm259, %v152, 0.0
  %v276 = vsel %vm260, %v154, 0.0
  %v277 = vsel %vm261, %v157, 0.0
  %v278 = vsel %vm262, %v159, 0.0
  %v279 = vsel %vm263, %v162, 0.0
  %v280 = vsel %vm264, %v164, 0.0
  %v281 = vsel %vm265, %v167, 0.0
  %v282 = vsel %vm266, %v169, 0.0
  %v283 = vsel %vm267, %v172, 0.0
  %v284 = vsel %vm268, %v174, 0.0
  %v285 = vsel %vm269, %v177, 0.0
  %v286 = vsel %vm270, %v179, 0.0
  %v287 = vsel %vm271, %v182, 0.0
  %v288 = vsel %vm272, %v184, 0.0
  %v289 = vsel %vm273, %v187, 0.0
  %v290 = vsel %vm274, %v189, 0.0
  %vm291 = vcmask 130048
  %v292 = vsel %vm291, %v275, 0.0
  %v293 = vsel %vm291, %v276, 0.0
  %v294 = vadd.f32 %v292, %v293
  %v295 = vsel %vm291, %v277, 0.0
  %v296 = vadd.f32 %v294, %v295
  %v297 = vsel %vm291, %v278, 0.0
  %v298 = vadd.f32 %v296, %v297
  %v299 = vsel %vm291, %v279, 0.0
  %v300 = vadd.f32 %v298, %v299
  %v301 = vsel %vm291, %v280, 0.0
  %v302 = vadd.f32 %v300, %v301
  %v303 = vsel %vm291, %v281, 0.0
  %v304 = vadd.f32 %v302, %v303
  %v305 = vsel %vm291, %v282, 0.0
  %v306 = vadd.f32 %v304, %v305
  %v307 = vsel %vm291, %v283, 0.0
  %v308 = vadd.f32 %v306, %v307
  %v309 = vsel %vm291, %v284, 0.0
  %v310 = vadd.f32 %v308, %v309
  %v311 = vsel %vm291, %v285, 0.0
  %v312 = vadd.f32 %v310, %v311
  %v313 = vsel %vm291, %v286, 0.0
  %v314 = vadd.f32 %v312, %v313
  %v315 = vsel %vm291, %v287, 0.0
  %v316 = vadd.f32 %v314, %v315
  %v317 = vsel %vm291, %v288, 0.0
  %v318 = vadd.f32 %v316, %v317
  %v319 = vsel %vm291, %v289, 0.0
  %v320 = vadd.f32 %v318, %v319
  %v321 = vsel %vm291, %v290, 0.0
  %v322 = vadd.f32 %v320, %v321
  %v323 = vrot.slane %v322, 4
  %v324 = vadd.f32 %v322, %v323
  %v325 = vrot.slane %v324, 2
  %v326 = vadd.f32 %v324, %v325
  %v327 = vrot.slane %v326, 1
  %v328 = vadd.f32 %v326, %v327
  %vm329 = vcmask 122880
  %330 = vst.msk [vmem:[%s3] sm:$0x1] %vm329, %v328
  %v331 = vmul.f32 %v275, %v275
  %v332 = vmul.f32 %v276, %v276
  %v333 = vmul.f32 %v277, %v277
  %v334 = vmul.f32 %v278, %v278
  %v335 = vmul.f32 %v279, %v279
  %v336 = vmul.f32 %v280, %v280
  %v337 = vmul.f32 %v281, %v281
  %v338 = vmul.f32 %v282, %v282
  %v339 = vmul.f32 %v283, %v283
  %v340 = vmul.f32 %v284, %v284
  %v341 = vmul.f32 %v285, %v285
  %v342 = vmul.f32 %v286, %v286
  %v343 = vmul.f32 %v287, %v287
  %v344 = vmul.f32 %v288, %v288
  %v345 = vmul.f32 %v289, %v289
  %v346 = vmul.f32 %v290, %v290
  %v347 = vsel %vm291, %v331, 0.0
  %v348 = vsel %vm291, %v332, 0.0
  %v349 = vadd.f32 %v347, %v348
  %v350 = vsel %vm291, %v333, 0.0
  %v351 = vadd.f32 %v349, %v350
  %v352 = vsel %vm291, %v334, 0.0
  %v353 = vadd.f32 %v351, %v352
  %v354 = vsel %vm291, %v335, 0.0
  %v355 = vadd.f32 %v353, %v354
  %v356 = vsel %vm291, %v336, 0.0
  %v357 = vadd.f32 %v355, %v356
  %v358 = vsel %vm291, %v337, 0.0
  %v359 = vadd.f32 %v357, %v358
  %v360 = vsel %vm291, %v338, 0.0
  %v361 = vadd.f32 %v359, %v360
  %v362 = vsel %vm291, %v339, 0.0
  %v363 = vadd.f32 %v361, %v362
  %v364 = vsel %vm291, %v340, 0.0
  %v365 = vadd.f32 %v363, %v364
  %v366 = vsel %vm291, %v341, 0.0
  %v367 = vadd.f32 %v365, %v366
  %v368 = vsel %vm291, %v342, 0.0
  %v369 = vadd.f32 %v367, %v368
  %v370 = vsel %vm291, %v343, 0.0
  %v371 = vadd.f32 %v369, %v370
  %v372 = vsel %vm291, %v344, 0.0
  %v373 = vadd.f32 %v371, %v372
  %v374 = vsel %vm291, %v345, 0.0
  %v375 = vadd.f32 %v373, %v374
  %v376 = vsel %vm291, %v346, 0.0
  %v377 = vadd.f32 %v375, %v376
  %v378 = vrot.slane %v377, 4
  %v379 = vadd.f32 %v377, %v378
  %v380 = vrot.slane %v379, 2
  %v381 = vadd.f32 %v379, %v380
  %v382 = vrot.slane %v381, 1
  %v383 = vadd.f32 %v381, %v382
  %384 = vst.msk [vmem:[%s4] sm:$0x1] %vm329, %v383
  // Predicated region
  $region10: #{discriminator_forward.6} parent=0 // pred_check
    _
  $region11: #{discriminator_forward.6} parent=0 // pred_check_branch
    %386 = sbr.rel (0) target = $region13
  $region12: #{discriminator_forward.6} parent=0 // pred_region
    _
  $region13: #{discriminator_forward.6} parent=0 // pred_fallthru
    _
  // Predicated region
  $region14: #{discriminator_forward.6} parent=0 // pred_check
    _
  $region15: #{discriminator_forward.6} parent=0 // pred_check_branch
    %388 = sbr.rel (0) target = $region17
  $region16: #{discriminator_forward.6} parent=0 // pred_region
    _
  $region17: #{discriminator_forward.6} parent=0 // pred_fallthru
    _
  // Predicated region
  $region18: #{discriminator_forward.6} parent=0 // pred_check
    _
  $region19: #{discriminator_forward.6} parent=0 // pred_check_branch
    %390 = sbr.rel (0) target = $region21
  $region20: #{discriminator_forward.6} parent=0 // pred_region
    _
  $region21: #{discriminator_forward.6} parent=0 // pred_fallthru
    _
  // Predicated region
  $region22: #{discriminator_forward.6} parent=0 // pred_check
    _
  $region23: #{discriminator_forward.6} parent=0 // pred_check_branch
    %392 = sbr.rel (0) target = $region25
  $region24: #{discriminator_forward.6} parent=0 // pred_region
    _
  $region25: #{discriminator_forward.6} parent=0 // pred_fallthru
    _
  // Predicated region
  $region26: #{discriminator_forward.6} parent=0 // pred_check
    _
  $region27: #{discriminator_forward.6} parent=0 // pred_check_branch
    %394 = sbr.rel (0) target = $region29
  $region28: #{discriminator_forward.6} parent=0 // pred_region
    _
  $region29: #{discriminator_forward.6} parent=0 // pred_fallthru
    _
  // Predicated region
  $region30: #{discriminator_forward.6} parent=0 // pred_check
    _
  $region31: #{discriminator_forward.6} parent=0 // pred_check_branch
    %396 = sbr.rel (0) target = $region33
  $region32: #{discriminator_forward.6} parent=0 // pred_region
    _
  $region33: #{discriminator_forward.6} parent=0 // pred_fallthru
    _

// kernel: tile.43
$region0: #{tile.43}
  #allocation0 [shape = 's32[1]{0}', space=sflag, size = 0x4, scoped, tag = 'scoped memory for tile.43']
  %s0 = inlined_call_operand.vmem [shape: f32[32], index: 0, kind: input, shape index: {}]
  %s1 = inlined_call_operand.vmem [shape: f32[16,32], index: 1, kind: output, shape index: {}]
  // Predicated region
  $region2: #{tile.43} parent=0 // pred_check
    _
  $region3: #{tile.43} parent=0 // pred_check_branch
    %3 = sbr.rel (0) target = $region5
  $region4: #{tile.43} parent=0 // pred_region
    _
  $region5: #{tile.43} parent=0 // pred_fallthru
    _
  %v4 = vld [vmem:[%s0] ss:$0 sm:$0xff]
  %5 = vst [vmem:[%s1] sm:$0xff] %v4
  %s6 = scalar_lea.vmem %s1, 8
  %7 = vst [vmem:[%s6] sm:$0xff] %v4

// kernel: tile.44
$region0: #{tile.44}
  %s0 = inlined_call_operand.vmem [shape: f32[16,32], index: 0, kind: input, shape index: {}]
  %s1 = inlined_call_operand.vmem [shape: f32[1,512], index: 1, kind: output, shape index: {}]
  $region1: #{tile.44} parent=0
    #allocation0 [shape = 'u8[16384]{0}', space=vmem, size = 0x4000, scoped, tag = 'scoped mem for output reshape']
    %v2 = vld [vmem:[%s0] ss:$4 sm:$0xf]
    %vm3 = vcmask 261120
    %4 = vst.msk [vmem:[#allocation0] ss:$8 sm:$0xf] %vm3, %v2
    %s5 = scalar_lea.vmem %s0, 3
    %v6 = vld [vmem:[%s5] ss:$4 sm:$0xf]
    %7 = vrot.lane.b32.xlu0 %v6, 96
    %v8 = vpop.permute.xlu0 %7
    %vm9 = vcmask 1048320
    %10 = vst.msk [vmem:[#allocation0] ss:$8 sm:$0xf] %vm9, %v8
    %s11 = scalar_lea.vmem %s0, 2
    %v12 = vld [vmem:[%s11] ss:$4 sm:$0xf]
    %13 = vrot.lane.b32.xlu0 %v12, 64
    %v14 = vpop.permute.xlu0 %13
    %vm15 = vcmask 785920
    %16 = vst.msk [vmem:[#allocation0] ss:$8 sm:$0xf] %vm15, %v14
    %s17 = scalar_lea.vmem %s0, 1
    %v18 = vld [vmem:[%s17] ss:$4 sm:$0xf]
    %19 = vrot.lane.b32.xlu0 %v18, 32
    %v20 = vpop.permute.xlu0 %19
    %vm21 = vcmask 523520
    %22 = vst.msk [vmem:[#allocation0] ss:$8 sm:$0xf] %vm21, %v20
    %s24 = ssub.s32 2, 1
    %v25 = vld [vmem:[#allocation0] sm:%s24]
    %s27 = ssub.s32 2, 1
    %28 = vst [vmem:[%s1] sm:%s27] %v25
    %s29 = scalar_lea.vmem [#allocation0], 8
    %v30 = vld [vmem:[%s29] sm:%s24]
    %s32 = ssub.s32 2, 1
    %s33 = scalar_lea.vmem %s1, 1
    %34 = vst [vmem:[%s33] sm:%s32] %v30
    %s35 = scalar_lea.vmem [#allocation0], 16
    %v36 = vld [vmem:[%s35] sm:%s24]
    %s38 = ssub.s32 2, 1
    %s39 = scalar_lea.vmem %s1, 2
    %40 = vst [vmem:[%s39] sm:%s38] %v36
    %s41 = scalar_lea.vmem [#allocation0], 24
    %v42 = vld [vmem:[%s41] sm:%s24]
    %s44 = ssub.s32 2, 1
    %s45 = scalar_lea.vmem %s1, 3
    %46 = vst [vmem:[%s45] sm:%s44] %v42

// kernel: discriminator_forward.7
$region0: #{discriminator_forward.7}
  #allocation0 [shape = 'u32[]', space=smem, size = 0x4, offset = 0x4, fixed_abs, tag = 'smem constant byte address 0x4 - core index']
  #allocation1 [shape = 'u32[72,128]{1,0:T(1,128)}', space=vmem, size = 0x9000, scoped, tag = 'internal scratch']
  %s0 = inlined_call_operand.vmem [shape: bf16[32,256], index: 0, kind: input, shape index: {}]
  %s1 = inlined_call_operand.vmem [shape: bf16[256,32], index: 1, kind: input, shape index: {}]
  %s2 = inlined_call_operand.vmem [shape: f32[1,256], index: 2, kind: input, shape index: {}]
  %s3 = inlined_call_operand.vmem [shape: f32[1,256], index: 3, kind: input, shape index: {}]
  %s4 = inlined_call_operand.vmem [shape: bf16[32,32], index: 4, kind: output, shape index: {0}]
  %s5 = inlined_call_operand.vmem [shape: f32[1,1,32], index: 5, kind: output, shape index: {1}]
  %s6 = inlined_call_operand.vmem [shape: f32[1,1,32], index: 6, kind: output, shape index: {2}]
  %7 = xla_tuple %s4, %s5, %s6
  %s8 = sld [smem:[#allocation0]]
  $region42: #{discriminator_forward.7} parent=0
    _
  %s10 = ssub.s32 1, %s8
  %s11 = scalar_select 0, %s10, %s8
  // Predicated region
  $region2: #{discriminator_forward.7} parent=0 // pred_check
    _
  $region3: #{discriminator_forward.7} parent=0 // pred_check_branch
    %13 = sbr.rel (0) target = $region5
  $region4: #{discriminator_forward.7} parent=0 // pred_region
    _
  $region5: #{discriminator_forward.7} parent=0 // pred_fallthru
    _
  // Predicated region
  $region6: #{discriminator_forward.7} parent=0 // pred_check
    _
  $region7: #{discriminator_forward.7} parent=0 // pred_check_branch
    %15 = sbr.rel (0) target = $region9
  $region8: #{discriminator_forward.7} parent=0 // pred_region
    _
  $region9: #{discriminator_forward.7} parent=0 // pred_fallthru
    _
  // Predicated region
  $region10: #{discriminator_forward.7} parent=0 // pred_check
    _
  $region11: #{discriminator_forward.7} parent=0 // pred_check_branch
    %17 = sbr.rel (0) target = $region13
  $region12: #{discriminator_forward.7} parent=0 // pred_region
    _
  $region13: #{discriminator_forward.7} parent=0 // pred_fallthru
    _
  // Predicated region
  $region14: #{discriminator_forward.7} parent=0 // pred_check
    _
  $region15: #{discriminator_forward.7} parent=0 // pred_check_branch
    %19 = sbr.rel (0) target = $region17
  $region16: #{discriminator_forward.7} parent=0 // pred_region
    _
  $region17: #{discriminator_forward.7} parent=0 // pred_fallthru
    _
  %v20 = vld [vmem:[%s0] sm:$0xff]
  %v21 = vld [vmem:[%s0 + $0x8] sm:$0xff]
  %v22 = vld [vmem:[%s0 + $0x10] sm:$0xff]
  %v23 = vld [vmem:[%s0 + $0x18] sm:$0xff]
  %v24 = vunpack.c.l.bf16 %v20
  %v25 = vunpack.c.h.bf16 %v20
  %v26 = vunpack.c.l.bf16 %v21
  %v27 = vunpack.c.h.bf16 %v21
  %v28 = vunpack.c.l.bf16 %v22
  %v29 = vunpack.c.h.bf16 %v22
  %v30 = vunpack.c.l.bf16 %v23
  %v31 = vunpack.c.h.bf16 %v23
  %v32 = vld [vmem:[%s2] sm:$0x3]
  %v34 = vperm.slane %v32, 0
  %v35 = vperm.slane %v32, 1
  %v38 = vmul.f32 %v24, %v34
  %v39 = vmul.f32 %v25, %v35
  %v40 = vmul.f32 %v26, %v34
  %v41 = vmul.f32 %v27, %v35
  %v42 = vmul.f32 %v28, %v34
  %v43 = vmul.f32 %v29, %v35
  %v44 = vmul.f32 %v30, %v34
  %v45 = vmul.f32 %v31, %v35
  %v46 = vld [vmem:[%s3] sm:$0x3]
  %v48 = vperm.slane %v46, 0
  %v49 = vperm.slane %v46, 1
  %v52 = vadd.f32 %v38, %v48
  %v53 = vadd.f32 %v39, %v49
  %v54 = vadd.f32 %v40, %v48
  %v55 = vadd.f32 %v41, %v49
  %v56 = vadd.f32 %v42, %v48
  %v57 = vadd.f32 %v43, %v49
  %v58 = vadd.f32 %v44, %v48
  %v59 = vadd.f32 %v45, %v49
  %vm60 = vcmp.ge.f32.partialorder %v52, 0.0
  %vm61 = vcmp.ge.f32.partialorder %v53, 0.0
  %vm62 = vcmp.ge.f32.partialorder %v54, 0.0
  %vm63 = vcmp.ge.f32.partialorder %v55, 0.0
  %vm64 = vcmp.ge.f32.partialorder %v56, 0.0
  %vm65 = vcmp.ge.f32.partialorder %v57, 0.0
  %vm66 = vcmp.ge.f32.partialorder %v58, 0.0
  %vm67 = vcmp.ge.f32.partialorder %v59, 0.0
  %v68 = vmul.f32 %v52, 0.2
  %v69 = vmul.f32 %v53, 0.2
  %v70 = vmul.f32 %v54, 0.2
  %v71 = vmul.f32 %v55, 0.2
  %v72 = vmul.f32 %v56, 0.2
  %v73 = vmul.f32 %v57, 0.2
  %v74 = vmul.f32 %v58, 0.2
  %v75 = vmul.f32 %v59, 0.2
  %v76 = vsel %vm60, %v52, %v68
  %v77 = vsel %vm61, %v53, %v69
  %v78 = vsel %vm62, %v54, %v70
  %v79 = vsel %vm63, %v55, %v71
  %v80 = vsel %vm64, %v56, %v72
  %v81 = vsel %vm65, %v57, %v73
  %v82 = vsel %vm66, %v58, %v74
  %v83 = vsel %vm67, %v59, %v75
  %v84 = vpack.c.bf16 %v78, %v76
  %v85 = vpack.c.bf16 %v79, %v77
  %v86 = vpack.c.bf16 %v82, %v80
  %v87 = vpack.c.bf16 %v83, %v81
  %v88 = vld [vmem:[%s1] sm:$0xf]
  %v89 = vld [vmem:[%s1 + $0x4] sm:$0xf]
  %v90 = vld [vmem:[%s1 + $0x8] sm:$0xf]
  %v91 = vld [vmem:[%s1 + $0xc] sm:$0xf]
  %v92 = vld [vmem:[%s1 + $0x10] sm:$0xf]
  %v93 = vld [vmem:[%s1 + $0x14] sm:$0xf]
  %v94 = vld [vmem:[%s1 + $0x18] sm:$0xf]
  %v95 = vld [vmem:[%s1 + $0x1c] sm:$0xf]
  %v96 = vld [vmem:[%s1 + $0x20] sm:$0xf]
  %v97 = vld [vmem:[%s1 + $0x24] sm:$0xf]
  %v98 = vld [vmem:[%s1 + $0x28] sm:$0xf]
  %v99 = vld [vmem:[%s1 + $0x2c] sm:$0xf]
  %v100 = vld [vmem:[%s1 + $0x30] sm:$0xf]
  %v101 = vld [vmem:[%s1 + $0x34] sm:$0xf]
  %v102 = vld [vmem:[%s1 + $0x38] sm:$0xf]
  %v103 = vld [vmem:[%s1 + $0x3c] sm:$0xf]
  %v104 = vld [vmem:[%s1 + $0x40] sm:$0xf]
  %v105 = vld [vmem:[%s1 + $0x44] sm:$0xf]
  %v106 = vld [vmem:[%s1 + $0x48] sm:$0xf]
  %v107 = vld [vmem:[%s1 + $0x4c] sm:$0xf]
  %v108 = vld [vmem:[%s1 + $0x50] sm:$0xf]
  %v109 = vld [vmem:[%s1 + $0x54] sm:$0xf]
  %v110 = vld [vmem:[%s1 + $0x58] sm:$0xf]
  %v111 = vld [vmem:[%s1 + $0x5c] sm:$0xf]
  %v112 = vld [vmem:[%s1 + $0x60] sm:$0xf]
  %v113 = vld [vmem:[%s1 + $0x64] sm:$0xf]
  %v114 = vld [vmem:[%s1 + $0x68] sm:$0xf]
  %v115 = vld [vmem:[%s1 + $0x6c] sm:$0xf]
  %v116 = vld [vmem:[%s1 + $0x70] sm:$0xf]
  %v117 = vld [vmem:[%s1 + $0x74] sm:$0xf]
  %v118 = vld [vmem:[%s1 + $0x78] sm:$0xf]
  %v119 = vld [vmem:[%s1 + $0x7c] sm:$0xf]
  %v152 = vunpack.c.l.b16 %v88
  %v153 = vunpack.c.l.b16 %v89
  %v154 = vunpack.c.l.b16 %v90
  %v155 = vunpack.c.l.b16 %v91
  %v156 = vunpack.c.l.b16 %v92
  %v157 = vunpack.c.l.b16 %v93
  %v158 = vunpack.c.l.b16 %v94
  %v159 = vunpack.c.l.b16 %v95
  %v160 = vunpack.c.l.b16 %v96
  %v161 = vunpack.c.l.b16 %v97
  %v162 = vunpack.c.l.b16 %v98
  %v163 = vunpack.c.l.b16 %v99
  %v164 = vunpack.c.l.b16 %v100
  %v165 = vunpack.c.l.b16 %v101
  %v166 = vunpack.c.l.b16 %v102
  %v167 = vunpack.c.l.b16 %v103
  %v168 = vunpack.c.l.b16 %v104
  %v169 = vunpack.c.l.b16 %v105
  %v170 = vunpack.c.l.b16 %v106
  %v171 = vunpack.c.l.b16 %v107
  %v172 = vunpack.c.l.b16 %v108
  %v173 = vunpack.c.l.b16 %v109
  %v174 = vunpack.c.l.b16 %v110
  %v175 = vunpack.c.l.b16 %v111
  %v176 = vunpack.c.l.b16 %v112
  %v177 = vunpack.c.l.b16 %v113
  %v178 = vunpack.c.l.b16 %v114
  %v179 = vunpack.c.l.b16 %v115
  %v180 = vunpack.c.l.b16 %v116
  %v181 = vunpack.c.l.b16 %v117
  %v182 = vunpack.c.l.b16 %v118
  %v183 = vunpack.c.l.b16 %v119
  %v184 = vpack.c.b16 %v153, %v152
  %v185 = vpack.c.b16 %v155, %v154
  %v186 = vpack.c.b16 %v157, %v156
  %v187 = vpack.c.b16 %v159, %v158
  %v188 = vpack.c.b16 %v161, %v160
  %v189 = vpack.c.b16 %v163, %v162
  %v190 = vpack.c.b16 %v165, %v164
  %v191 = vpack.c.b16 %v167, %v166
  %v192 = vpack.c.b16 %v169, %v168
  %v193 = vpack.c.b16 %v171, %v170
  %v194 = vpack.c.b16 %v173, %v172
  %v195 = vpack.c.b16 %v175, %v174
  %v196 = vpack.c.b16 %v177, %v176
  %v197 = vpack.c.b16 %v179, %v178
  %v198 = vpack.c.b16 %v181, %v180
  %v199 = vpack.c.b16 %v183, %v182
  %216 = vmatpush.bf16.msra.mxu0 %v191
  %217 = vmatpush.bf16.msra.mxu0 %v190
  %218 = vmatpush.bf16.msra.mxu0 %v189
  %219 = vmatpush.bf16.msra.mxu0 %v188
  %220 = vmatpush.bf16.msra.mxu0 %v187
  %221 = vmatpush.bf16.msra.mxu0 %v186
  %222 = vmatpush.bf16.msra.mxu0 %v185
  %223 = vmatpush.bf16.msra.mxu0 %v184
  %224 = vmatmul.bf16.gmra.mxu0 %v84
  %v225 = vpop.f32.mrf.mxu0
  %v226 = vadd.f32 0.0, %v225
  %v227 = vpop.f32.mrf.mxu0
  %v228 = vadd.f32 0.0, %v227
  %229 = vmatmul.bf16.gmra.mxu0 %v86
  %v230 = vpop.f32.mrf.mxu0
  %v231 = vadd.f32 0.0, %v230
  %v232 = vpop.f32.mrf.mxu0
  %v233 = vadd.f32 0.0, %v232
  %234 = vdwg.mxu0
  %235 = vmatpush.bf16.msra.mxu0 %v199
  %236 = vmatpush.bf16.msra.mxu0 %v198
  %237 = vmatpush.bf16.msra.mxu0 %v197
  %238 = vmatpush.bf16.msra.mxu0 %v196
  %239 = vmatpush.bf16.msra.mxu0 %v195
  %240 = vmatpush.bf16.msra.mxu0 %v194
  %241 = vmatpush.bf16.msra.mxu0 %v193
  %242 = vmatpush.bf16.msra.mxu0 %v192
  %243 = vmatmul.bf16.gmra.mxu0 %v85
  %v244 = vpop.f32.mrf.mxu0
  %v245 = vadd.f32 %v226, %v244
  %v246 = vpop.f32.mrf.mxu0
  %v247 = vadd.f32 %v228, %v246
  %248 = vmatmul.bf16.gmra.mxu0 %v87
  %v249 = vpop.f32.mrf.mxu0
  %v250 = vadd.f32 %v231, %v249
  %v251 = vpop.f32.mrf.mxu0
  %v252 = vadd.f32 %v233, %v251
  %253 = vdwg.mxu0
  %v254 = vpack.c.bf16 %v245, %v245
  %v255 = vpack.c.bf16 %v247, %v247
  %v256 = vpack.c.bf16 %v250, %v250
  %v257 = vpack.c.bf16 %v252, %v252
  %vm258 = vcmask 257024
  %259 = vst.msk [vmem:[%s4] sm:$0xf] %vm258, %v254
  %260 = vst.msk [vmem:[%s4 + $0x4] sm:$0xf] %vm258, %v255
  %261 = vst.msk [vmem:[%s4 + $0x8] sm:$0xf] %vm258, %v256
  %262 = vst.msk [vmem:[%s4 + $0xc] sm:$0xf] %vm258, %v257
  %s263 = smul.u32 0, 32
  %v264 = vlaneseq
  %v265 = vshrl.u32 %v264, 7
  %v266 = vadd.s32 %v265, 8
  %v267 = vadd.s32 %v265, 16
  %v268 = vadd.s32 %v265, 24
  %v269 = vstv %s263
  %v270 = vadd.s32 %v269, %v265
  %v271 = vadd.s32 %v269, %v266
  %v272 = vadd.s32 %v269, %v267
  %v273 = vadd.s32 %v269, %v268
  %vm274 = vcmp.lt.s32.totalorder %v270, 32
  %vm275 = vcmp.lt.s32.totalorder %v271, 32
  %vm276 = vcmp.lt.s32.totalorder %v272, 32
  %vm277 = vcmp.lt.s32.totalorder %v273, 32
  %v278 = vsel %vm274, %v245, 0.0
  %v279 = vsel %vm275, %v247, 0.0
  %v280 = vsel %vm276, %v250, 0.0
  %v281 = vsel %vm277, %v252, 0.0
  %vm282 = vcmask 261120
  %v283 = vsel %vm282, %v278, 0.0
  %v284 = vsel %vm282, %v279, 0.0
  %v285 = vadd.f32 %v283, %v284
  %v286 = vsel %vm282, %v280, 0.0
  %v287 = vadd.f32 %v285, %v286
  %v288 = vsel %vm282, %v281, 0.0
  %v289 = vadd.f32 %v287, %v288
  %v290 = vrot.slane %v289, 4
  %v291 = vadd.f32 %v289, %v290
  %v292 = vrot.slane %v291, 2
  %v293 = vadd.f32 %v291, %v292
  %v294 = vrot.slane %v293, 1
  %v295 = vadd.f32 %v293, %v294
  %vm296 = vcmask 253952
  %297 = vst.msk [vmem:[%s5] sm:$0x1] %vm296, %v295
  %v298 = vmul.f32 %v278, %v278
  %v299 = vmul.f32 %v279, %v279
  %v300 = vmul.f32 %v280, %v280
  %v301 = vmul.f32 %v281, %v281
  %v302 = vsel %vm282, %v298, 0.0
  %v303 = vsel %vm282, %v299, 0.0
  %v304 = vadd.f32 %v302, %v303
  %v305 = vsel %vm282, %v300, 0.0
  %v306 = vadd.f32 %v304, %v305
  %v307 = vsel %vm282, %v301, 0.0
  %v308 = vadd.f32 %v306, %v307
  %v309 = vrot.slane %v308, 4
  %v310 = vadd.f32 %v308, %v309
  %v311 = vrot.slane %v310, 2
  %v312 = vadd.f32 %v310, %v311
  %v313 = vrot.slane %v312, 1
  %v314 = vadd.f32 %v312, %v313
  %315 = vst.msk [vmem:[%s6] sm:$0x1] %vm296, %v314
  // Predicated region
  $region18: #{discriminator_forward.7} parent=0 // pred_check
    _
  $region19: #{discriminator_forward.7} parent=0 // pred_check_branch
    %317 = sbr.rel (0) target = $region21
  $region20: #{discriminator_forward.7} parent=0 // pred_region
    _
  $region21: #{discriminator_forward.7} parent=0 // pred_fallthru
    _
  // Predicated region
  $region22: #{discriminator_forward.7} parent=0 // pred_check
    _
  $region23: #{discriminator_forward.7} parent=0 // pred_check_branch
    %319 = sbr.rel (0) target = $region25
  $region24: #{discriminator_forward.7} parent=0 // pred_region
    _
  $region25: #{discriminator_forward.7} parent=0 // pred_fallthru
    _
  // Predicated region
  $region26: #{discriminator_forward.7} parent=0 // pred_check
    _
  $region27: #{discriminator_forward.7} parent=0 // pred_check_branch
    %321 = sbr.rel (0) target = $region29
  $region28: #{discriminator_forward.7} parent=0 // pred_region
    _
  $region29: #{discriminator_forward.7} parent=0 // pred_fallthru
    _
  // Predicated region
  $region30: #{discriminator_forward.7} parent=0 // pred_check
    _
  $region31: #{discriminator_forward.7} parent=0 // pred_check_branch
    %323 = sbr.rel (0) target = $region33
  $region32: #{discriminator_forward.7} parent=0 // pred_region
    _
  $region33: #{discriminator_forward.7} parent=0 // pred_fallthru
    _
  // Predicated region
  $region34: #{discriminator_forward.7} parent=0 // pred_check
    _
  $region35: #{discriminator_forward.7} parent=0 // pred_check_branch
    %325 = sbr.rel (0) target = $region37
  $region36: #{discriminator_forward.7} parent=0 // pred_region
    _
  $region37: #{discriminator_forward.7} parent=0 // pred_fallthru
    _
  // Predicated region
  $region38: #{discriminator_forward.7} parent=0 // pred_check
    _
  $region39: #{discriminator_forward.7} parent=0 // pred_check_branch
    %327 = sbr.rel (0) target = $region41
  $region40: #{discriminator_forward.7} parent=0 // pred_region
    _
  $region41: #{discriminator_forward.7} parent=0 // pred_fallthru
    _

// kernel: tile.53
$region0: #{tile.53}
  #allocation0 [shape = 's32[1]{0}', space=sflag, size = 0x4, scoped, tag = 'scoped memory for tile.53']
  %s0 = inlined_call_operand.vmem [shape: f32[64], index: 0, kind: input, shape index: {}]
  %s1 = inlined_call_operand.vmem [shape: f32[16,64], index: 1, kind: output, shape index: {}]
  // Predicated region
  $region2: #{tile.53} parent=0 // pred_check
    _
  $region3: #{tile.53} parent=0 // pred_check_branch
    %3 = sbr.rel (0) target = $region5
  $region4: #{tile.53} parent=0 // pred_region
    _
  $region5: #{tile.53} parent=0 // pred_fallthru
    _
  %v4 = vld [vmem:[%s0] ss:$0 sm:$0xff]
  %5 = vst [vmem:[%s1] sm:$0xff] %v4
  %s6 = scalar_lea.vmem %s1, 8
  %7 = vst [vmem:[%s6] sm:$0xff] %v4

// kernel: tile.54
$region0: #{tile.54}
  %s0 = inlined_call_operand.vmem [shape: f32[16,64], index: 0, kind: input, shape index: {}]
  %s1 = inlined_call_operand.vmem [shape: f32[1,1024], index: 1, kind: output, shape index: {}]
  $region1: #{tile.54} parent=0
    #allocation0 [shape = 'u8[32768]{0}', space=vmem, size = 0x8000, scoped, tag = 'scoped mem for output reshape']
    %v2 = vld [vmem:[%s0] ss:$2 sm:$0xff]
    %vm3 = vcmask 523264
    %4 = vst.msk [vmem:[#allocation0] ss:$8 sm:$0xf] %vm3, %v2
    %5 = vst.msk [vmem:[#allocation0] ss:$8 sm:$0xf0] %vm3, %v2
    %s6 = scalar_lea.vmem %s0, 1
    %v7 = vld [vmem:[%s6] ss:$2 sm:$0xff]
    %8 = vrot.lane.b32.xlu0 %v7, 64
    %v9 = vpop.permute.xlu0 %8
    %vm10 = vcmask 1048064
    %11 = vst.msk [vmem:[#allocation0] ss:$8 sm:$0xf] %vm10, %v9
    %12 = vst.msk [vmem:[#allocation0] ss:$8 sm:$0xf0] %vm10, %v9
    %s14 = ssub.s32 2, 1
    %v15 = vld [vmem:[#allocation0] sm:%s14]
    %s17 = ssub.s32 2, 1
    %18 = vst [vmem:[%s1] sm:%s17] %v15
    %s19 = scalar_lea.vmem [#allocation0], 8
    %v20 = vld [vmem:[%s19] sm:%s14]
    %s22 = ssub.s32 2, 1
    %s23 = scalar_lea.vmem %s1, 1
    %24 = vst [vmem:[%s23] sm:%s22] %v20
    %s25 = scalar_lea.vmem [#allocation0], 16
    %v26 = vld [vmem:[%s25] sm:%s14]
    %s28 = ssub.s32 2, 1
    %s29 = scalar_lea.vmem %s1, 2
    %30 = vst [vmem:[%s29] sm:%s28] %v26
    %s31 = scalar_lea.vmem [#allocation0], 24
    %v32 = vld [vmem:[%s31] sm:%s14]
    %s34 = ssub.s32 2, 1
    %s35 = scalar_lea.vmem %s1, 3
    %36 = vst [vmem:[%s35] sm:%s34] %v32
    %s37 = scalar_lea.vmem [#allocation0], 32
    %v38 = vld [vmem:[%s37] sm:%s14]
    %s40 = ssub.s32 2, 1
    %s41 = scalar_lea.vmem %s1, 4
    %42 = vst [vmem:[%s41] sm:%s40] %v38
    %s43 = scalar_lea.vmem [#allocation0], 40
    %v44 = vld [vmem:[%s43] sm:%s14]
    %s46 = ssub.s32 2, 1
    %s47 = scalar_lea.vmem %s1, 5
    %48 = vst [vmem:[%s47] sm:%s46] %v44
    %s49 = scalar_lea.vmem [#allocation0], 48
    %v50 = vld [vmem:[%s49] sm:%s14]
    %s52 = ssub.s32 2, 1
    %s53 = scalar_lea.vmem %s1, 6
    %54 = vst [vmem:[%s53] sm:%s52] %v50
    %s55 = scalar_lea.vmem [#allocation0], 56
    %v56 = vld [vmem:[%s55] sm:%s14]
    %s58 = ssub.s32 2, 1
    %s59 = scalar_lea.vmem %s1, 7
    %60 = vst [vmem:[%s59] sm:%s58] %v56

// kernel: discriminator_forward.8
$region0: #{discriminator_forward.8}
  #allocation0 [shape = 'u32[]', space=smem, size = 0x4, offset = 0x4, fixed_abs, tag = 'smem constant byte address 0x4 - core index']
  #allocation1 [shape = 'u32[72,128]{1,0:T(1,128)}', space=vmem, size = 0x9000, scoped, tag = 'internal scratch']
  %s0 = inlined_call_operand.vmem [shape: bf16[18,512], index: 0, kind: input, shape index: {}]
  %s1 = inlined_call_operand.vmem [shape: bf16[512,64], index: 1, kind: input, shape index: {}]
  %s2 = inlined_call_operand.vmem [shape: f32[1,512], index: 2, kind: input, shape index: {}]
  %s3 = inlined_call_operand.vmem [shape: f32[1,512], index: 3, kind: input, shape index: {}]
  %s4 = inlined_call_operand.vmem [shape: bf16[18,64], index: 4, kind: output, shape index: {0}]
  %s5 = inlined_call_operand.vmem [shape: f32[1,1,64], index: 5, kind: output, shape index: {1}]
  %s6 = inlined_call_operand.vmem [shape: f32[1,1,64], index: 6, kind: output, shape index: {2}]
  %7 = xla_tuple %s4, %s5, %s6
  %s8 = sld [smem:[#allocation0]]
  $region42: #{discriminator_forward.8} parent=0
    _
  %s10 = ssub.s32 1, %s8
  %s11 = scalar_select 0, %s10, %s8
  // Predicated region
  $region2: #{discriminator_forward.8} parent=0 // pred_check
    _
  $region3: #{discriminator_forward.8} parent=0 // pred_check_branch
    %13 = sbr.rel (0) target = $region5
  $region4: #{discriminator_forward.8} parent=0 // pred_region
    _
  $region5: #{discriminator_forward.8} parent=0 // pred_fallthru
    _
  // Predicated region
  $region6: #{discriminator_forward.8} parent=0 // pred_check
    _
  $region7: #{discriminator_forward.8} parent=0 // pred_check_branch
    %15 = sbr.rel (0) target = $region9
  $region8: #{discriminator_forward.8} parent=0 // pred_region
    _
  $region9: #{discriminator_forward.8} parent=0 // pred_fallthru
    _
  // Predicated region
  $region10: #{discriminator_forward.8} parent=0 // pred_check
    _
  $region11: #{discriminator_forward.8} parent=0 // pred_check_branch
    %17 = sbr.rel (0) target = $region13
  $region12: #{discriminator_forward.8} parent=0 // pred_region
    _
  $region13: #{discriminator_forward.8} parent=0 // pred_fallthru
    _
  // Predicated region
  $region14: #{discriminator_forward.8} parent=0 // pred_check
    _
  $region15: #{discriminator_forward.8} parent=0 // pred_check_branch
    %19 = sbr.rel (0) target = $region17
  $region16: #{discriminator_forward.8} parent=0 // pred_region
    _
  $region17: #{discriminator_forward.8} parent=0 // pred_fallthru
    _
  %v20 = vld [vmem:[%s0] sm:$0xff]
  %v21 = vld [vmem:[%s0 + $0x8] sm:$0xff]
  %v22 = vld [vmem:[%s0 + $0x10] sm:$0xff]
  %v23 = vld [vmem:[%s0 + $0x18] sm:$0xff]
  %v24 = vld [vmem:[%s0 + $0x20] sm:$0x11]
  %v25 = vld [vmem:[%s0 + $0x28] sm:$0x11]
  %v26 = vunpack.c.l.bf16 %v20
  %v27 = vunpack.c.h.bf16 %v20
  %v28 = vunpack.c.l.bf16 %v21
  %v29 = vunpack.c.h.bf16 %v21
  %v30 = vunpack.c.l.bf16 %v22
  %v31 = vunpack.c.h.bf16 %v22
  %v32 = vunpack.c.l.bf16 %v23
  %v33 = vunpack.c.h.bf16 %v23
  %v34 = vunpack.c.l.bf16 %v24
  %v35 = vunpack.c.h.bf16 %v24
  %v36 = vunpack.c.l.bf16 %v25
  %v37 = vunpack.c.h.bf16 %v25
  %v38 = vld [vmem:[%s2] sm:$0xf]
  %v40 = vperm.slane %v38, 0
  %v41 = vperm.slane %v38, 1
  %v42 = vperm.slane %v38, 2
  %v43 = vperm.slane %v38, 3
  %v48 = vmul.f32 %v26, %v40
  %v49 = vmul.f32 %v27, %v41
  %v50 = vmul.f32 %v28, %v42
  %v51 = vmul.f32 %v29, %v43
  %v52 = vmul.f32 %v30, %v40
  %v53 = vmul.f32 %v31, %v41
  %v54 = vmul.f32 %v32, %v42
  %v55 = vmul.f32 %v33, %v43
  %v56 = vmul.f32 %v34, %v40
  %v57 = vmul.f32 %v35, %v41
  %v58 = vmul.f32 %v36, %v42
  %v59 = vmul.f32 %v37, %v43
  %v60 = vld [vmem:[%s3] sm:$0xf]
  %v62 = vperm.slane %v60, 0
  %v63 = vperm.slane %v60, 1
  %v64 = vperm.slane %v60, 2
  %v65 = vperm.slane %v60, 3
  %v70 = vadd.f32 %v48, %v62
  %v71 = vadd.f32 %v49, %v63
  %v72 = vadd.f32 %v50, %v64
  %v73 = vadd.f32 %v51, %v65
  %v74 = vadd.f32 %v52, %v62
  %v75 = vadd.f32 %v53, %v63
  %v76 = vadd.f32 %v54, %v64
  %v77 = vadd.f32 %v55, %v65
  %v78 = vadd.f32 %v56, %v62
  %v79 = vadd.f32 %v57, %v63
  %v80 = vadd.f32 %v58, %v64
  %v81 = vadd.f32 %v59, %v65
  %vm82 = vcmp.ge.f32.partialorder %v70, 0.0
  %vm83 = vcmp.ge.f32.partialorder %v71, 0.0
  %vm84 = vcmp.ge.f32.partialorder %v72, 0.0
  %vm85 = vcmp.ge.f32.partialorder %v73, 0.0
  %vm86 = vcmp.ge.f32.partialorder %v74, 0.0
  %vm87 = vcmp.ge.f32.partialorder %v75, 0.0
  %vm88 = vcmp.ge.f32.partialorder %v76, 0.0
  %vm89 = vcmp.ge.f32.partialorder %v77, 0.0
  %vm90 = vcmp.ge.f32.partialorder %v78, 0.0
  %vm91 = vcmp.ge.f32.partialorder %v79, 0.0
  %vm92 = vcmp.ge.f32.partialorder %v80, 0.0
  %vm93 = vcmp.ge.f32.partialorder %v81, 0.0
  %v94 = vmul.f32 %v70, 0.2
  %v95 = vmul.f32 %v71, 0.2
  %v96 = vmul.f32 %v72, 0.2
  %v97 = vmul.f32 %v73, 0.2
  %v98 = vmul.f32 %v74, 0.2
  %v99 = vmul.f32 %v75, 0.2
  %v100 = vmul.f32 %v76, 0.2
  %v101 = vmul.f32 %v77, 0.2
  %v102 = vmul.f32 %v78, 0.2
  %v103 = vmul.f32 %v79, 0.2
  %v104 = vmul.f32 %v80, 0.2
  %v105 = vmul.f32 %v81, 0.2
  %v106 = vsel %vm82, %v70, %v94
  %v107 = vsel %vm83, %v71, %v95
  %v108 = vsel %vm84, %v72, %v96
  %v109 = vsel %vm85, %v73, %v97
  %v110 = vsel %vm86, %v74, %v98
  %v111 = vsel %vm87, %v75, %v99
  %v112 = vsel %vm88, %v76, %v100
  %v113 = vsel %vm89, %v77, %v101
  %v114 = vsel %vm90, %v78, %v102
  %v115 = vsel %vm91, %v79, %v103
  %v116 = vsel %vm92, %v80, %v104
  %v117 = vsel %vm93, %v81, %v105
  %v118 = vpack.c.bf16 %v110, %v106
  %v119 = vpack.c.bf16 %v111, %v107
  %v120 = vpack.c.bf16 %v112, %v108
  %v121 = vpack.c.bf16 %v113, %v109
  %v122 = vpack.c.bf16 %v114, %v114
  %v123 = vpack.c.bf16 %v115, %v115
  %v124 = vpack.c.bf16 %v116, %v116
  %v125 = vpack.c.bf16 %v117, %v117
  %v126 = vld [vmem:[%s1] sm:$0xf]
  %v127 = vld [vmem:[%s1 + $0x4] sm:$0xf]
  %v128 = vld [vmem:[%s1 + $0x8] sm:$0xf]
  %v129 = vld [vmem:[%s1 + $0xc] sm:$0xf]
  %v130 = vld [vmem:[%s1 + $0x10] sm:$0xf]
  %v131 = vld [vmem:[%s1 + $0x14] sm:$0xf]
  %v132 = vld [vmem:[%s1 + $0x18] sm:$0xf]
  %v133 = vld [vmem:[%s1 + $0x1c] sm:$0xf]
  %v134 = vld [vmem:[%s1 + $0x20] sm:$0xf]
  %v135 = vld [vmem:[%s1 + $0x24] sm:$0xf]
  %v136 = vld [vmem:[%s1 + $0x28] sm:$0xf]
  %v137 = vld [vmem:[%s1 + $0x2c] sm:$0xf]
  %v138 = vld [vmem:[%s1 + $0x30] sm:$0xf]
  %v139 = vld [vmem:[%s1 + $0x34] sm:$0xf]
  %v140 = vld [vmem:[%s1 + $0x38] sm:$0xf]
  %v141 = vld [vmem:[%s1 + $0x3c] sm:$0xf]
  %v142 = vld [vmem:[%s1 + $0x40] sm:$0xf]
  %v143 = vld [vmem:[%s1 + $0x44] sm:$0xf]
  %v144 = vld [vmem:[%s1 + $0x48] sm:$0xf]
  %v145 = vld [vmem:[%s1 + $0x4c] sm:$0xf]
  %v146 = vld [vmem:[%s1 + $0x50] sm:$0xf]
  %v147 = vld [vmem:[%s1 + $0x54] sm:$0xf]
  %v148 = vld [vmem:[%s1 + $0x58] sm:$0xf]
  %v149 = vld [vmem:[%s1 + $0x5c] sm:$0xf]
  %v150 = vld [vmem:[%s1 + $0x60] sm:$0xf]
  %v151 = vld [vmem:[%s1 + $0x64] sm:$0xf]
  %v152 = vld [vmem:[%s1 + $0x68] sm:$0xf]
  %v153 = vld [vmem:[%s1 + $0x6c] sm:$0xf]
  %v154 = vld [vmem:[%s1 + $0x70] sm:$0xf]
  %v155 = vld [vmem:[%s1 + $0x74] sm:$0xf]
  %v156 = vld [vmem:[%s1 + $0x78] sm:$0xf]
  %v157 = vld [vmem:[%s1 + $0x7c] sm:$0xf]
  %v158 = vld [vmem:[%s1 + $0x80] sm:$0xf]
  %v159 = vld [vmem:[%s1 + $0x84] sm:$0xf]
  %v160 = vld [vmem:[%s1 + $0x88] sm:$0xf]
  %v161 = vld [vmem:[%s1 + $0x8c] sm:$0xf]
  %v162 = vld [vmem:[%s1 + $0x90] sm:$0xf]
  %v163 = vld [vmem:[%s1 + $0x94] sm:$0xf]
  %v164 = vld [vmem:[%s1 + $0x98] sm:$0xf]
  %v165 = vld [vmem:[%s1 + $0x9c] sm:$0xf]
  %v166 = vld [vmem:[%s1 + $0xa0] sm:$0xf]
  %v167 = vld [vmem:[%s1 + $0xa4] sm:$0xf]
  %v168 = vld [vmem:[%s1 + $0xa8] sm:$0xf]
  %v169 = vld [vmem:[%s1 + $0xac] sm:$0xf]
  %v170 = vld [vmem:[%s1 + $0xb0] sm:$0xf]
  %v171 = vld [vmem:[%s1 + $0xb4] sm:$0xf]
  %v172 = vld [vmem:[%s1 + $0xb8] sm:$0xf]
  %v173 = vld [vmem:[%s1 + $0xbc] sm:$0xf]
  %v174 = vld [vmem:[%s1 + $0xc0] sm:$0xf]
  %v175 = vld [vmem:[%s1 + $0xc4] sm:$0xf]
  %v176 = vld [vmem:[%s1 + $0xc8] sm:$0xf]
  %v177 = vld [vmem:[%s1 + $0xcc] sm:$0xf]
  %v178 = vld [vmem:[%s1 + $0xd0] sm:$0xf]
  %v179 = vld [vmem:[%s1 + $0xd4] sm:$0xf]
  %v180 = vld [vmem:[%s1 + $0xd8] sm:$0xf]
  %v181 = vld [vmem:[%s1 + $0xdc] sm:$0xf]
  %v182 = vld [vmem:[%s1 + $0xe0] sm:$0xf]
  %v183 = vld [vmem:[%s1 + $0xe4] sm:$0xf]
  %v184 = vld [vmem:[%s1 + $0xe8] sm:$0xf]
  %v185 = vld [vmem:[%s1 + $0xec] sm:$0xf]
  %v186 = vld [vmem:[%s1 + $0xf0] sm:$0xf]
  %v187 = vld [vmem:[%s1 + $0xf4] sm:$0xf]
  %v188 = vld [vmem:[%s1 + $0xf8] sm:$0xf]
  %v189 = vld [vmem:[%s1 + $0xfc] sm:$0xf]
  %v254 = vunpack.c.l.b16 %v126
  %v255 = vunpack.c.l.b16 %v127
  %v256 = vunpack.c.l.b16 %v128
  %v257 = vunpack.c.l.b16 %v129
  %v258 = vunpack.c.l.b16 %v130
  %v259 = vunpack.c.l.b16 %v131
  %v260 = vunpack.c.l.b16 %v132
  %v261 = vunpack.c.l.b16 %v133
  %v262 = vunpack.c.l.b16 %v134
  %v263 = vunpack.c.l.b16 %v135
  %v264 = vunpack.c.l.b16 %v136
  %v265 = vunpack.c.l.b16 %v137
  %v266 = vunpack.c.l.b16 %v138
  %v267 = vunpack.c.l.b16 %v139
  %v268 = vunpack.c.l.b16 %v140
  %v269 = vunpack.c.l.b16 %v141
  %v270 = vunpack.c.l.b16 %v142
  %v271 = vunpack.c.l.b16 %v143
  %v272 = vunpack.c.l.b16 %v144
  %v273 = vunpack.c.l.b16 %v145
  %v274 = vunpack.c.l.b16 %v146
  %v275 = vunpack.c.l.b16 %v147
  %v276 = vunpack.c.l.b16 %v148
  %v277 = vunpack.c.l.b16 %v149
  %v278 = vunpack.c.l.b16 %v150
  %v279 = vunpack.c.l.b16 %v151
  %v280 = vunpack.c.l.b16 %v152
  %v281 = vunpack.c.l.b16 %v153
  %v282 = vunpack.c.l.b16 %v154
  %v283 = vunpack.c.l.b16 %v155
  %v284 = vunpack.c.l.b16 %v156
  %v285 = vunpack.c.l.b16 %v157
  %v286 = vunpack.c.l.b16 %v158
  %v287 = vunpack.c.l.b16 %v159
  %v288 = vunpack.c.l.b16 %v160
  %v289 = vunpack.c.l.b16 %v161
  %v290 = vunpack.c.l.b16 %v162
  %v291 = vunpack.c.l.b16 %v163
  %v292 = vunpack.c.l.b16 %v164
  %v293 = vunpack.c.l.b16 %v165
  %v294 = vunpack.c.l.b16 %v166
  %v295 = vunpack.c.l.b16 %v167
  %v296 = vunpack.c.l.b16 %v168
  %v297 = vunpack.c.l.b16 %v169
  %v298 = vunpack.c.l.b16 %v170
  %v299 = vunpack.c.l.b16 %v171
  %v300 = vunpack.c.l.b16 %v172
  %v301 = vunpack.c.l.b16 %v173
  %v302 = vunpack.c.l.b16 %v174
  %v303 = vunpack.c.l.b16 %v175
  %v304 = vunpack.c.l.b16 %v176
  %v305 = vunpack.c.l.b16 %v177
  %v306 = vunpack.c.l.b16 %v178
  %v307 = vunpack.c.l.b16 %v179
  %v308 = vunpack.c.l.b16 %v180
  %v309 = vunpack.c.l.b16 %v181
  %v310 = vunpack.c.l.b16 %v182
  %v311 = vunpack.c.l.b16 %v183
  %v312 = vunpack.c.l.b16 %v184
  %v313 = vunpack.c.l.b16 %v185
  %v314 = vunpack.c.l.b16 %v186
  %v315 = vunpack.c.l.b16 %v187
  %v316 = vunpack.c.l.b16 %v188
  %v317 = vunpack.c.l.b16 %v189
  %v318 = vpack.c.b16 %v255, %v254
  %v319 = vpack.c.b16 %v257, %v256
  %v320 = vpack.c.b16 %v259, %v258
  %v321 = vpack.c.b16 %v261, %v260
  %v322 = vpack.c.b16 %v263, %v262
  %v323 = vpack.c.b16 %v265, %v264
  %v324 = vpack.c.b16 %v267, %v266
  %v325 = vpack.c.b16 %v269, %v268
  %v326 = vpack.c.b16 %v271, %v270
  %v327 = vpack.c.b16 %v273, %v272
  %v328 = vpack.c.b16 %v275, %v274
  %v329 = vpack.c.b16 %v277, %v276
  %v330 = vpack.c.b16 %v279, %v278
  %v331 = vpack.c.b16 %v281, %v280
  %v332 = vpack.c.b16 %v283, %v282
  %v333 = vpack.c.b16 %v285, %v284
  %v334 = vpack.c.b16 %v287, %v286
  %v335 = vpack.c.b16 %v289, %v288
  %v336 = vpack.c.b16 %v291, %v290
  %v337 = vpack.c.b16 %v293, %v292
  %v338 = vpack.c.b16 %v295, %v294
  %v339 = vpack.c.b16 %v297, %v296
  %v340 = vpack.c.b16 %v299, %v298
  %v341 = vpack.c.b16 %v301, %v300
  %v342 = vpack.c.b16 %v303, %v302
  %v343 = vpack.c.b16 %v305, %v304
  %v344 = vpack.c.b16 %v307, %v306
  %v345 = vpack.c.b16 %v309, %v308
  %v346 = vpack.c.b16 %v311, %v310
  %v347 = vpack.c.b16 %v313, %v312
  %v348 = vpack.c.b16 %v315, %v314
  %v349 = vpack.c.b16 %v317, %v316
  %382 = vmatpush.bf16.msra.mxu0 %v325
  %383 = vmatpush.bf16.msra.mxu0 %v324
  %384 = vmatpush.bf16.msra.mxu0 %v323
  %385 = vmatpush.bf16.msra.mxu0 %v322
  %386 = vmatpush.bf16.msra.mxu0 %v321
  %387 = vmatpush.bf16.msra.mxu0 %v320
  %388 = vmatpush.bf16.msra.mxu0 %v319
  %389 = vmatpush.bf16.msra.mxu0 %v318
  %390 = vmatmul.bf16.gmra.mxu0 %v118
  %v391 = vpop.f32.mrf.mxu0
  %v392 = vadd.f32 0.0, %v391
  %v393 = vpop.f32.mrf.mxu0
  %v394 = vadd.f32 0.0, %v393
  %395 = vmatmul.bf16.gmra.mxu0 %v122
  %v396 = vpop.f32.mrf.mxu0
  %v397 = vadd.f32 0.0, %v396
  %v398 = vpop.f32.mrf.mxu0
  %399 = vdwg.mxu0
  %400 = vmatpush.bf16.msra.mxu0 %v333
  %401 = vmatpush.bf16.msra.mxu0 %v332
  %402 = vmatpush.bf16.msra.mxu0 %v331
  %403 = vmatpush.bf16.msra.mxu0 %v330
  %404 = vmatpush.bf16.msra.mxu0 %v329
  %405 = vmatpush.bf16.msra.mxu0 %v328
  %406 = vmatpush.bf16.msra.mxu0 %v327
  %407 = vmatpush.bf16.msra.mxu0 %v326
  %408 = vmatmul.bf16.gmra.mxu0 %v119
  %v409 = vpop.f32.mrf.mxu0
  %v410 = vadd.f32 %v392, %v409
  %v411 = vpop.f32.mrf.mxu0
  %v412 = vadd.f32 %v394, %v411
  %413 = vmatmul.bf16.gmra.mxu0 %v123
  %v414 = vpop.f32.mrf.mxu0
  %v415 = vadd.f32 %v397, %v414
  %v416 = vpop.f32.mrf.mxu0
  %417 = vdwg.mxu0
  %418 = vmatpush.bf16.msra.mxu0 %v341
  %419 = vmatpush.bf16.msra.mxu0 %v340
  %420 = vmatpush.bf16.msra.mxu0 %v339
  %421 = vmatpush.bf16.msra.mxu0 %v338
  %422 = vmatpush.bf16.msra.mxu0 %v337
  %423 = vmatpush.bf16.msra.mxu0 %v336
  %424 = vmatpush.bf16.msra.mxu0 %v335
  %425 = vmatpush.bf16.msra.mxu0 %v334
  %426 = vmatmul.bf16.gmra.mxu0 %v120
  %v427 = vpop.f32.mrf.mxu0
  %v428 = vadd.f32 %v410, %v427
  %v429 = vpop.f32.mrf.mxu0
  %v430 = vadd.f32 %v412, %v429
  %431 = vmatmul.bf16.gmra.mxu0 %v124
  %v432 = vpop.f32.mrf.mxu0
  %v433 = vadd.f32 %v415, %v432
  %v434 = vpop.f32.mrf.mxu0
  %435 = vdwg.mxu0
  %436 = vmatpush.bf16.msra.mxu0 %v349
  %437 = vmatpush.bf16.msra.mxu0 %v348
  %438 = vmatpush.bf16.msra.mxu0 %v347
  %439 = vmatpush.bf16.msra.mxu0 %v346
  %440 = vmatpush.bf16.msra.mxu0 %v345
  %441 = vmatpush.bf16.msra.mxu0 %v344
  %442 = vmatpush.bf16.msra.mxu0 %v343
  %443 = vmatpush.bf16.msra.mxu0 %v342
  %444 = vmatmul.bf16.gmra.mxu0 %v121
  %v445 = vpop.f32.mrf.mxu0
  %v446 = vadd.f32 %v428, %v445
  %v447 = vpop.f32.mrf.mxu0
  %v448 = vadd.f32 %v430, %v447
  %449 = vmatmul.bf16.gmra.mxu0 %v125
  %v450 = vpop.f32.mrf.mxu0
  %v451 = vadd.f32 %v433, %v450
  %v452 = vpop.f32.mrf.mxu0
  %453 = vdwg.mxu0
  %v454 = vpack.c.bf16 %v446, %v446
  %v455 = vpack.c.bf16 %v448, %v448
  %v456 = vpack.c.bf16 %v451, %v451
  %vm457 = vcmask 519168
  %458 = vst.msk [vmem:[%s4] sm:$0xf] %vm457, %v454
  %459 = vst.msk [vmem:[%s4 + $0x4] sm:$0xf] %vm457, %v455
  %vm460 = vcmask 516096
  %461 = vst.msk [vmem:[%s4 + $0x8] sm:$0x1] %vm460, %v456
  %s462 = smul.u32 0, 18
  %v463 = vlaneseq
  %v464 = vshrl.u32 %v463, 7
  %v465 = vadd.s32 %v464, 8
  %v466 = vadd.s32 %v464, 16
  %v467 = vstv %s462
  %v468 = vadd.s32 %v467, %v464
  %v469 = vadd.s32 %v467, %v465
  %v470 = vadd.s32 %v467, %v466
  %vm471 = vcmp.lt.s32.totalorder %v468, 18
  %vm472 = vcmp.lt.s32.totalorder %v469, 18
  %vm473 = vcmp.lt.s32.totalorder %v470, 18
  %v474 = vsel %vm471, %v446, 0.0
  %v475 = vsel %vm472, %v448, 0.0
  %v476 = vsel %vm473, %v451, 0.0
  %vm477 = vcmask 523264
  %v478 = vsel %vm477, %v474, 0.0
  %v479 = vsel %vm477, %v475, 0.0
  %v480 = vadd.f32 %v478, %v479
  %vm481 = vcmask 517120
  %v482 = vsel %vm481, %v476, 0.0
  %v483 = vadd.f32 %v480, %v482
  %v484 = vrot.slane %v483, 4
  %v485 = vadd.f32 %v483, %v484
  %v486 = vrot.slane %v485, 2
  %v487 = vadd.f32 %v485, %v486
  %v488 = vrot.slane %v487, 1
  %v489 = vadd.f32 %v487, %v488
  %490 = vst.msk [vmem:[%s5] sm:$0x1] %vm460, %v489
  %v491 = vmul.f32 %v474, %v474
  %v492 = vmul.f32 %v475, %v475
  %v493 = vmul.f32 %v476, %v476
  %v494 = vsel %vm477, %v491, 0.0
  %v495 = vsel %vm477, %v492, 0.0
  %v496 = vadd.f32 %v494, %v495
  %v497 = vsel %vm481, %v493, 0.0
  %v498 = vadd.f32 %v496, %v497
  %v499 = vrot.slane %v498, 4
  %v500 = vadd.f32 %v498, %v499
  %v501 = vrot.slane %v500, 2
  %v502 = vadd.f32 %v500, %v501
  %v503 = vrot.slane %v502, 1
  %v504 = vadd.f32 %v502, %v503
  %505 = vst.msk [vmem:[%s6] sm:$0x1] %vm460, %v504
  // Predicated region
  $region18: #{discriminator_forward.8} parent=0 // pred_check
    _
  $region19: #{discriminator_forward.8} parent=0 // pred_check_branch
    %507 = sbr.rel (0) target = $region21
  $region20: #{discriminator_forward.8} parent=0 // pred_region
    _
  $region21: #{discriminator_forward.8} parent=0 // pred_fallthru
    _
  // Predicated region
  $region22: #{discriminator_forward.8} parent=0 // pred_check
    _
  $region23: #{discriminator_forward.8} parent=0 // pred_check_branch
    %509 = sbr.rel (0) target = $region25
  $region24: #{discriminator_forward.8} parent=0 // pred_region
    _
  $region25: #{discriminator_forward.8} parent=0 // pred_fallthru
    _
  // Predicated region
  $region26: #{discriminator_forward.8} parent=0 // pred_check
    _
  $region27: #{discriminator_forward.8} parent=0 // pred_check_branch
    %511 = sbr.rel (0) target = $region29
  $region28: #{discriminator_forward.8} parent=0 // pred_region
    _
  $region29: #{discriminator_forward.8} parent=0 // pred_fallthru
    _
  // Predicated region
  $region30: #{discriminator_forward.8} parent=0 // pred_check
    _
  $region31: #{discriminator_forward.8} parent=0 // pred_check_branch
    %513 = sbr.rel (0) target = $region33
  $region32: #{discriminator_forward.8} parent=0 // pred_region
    _
  $region33: #{discriminator_forward.8} parent=0 // pred_fallthru
    _
  // Predicated region
  $region34: #{discriminator_forward.8} parent=0 // pred_check
    _
  $region35: #{discriminator_forward.8} parent=0 // pred_check_branch
    %515 = sbr.rel (0) target = $region37
  $region36: #{discriminator_forward.8} parent=0 // pred_region
    _
  $region37: #{discriminator_forward.8} parent=0 // pred_fallthru
    _
  // Predicated region
  $region38: #{discriminator_forward.8} parent=0 // pred_check
    _
  $region39: #{discriminator_forward.8} parent=0 // pred_check_branch
    %517 = sbr.rel (0) target = $region41
  $region40: #{discriminator_forward.8} parent=0 // pred_region
    _
  $region41: #{discriminator_forward.8} parent=0 // pred_fallthru
    _

// kernel: discriminator_forward.9
$region0: #{discriminator_forward.9}
  #allocation0 [shape = 'u32[]', space=smem, size = 0x4, offset = 0x4, fixed_abs, tag = 'smem constant byte address 0x4 - core index']
  #allocation1 [shape = 'u32[72,128]{1,0:T(1,128)}', space=vmem, size = 0x9000, scoped, tag = 'internal scratch']
  %s0 = inlined_call_operand.vmem [shape: bf16[8,1024], index: 0, kind: input, shape index: {}]
  %s1 = inlined_call_operand.vmem [shape: bf16[1024,128], index: 1, kind: input, shape index: {}]
  %s2 = inlined_call_operand.vmem [shape: f32[1,1024], index: 2, kind: input, shape index: {}]
  %s3 = inlined_call_operand.vmem [shape: f32[1,1024], index: 3, kind: input, shape index: {}]
  %s4 = inlined_call_operand.vmem [shape: f32[1,128], index: 4, kind: input, shape index: {}]
  %s5 = inlined_call_operand.vmem [shape: f32[8,128], index: 5, kind: output, shape index: {}]
  %s6 = sld [smem:[#allocation0]]
  $region30: #{discriminator_forward.9} parent=0
    _
  %s8 = ssub.s32 1, %s6
  %s9 = scalar_select 0, %s8, %s6
  // Predicated region
  $region2: #{discriminator_forward.9} parent=0 // pred_check
    _
  $region3: #{discriminator_forward.9} parent=0 // pred_check_branch
    %11 = sbr.rel (0) target = $region5
  $region4: #{discriminator_forward.9} parent=0 // pred_region
    _
  $region5: #{discriminator_forward.9} parent=0 // pred_fallthru
    _
  // Predicated region
  $region6: #{discriminator_forward.9} parent=0 // pred_check
    _
  $region7: #{discriminator_forward.9} parent=0 // pred_check_branch
    %13 = sbr.rel (0) target = $region9
  $region8: #{discriminator_forward.9} parent=0 // pred_region
    _
  $region9: #{discriminator_forward.9} parent=0 // pred_fallthru
    _
  // Predicated region
  $region10: #{discriminator_forward.9} parent=0 // pred_check
    _
  $region11: #{discriminator_forward.9} parent=0 // pred_check_branch
    %15 = sbr.rel (0) target = $region13
  $region12: #{discriminator_forward.9} parent=0 // pred_region
    _
  $region13: #{discriminator_forward.9} parent=0 // pred_fallthru
    _
  // Predicated region
  $region14: #{discriminator_forward.9} parent=0 // pred_check
    _
  $region15: #{discriminator_forward.9} parent=0 // pred_check_branch
    %17 = sbr.rel (0) target = $region17
  $region16: #{discriminator_forward.9} parent=0 // pred_region
    _
  $region17: #{discriminator_forward.9} parent=0 // pred_fallthru
    _
  // Predicated region
  $region18: #{discriminator_forward.9} parent=0 // pred_check
    _
  $region19: #{discriminator_forward.9} parent=0 // pred_check_branch
    %19 = sbr.rel (0) target = $region21
  $region20: #{discriminator_forward.9} parent=0 // pred_region
    _
  $region21: #{discriminator_forward.9} parent=0 // pred_fallthru
    _
  %v20 = vld [vmem:[%s0] sm:$0xff]
  %v21 = vld [vmem:[%s0 + $0x8] sm:$0xff]
  %v22 = vld [vmem:[%s0 + $0x10] sm:$0xff]
  %v23 = vld [vmem:[%s0 + $0x18] sm:$0xff]
  %v24 = vunpack.c.l.bf16 %v20
  %v25 = vunpack.c.h.bf16 %v20
  %v26 = vunpack.c.l.bf16 %v21
  %v27 = vunpack.c.h.bf16 %v21
  %v28 = vunpack.c.l.bf16 %v22
  %v29 = vunpack.c.h.bf16 %v22
  %v30 = vunpack.c.l.bf16 %v23
  %v31 = vunpack.c.h.bf16 %v23
  %v32 = vld [vmem:[%s2] sm:$0xff]
  %v34 = vperm.slane %v32, 0
  %v35 = vperm.slane %v32, 1
  %v36 = vperm.slane %v32, 2
  %v37 = vperm.slane %v32, 3
  %v38 = vperm.slane %v32, 4
  %v39 = vperm.slane %v32, 5
  %v40 = vperm.slane %v32, 6
  %v41 = vperm.slane %v32, 7
  %v50 = vmul.f32 %v24, %v34
  %v51 = vmul.f32 %v25, %v35
  %v52 = vmul.f32 %v26, %v36
  %v53 = vmul.f32 %v27, %v37
  %v54 = vmul.f32 %v28, %v38
  %v55 = vmul.f32 %v29, %v39
  %v56 = vmul.f32 %v30, %v40
  %v57 = vmul.f32 %v31, %v41
  %v58 = vld [vmem:[%s3] sm:$0xff]
  %v60 = vperm.slane %v58, 0
  %v61 = vperm.slane %v58, 1
  %v62 = vperm.slane %v58, 2
  %v63 = vperm.slane %v58, 3
  %v64 = vperm.slane %v58, 4
  %v65 = vperm.slane %v58, 5
  %v66 = vperm.slane %v58, 6
  %v67 = vperm.slane %v58, 7
  %v76 = vadd.f32 %v50, %v60
  %v77 = vadd.f32 %v51, %v61
  %v78 = vadd.f32 %v52, %v62
  %v79 = vadd.f32 %v53, %v63
  %v80 = vadd.f32 %v54, %v64
  %v81 = vadd.f32 %v55, %v65
  %v82 = vadd.f32 %v56, %v66
  %v83 = vadd.f32 %v57, %v67
  %vm84 = vcmp.ge.f32.partialorder %v76, 0.0
  %vm85 = vcmp.ge.f32.partialorder %v77, 0.0
  %vm86 = vcmp.ge.f32.partialorder %v78, 0.0
  %vm87 = vcmp.ge.f32.partialorder %v79, 0.0
  %vm88 = vcmp.ge.f32.partialorder %v80, 0.0
  %vm89 = vcmp.ge.f32.partialorder %v81, 0.0
  %vm90 = vcmp.ge.f32.partialorder %v82, 0.0
  %vm91 = vcmp.ge.f32.partialorder %v83, 0.0
  %v92 = vmul.f32 %v76, 0.2
  %v93 = vmul.f32 %v77, 0.2
  %v94 = vmul.f32 %v78, 0.2
  %v95 = vmul.f32 %v79, 0.2
  %v96 = vmul.f32 %v80, 0.2
  %v97 = vmul.f32 %v81, 0.2
  %v98 = vmul.f32 %v82, 0.2
  %v99 = vmul.f32 %v83, 0.2
  %v100 = vsel %vm84, %v76, %v92
  %v101 = vsel %vm85, %v77, %v93
  %v102 = vsel %vm86, %v78, %v94
  %v103 = vsel %vm87, %v79, %v95
  %v104 = vsel %vm88, %v80, %v96
  %v105 = vsel %vm89, %v81, %v97
  %v106 = vsel %vm90, %v82, %v98
  %v107 = vsel %vm91, %v83, %v99
  %v108 = vpack.c.bf16 %v100, %v100
  %v109 = vpack.c.bf16 %v101, %v101
  %v110 = vpack.c.bf16 %v102, %v102
  %v111 = vpack.c.bf16 %v103, %v103
  %v112 = vpack.c.bf16 %v104, %v104
  %v113 = vpack.c.bf16 %v105, %v105
  %v114 = vpack.c.bf16 %v106, %v106
  %v115 = vpack.c.bf16 %v107, %v107
  %v116 = vld [vmem:[%s1] sm:$0xf]
  %v117 = vld [vmem:[%s1 + $0x4] sm:$0xf]
  %v118 = vld [vmem:[%s1 + $0x8] sm:$0xf]
  %v119 = vld [vmem:[%s1 + $0xc] sm:$0xf]
  %v120 = vld [vmem:[%s1 + $0x10] sm:$0xf]
  %v121 = vld [vmem:[%s1 + $0x14] sm:$0xf]
  %v122 = vld [vmem:[%s1 + $0x18] sm:$0xf]
  %v123 = vld [vmem:[%s1 + $0x1c] sm:$0xf]
  %v124 = vld [vmem:[%s1 + $0x20] sm:$0xf]
  %v125 = vld [vmem:[%s1 + $0x24] sm:$0xf]
  %v126 = vld [vmem:[%s1 + $0x28] sm:$0xf]
  %v127 = vld [vmem:[%s1 + $0x2c] sm:$0xf]
  %v128 = vld [vmem:[%s1 + $0x30] sm:$0xf]
  %v129 = vld [vmem:[%s1 + $0x34] sm:$0xf]
  %v130 = vld [vmem:[%s1 + $0x38] sm:$0xf]
  %v131 = vld [vmem:[%s1 + $0x3c] sm:$0xf]
  %v132 = vld [vmem:[%s1 + $0x40] sm:$0xf]
  %v133 = vld [vmem:[%s1 + $0x44] sm:$0xf]
  %v134 = vld [vmem:[%s1 + $0x48] sm:$0xf]
  %v135 = vld [vmem:[%s1 + $0x4c] sm:$0xf]
  %v136 = vld [vmem:[%s1 + $0x50] sm:$0xf]
  %v137 = vld [vmem:[%s1 + $0x54] sm:$0xf]
  %v138 = vld [vmem:[%s1 + $0x58] sm:$0xf]
  %v139 = vld [vmem:[%s1 + $0x5c] sm:$0xf]
  %v140 = vld [vmem:[%s1 + $0x60] sm:$0xf]
  %v141 = vld [vmem:[%s1 + $0x64] sm:$0xf]
  %v142 = vld [vmem:[%s1 + $0x68] sm:$0xf]
  %v143 = vld [vmem:[%s1 + $0x6c] sm:$0xf]
  %v144 = vld [vmem:[%s1 + $0x70] sm:$0xf]
  %v145 = vld [vmem:[%s1 + $0x74] sm:$0xf]
  %v146 = vld [vmem:[%s1 + $0x78] sm:$0xf]
  %v147 = vld [vmem:[%s1 + $0x7c] sm:$0xf]
  %v148 = vld [vmem:[%s1 + $0x80] sm:$0xf]
  %v149 = vld [vmem:[%s1 + $0x84] sm:$0xf]
  %v150 = vld [vmem:[%s1 + $0x88] sm:$0xf]
  %v151 = vld [vmem:[%s1 + $0x8c] sm:$0xf]
  %v152 = vld [vmem:[%s1 + $0x90] sm:$0xf]
  %v153 = vld [vmem:[%s1 + $0x94] sm:$0xf]
  %v154 = vld [vmem:[%s1 + $0x98] sm:$0xf]
  %v155 = vld [vmem:[%s1 + $0x9c] sm:$0xf]
  %v156 = vld [vmem:[%s1 + $0xa0] sm:$0xf]
  %v157 = vld [vmem:[%s1 + $0xa4] sm:$0xf]
  %v158 = vld [vmem:[%s1 + $0xa8] sm:$0xf]
  %v159 = vld [vmem:[%s1 + $0xac] sm:$0xf]
  %v160 = vld [vmem:[%s1 + $0xb0] sm:$0xf]
  %v161 = vld [vmem:[%s1 + $0xb4] sm:$0xf]
  %v162 = vld [vmem:[%s1 + $0xb8] sm:$0xf]
  %v163 = vld [vmem:[%s1 + $0xbc] sm:$0xf]
  %v164 = vld [vmem:[%s1 + $0xc0] sm:$0xf]
  %v165 = vld [vmem:[%s1 + $0xc4] sm:$0xf]
  %v166 = vld [vmem:[%s1 + $0xc8] sm:$0xf]
  %v167 = vld [vmem:[%s1 + $0xcc] sm:$0xf]
  %v168 = vld [vmem:[%s1 + $0xd0] sm:$0xf]
  %v169 = vld [vmem:[%s1 + $0xd4] sm:$0xf]
  %v170 = vld [vmem:[%s1 + $0xd8] sm:$0xf]
  %v171 = vld [vmem:[%s1 + $0xdc] sm:$0xf]
  %v172 = vld [vmem:[%s1 + $0xe0] sm:$0xf]
  %v173 = vld [vmem:[%s1 + $0xe4] sm:$0xf]
  %v174 = vld [vmem:[%s1 + $0xe8] sm:$0xf]
  %v175 = vld [vmem:[%s1 + $0xec] sm:$0xf]
  %v176 = vld [vmem:[%s1 + $0xf0] sm:$0xf]
  %v177 = vld [vmem:[%s1 + $0xf4] sm:$0xf]
  %v178 = vld [vmem:[%s1 + $0xf8] sm:$0xf]
  %v179 = vld [vmem:[%s1 + $0xfc] sm:$0xf]
  %v180 = vld [vmem:[%s1 + $0x100] sm:$0xf]
  %v181 = vld [vmem:[%s1 + $0x104] sm:$0xf]
  %v182 = vld [vmem:[%s1 + $0x108] sm:$0xf]
  %v183 = vld [vmem:[%s1 + $0x10c] sm:$0xf]
  %v184 = vld [vmem:[%s1 + $0x110] sm:$0xf]
  %v185 = vld [vmem:[%s1 + $0x114] sm:$0xf]
  %v186 = vld [vmem:[%s1 + $0x118] sm:$0xf]
  %v187 = vld [vmem:[%s1 + $0x11c] sm:$0xf]
  %v188 = vld [vmem:[%s1 + $0x120] sm:$0xf]
  %v189 = vld [vmem:[%s1 + $0x124] sm:$0xf]
  %v190 = vld [vmem:[%s1 + $0x128] sm:$0xf]
  %v191 = vld [vmem:[%s1 + $0x12c] sm:$0xf]
  %v192 = vld [vmem:[%s1 + $0x130] sm:$0xf]
  %v193 = vld [vmem:[%s1 + $0x134] sm:$0xf]
  %v194 = vld [vmem:[%s1 + $0x138] sm:$0xf]
  %v195 = vld [vmem:[%s1 + $0x13c] sm:$0xf]
  %v196 = vld [vmem:[%s1 + $0x140] sm:$0xf]
  %v197 = vld [vmem:[%s1 + $0x144] sm:$0xf]
  %v198 = vld [vmem:[%s1 + $0x148] sm:$0xf]
  %v199 = vld [vmem:[%s1 + $0x14c] sm:$0xf]
  %v200 = vld [vmem:[%s1 + $0x150] sm:$0xf]
  %v201 = vld [vmem:[%s1 + $0x154] sm:$0xf]
  %v202 = vld [vmem:[%s1 + $0x158] sm:$0xf]
  %v203 = vld [vmem:[%s1 + $0x15c] sm:$0xf]
  %v204 = vld [vmem:[%s1 + $0x160] sm:$0xf]
  %v205 = vld [vmem:[%s1 + $0x164] sm:$0xf]
  %v206 = vld [vmem:[%s1 + $0x168] sm:$0xf]
  %v207 = vld [vmem:[%s1 + $0x16c] sm:$0xf]
  %v208 = vld [vmem:[%s1 + $0x170] sm:$0xf]
  %v209 = vld [vmem:[%s1 + $0x174] sm:$0xf]
  %v210 = vld [vmem:[%s1 + $0x178] sm:$0xf]
  %v211 = vld [vmem:[%s1 + $0x17c] sm:$0xf]
  %v212 = vld [vmem:[%s1 + $0x180] sm:$0xf]
  %v213 = vld [vmem:[%s1 + $0x184] sm:$0xf]
  %v214 = vld [vmem:[%s1 + $0x188] sm:$0xf]
  %v215 = vld [vmem:[%s1 + $0x18c] sm:$0xf]
  %v216 = vld [vmem:[%s1 + $0x190] sm:$0xf]
  %v217 = vld [vmem:[%s1 + $0x194] sm:$0xf]
  %v218 = vld [vmem:[%s1 + $0x198] sm:$0xf]
  %v219 = vld [vmem:[%s1 + $0x19c] sm:$0xf]
  %v220 = vld [vmem:[%s1 + $0x1a0] sm:$0xf]
  %v221 = vld [vmem:[%s1 + $0x1a4] sm:$0xf]
  %v222 = vld [vmem:[%s1 + $0x1a8] sm:$0xf]
  %v223 = vld [vmem:[%s1 + $0x1ac] sm:$0xf]
  %v224 = vld [vmem:[%s1 + $0x1b0] sm:$0xf]
  %v225 = vld [vmem:[%s1 + $0x1b4] sm:$0xf]
  %v226 = vld [vmem:[%s1 + $0x1b8] sm:$0xf]
  %v227 = vld [vmem:[%s1 + $0x1bc] sm:$0xf]
  %v228 = vld [vmem:[%s1 + $0x1c0] sm:$0xf]
  %v229 = vld [vmem:[%s1 + $0x1c4] sm:$0xf]
  %v230 = vld [vmem:[%s1 + $0x1c8] sm:$0xf]
  %v231 = vld [vmem:[%s1 + $0x1cc] sm:$0xf]
  %v232 = vld [vmem:[%s1 + $0x1d0] sm:$0xf]
  %v233 = vld [vmem:[%s1 + $0x1d4] sm:$0xf]
  %v234 = vld [vmem:[%s1 + $0x1d8] sm:$0xf]
  %v235 = vld [vmem:[%s1 + $0x1dc] sm:$0xf]
  %v236 = vld [vmem:[%s1 + $0x1e0] sm:$0xf]
  %v237 = vld [vmem:[%s1 + $0x1e4] sm:$0xf]
  %v238 = vld [vmem:[%s1 + $0x1e8] sm:$0xf]
  %v239 = vld [vmem:[%s1 + $0x1ec] sm:$0xf]
  %v240 = vld [vmem:[%s1 + $0x1f0] sm:$0xf]
  %v241 = vld [vmem:[%s1 + $0x1f4] sm:$0xf]
  %v242 = vld [vmem:[%s1 + $0x1f8] sm:$0xf]
  %v243 = vld [vmem:[%s1 + $0x1fc] sm:$0xf]
  %v244 = vld [vmem:[%s4] sm:$0x1]
  %v246 = vperm.slane %v244, 0
  %v376 = vunpack.c.l.b16 %v116
  %v377 = vunpack.c.l.b16 %v117
  %v378 = vunpack.c.l.b16 %v118
  %v379 = vunpack.c.l.b16 %v119
  %v380 = vunpack.c.l.b16 %v120
  %v381 = vunpack.c.l.b16 %v121
  %v382 = vunpack.c.l.b16 %v122
  %v383 = vunpack.c.l.b16 %v123
  %v384 = vunpack.c.l.b16 %v124
  %v385 = vunpack.c.l.b16 %v125
  %v386 = vunpack.c.l.b16 %v126
  %v387 = vunpack.c.l.b16 %v127
  %v388 = vunpack.c.l.b16 %v128
  %v389 = vunpack.c.l.b16 %v129
  %v390 = vunpack.c.l.b16 %v130
  %v391 = vunpack.c.l.b16 %v131
  %v392 = vunpack.c.l.b16 %v132
  %v393 = vunpack.c.l.b16 %v133
  %v394 = vunpack.c.l.b16 %v134
  %v395 = vunpack.c.l.b16 %v135
  %v396 = vunpack.c.l.b16 %v136
  %v397 = vunpack.c.l.b16 %v137
  %v398 = vunpack.c.l.b16 %v138
  %v399 = vunpack.c.l.b16 %v139
  %v400 = vunpack.c.l.b16 %v140
  %v401 = vunpack.c.l.b16 %v141
  %v402 = vunpack.c.l.b16 %v142
  %v403 = vunpack.c.l.b16 %v143
  %v404 = vunpack.c.l.b16 %v144
  %v405 = vunpack.c.l.b16 %v145
  %v406 = vunpack.c.l.b16 %v146
  %v407 = vunpack.c.l.b16 %v147
  %v408 = vunpack.c.l.b16 %v148
  %v409 = vunpack.c.l.b16 %v149
  %v410 = vunpack.c.l.b16 %v150
  %v411 = vunpack.c.l.b16 %v151
  %v412 = vunpack.c.l.b16 %v152
  %v413 = vunpack.c.l.b16 %v153
  %v414 = vunpack.c.l.b16 %v154
  %v415 = vunpack.c.l.b16 %v155
  %v416 = vunpack.c.l.b16 %v156
  %v417 = vunpack.c.l.b16 %v157
  %v418 = vunpack.c.l.b16 %v158
  %v419 = vunpack.c.l.b16 %v159
  %v420 = vunpack.c.l.b16 %v160
  %v421 = vunpack.c.l.b16 %v161
  %v422 = vunpack.c.l.b16 %v162
  %v423 = vunpack.c.l.b16 %v163
  %v424 = vunpack.c.l.b16 %v164
  %v425 = vunpack.c.l.b16 %v165
  %v426 = vunpack.c.l.b16 %v166
  %v427 = vunpack.c.l.b16 %v167
  %v428 = vunpack.c.l.b16 %v168
  %v429 = vunpack.c.l.b16 %v169
  %v430 = vunpack.c.l.b16 %v170
  %v431 = vunpack.c.l.b16 %v171
  %v432 = vunpack.c.l.b16 %v172
  %v433 = vunpack.c.l.b16 %v173
  %v434 = vunpack.c.l.b16 %v174
  %v435 = vunpack.c.l.b16 %v175
  %v436 = vunpack.c.l.b16 %v176
  %v437 = vunpack.c.l.b16 %v177
  %v438 = vunpack.c.l.b16 %v178
  %v439 = vunpack.c.l.b16 %v179
  %v440 = vunpack.c.l.b16 %v180
  %v441 = vunpack.c.l.b16 %v181
  %v442 = vunpack.c.l.b16 %v182
  %v443 = vunpack.c.l.b16 %v183
  %v444 = vunpack.c.l.b16 %v184
  %v445 = vunpack.c.l.b16 %v185
  %v446 = vunpack.c.l.b16 %v186
  %v447 = vunpack.c.l.b16 %v187
  %v448 = vunpack.c.l.b16 %v188
  %v449 = vunpack.c.l.b16 %v189
  %v450 = vunpack.c.l.b16 %v190
  %v451 = vunpack.c.l.b16 %v191
  %v452 = vunpack.c.l.b16 %v192
  %v453 = vunpack.c.l.b16 %v193
  %v454 = vunpack.c.l.b16 %v194
  %v455 = vunpack.c.l.b16 %v195
  %v456 = vunpack.c.l.b16 %v196
  %v457 = vunpack.c.l.b16 %v197
  %v458 = vunpack.c.l.b16 %v198
  %v459 = vunpack.c.l.b16 %v199
  %v460 = vunpack.c.l.b16 %v200
  %v461 = vunpack.c.l.b16 %v201
  %v462 = vunpack.c.l.b16 %v202
  %v463 = vunpack.c.l.b16 %v203
  %v464 = vunpack.c.l.b16 %v204
  %v465 = vunpack.c.l.b16 %v205
  %v466 = vunpack.c.l.b16 %v206
  %v467 = vunpack.c.l.b16 %v207
  %v468 = vunpack.c.l.b16 %v208
  %v469 = vunpack.c.l.b16 %v209
  %v470 = vunpack.c.l.b16 %v210
  %v471 = vunpack.c.l.b16 %v211
  %v472 = vunpack.c.l.b16 %v212
  %v473 = vunpack.c.l.b16 %v213
  %v474 = vunpack.c.l.b16 %v214
  %v475 = vunpack.c.l.b16 %v215
  %v476 = vunpack.c.l.b16 %v216
  %v477 = vunpack.c.l.b16 %v217
  %v478 = vunpack.c.l.b16 %v218
  %v479 = vunpack.c.l.b16 %v219
  %v480 = vunpack.c.l.b16 %v220
  %v481 = vunpack.c.l.b16 %v221
  %v482 = vunpack.c.l.b16 %v222
  %v483 = vunpack.c.l.b16 %v223
  %v484 = vunpack.c.l.b16 %v224
  %v485 = vunpack.c.l.b16 %v225
  %v486 = vunpack.c.l.b16 %v226
  %v487 = vunpack.c.l.b16 %v227
  %v488 = vunpack.c.l.b16 %v228
  %v489 = vunpack.c.l.b16 %v229
  %v490 = vunpack.c.l.b16 %v230
  %v491 = vunpack.c.l.b16 %v231
  %v492 = vunpack.c.l.b16 %v232
  %v493 = vunpack.c.l.b16 %v233
  %v494 = vunpack.c.l.b16 %v234
  %v495 = vunpack.c.l.b16 %v235
  %v496 = vunpack.c.l.b16 %v236
  %v497 = vunpack.c.l.b16 %v237
  %v498 = vunpack.c.l.b16 %v238
  %v499 = vunpack.c.l.b16 %v239
  %v500 = vunpack.c.l.b16 %v240
  %v501 = vunpack.c.l.b16 %v241
  %v502 = vunpack.c.l.b16 %v242
  %v503 = vunpack.c.l.b16 %v243
  %v504 = vpack.c.b16 %v377, %v376
  %v505 = vpack.c.b16 %v379, %v378
  %v506 = vpack.c.b16 %v381, %v380
  %v507 = vpack.c.b16 %v383, %v382
  %v508 = vpack.c.b16 %v385, %v384
  %v509 = vpack.c.b16 %v387, %v386
  %v510 = vpack.c.b16 %v389, %v388
  %v511 = vpack.c.b16 %v391, %v390
  %v512 = vpack.c.b16 %v393, %v392
  %v513 = vpack.c.b16 %v395, %v394
  %v514 = vpack.c.b16 %v397, %v396
  %v515 = vpack.c.b16 %v399, %v398
  %v516 = vpack.c.b16 %v401, %v400
  %v517 = vpack.c.b16 %v403, %v402
  %v518 = vpack.c.b16 %v405, %v404
  %v519 = vpack.c.b16 %v407, %v406
  %v520 = vpack.c.b16 %v409, %v408
  %v521 = vpack.c.b16 %v411, %v410
  %v522 = vpack.c.b16 %v413, %v412
  %v523 = vpack.c.b16 %v415, %v414
  %v524 = vpack.c.b16 %v417, %v416
  %v525 = vpack.c.b16 %v419, %v418
  %v526 = vpack.c.b16 %v421, %v420
  %v527 = vpack.c.b16 %v423, %v422
  %v528 = vpack.c.b16 %v425, %v424
  %v529 = vpack.c.b16 %v427, %v426
  %v530 = vpack.c.b16 %v429, %v428
  %v531 = vpack.c.b16 %v431, %v430
  %v532 = vpack.c.b16 %v433, %v432
  %v533 = vpack.c.b16 %v435, %v434
  %v534 = vpack.c.b16 %v437, %v436
  %v535 = vpack.c.b16 %v439, %v438
  %v536 = vpack.c.b16 %v441, %v440
  %v537 = vpack.c.b16 %v443, %v442
  %v538 = vpack.c.b16 %v445, %v444
  %v539 = vpack.c.b16 %v447, %v446
  %v540 = vpack.c.b16 %v449, %v448
  %v541 = vpack.c.b16 %v451, %v450
  %v542 = vpack.c.b16 %v453, %v452
  %v543 = vpack.c.b16 %v455, %v454
  %v544 = vpack.c.b16 %v457, %v456
  %v545 = vpack.c.b16 %v459, %v458
  %v546 = vpack.c.b16 %v461, %v460
  %v547 = vpack.c.b16 %v463, %v462
  %v548 = vpack.c.b16 %v465, %v464
  %v549 = vpack.c.b16 %v467, %v466
  %v550 = vpack.c.b16 %v469, %v468
  %v551 = vpack.c.b16 %v471, %v470
  %v552 = vpack.c.b16 %v473, %v472
  %v553 = vpack.c.b16 %v475, %v474
  %v554 = vpack.c.b16 %v477, %v476
  %v555 = vpack.c.b16 %v479, %v478
  %v556 = vpack.c.b16 %v481, %v480
  %v557 = vpack.c.b16 %v483, %v482
  %v558 = vpack.c.b16 %v485, %v484
  %v559 = vpack.c.b16 %v487, %v486
  %v560 = vpack.c.b16 %v489, %v488
  %v561 = vpack.c.b16 %v491, %v490
  %v562 = vpack.c.b16 %v493, %v492
  %v563 = vpack.c.b16 %v495, %v494
  %v564 = vpack.c.b16 %v497, %v496
  %v565 = vpack.c.b16 %v499, %v498
  %v566 = vpack.c.b16 %v501, %v500
  %v567 = vpack.c.b16 %v503, %v502
  %632 = vmatpush.bf16.msra.mxu0 %v511
  %633 = vmatpush.bf16.msra.mxu0 %v510
  %634 = vmatpush.bf16.msra.mxu0 %v509
  %635 = vmatpush.bf16.msra.mxu0 %v508
  %636 = vmatpush.bf16.msra.mxu0 %v507
  %637 = vmatpush.bf16.msra.mxu0 %v506
  %638 = vmatpush.bf16.msra.mxu0 %v505
  %639 = vmatpush.bf16.msra.mxu0 %v504
  %640 = vmatmul.bf16.gmra.mxu0 %v108
  %v641 = vpop.f32.mrf.mxu0
  %v642 = vadd.f32 %v246, %v641
  %v643 = vpop.f32.mrf.mxu0
  %644 = vdwg.mxu0
  %645 = vmatpush.bf16.msra.mxu0 %v519
  %646 = vmatpush.bf16.msra.mxu0 %v518
  %647 = vmatpush.bf16.msra.mxu0 %v517
  %648 = vmatpush.bf16.msra.mxu0 %v516
  %649 = vmatpush.bf16.msra.mxu0 %v515
  %650 = vmatpush.bf16.msra.mxu0 %v514
  %651 = vmatpush.bf16.msra.mxu0 %v513
  %652 = vmatpush.bf16.msra.mxu0 %v512
  %653 = vmatmul.bf16.gmra.mxu0 %v109
  %v654 = vpop.f32.mrf.mxu0
  %v655 = vadd.f32 %v642, %v654
  %v656 = vpop.f32.mrf.mxu0
  %657 = vdwg.mxu0
  %658 = vmatpush.bf16.msra.mxu0 %v527
  %659 = vmatpush.bf16.msra.mxu0 %v526
  %660 = vmatpush.bf16.msra.mxu0 %v525
  %661 = vmatpush.bf16.msra.mxu0 %v524
  %662 = vmatpush.bf16.msra.mxu0 %v523
  %663 = vmatpush.bf16.msra.mxu0 %v522
  %664 = vmatpush.bf16.msra.mxu0 %v521
  %665 = vmatpush.bf16.msra.mxu0 %v520
  %666 = vmatmul.bf16.gmra.mxu0 %v110
  %v667 = vpop.f32.mrf.mxu0
  %v668 = vadd.f32 %v655, %v667
  %v669 = vpop.f32.mrf.mxu0
  %670 = vdwg.mxu0
  %671 = vmatpush.bf16.msra.mxu0 %v535
  %672 = vmatpush.bf16.msra.mxu0 %v534
  %673 = vmatpush.bf16.msra.mxu0 %v533
  %674 = vmatpush.bf16.msra.mxu0 %v532
  %675 = vmatpush.bf16.msra.mxu0 %v531
  %676 = vmatpush.bf16.msra.mxu0 %v530
  %677 = vmatpush.bf16.msra.mxu0 %v529
  %678 = vmatpush.bf16.msra.mxu0 %v528
  %679 = vmatmul.bf16.gmra.mxu0 %v111
  %v680 = vpop.f32.mrf.mxu0
  %v681 = vadd.f32 %v668, %v680
  %v682 = vpop.f32.mrf.mxu0
  %683 = vdwg.mxu0
  %684 = vmatpush.bf16.msra.mxu0 %v543
  %685 = vmatpush.bf16.msra.mxu0 %v542
  %686 = vmatpush.bf16.msra.mxu0 %v541
  %687 = vmatpush.bf16.msra.mxu0 %v540
  %688 = vmatpush.bf16.msra.mxu0 %v539
  %689 = vmatpush.bf16.msra.mxu0 %v538
  %690 = vmatpush.bf16.msra.mxu0 %v537
  %691 = vmatpush.bf16.msra.mxu0 %v536
  %692 = vmatmul.bf16.gmra.mxu0 %v112
  %v693 = vpop.f32.mrf.mxu0
  %v694 = vadd.f32 %v681, %v693
  %v695 = vpop.f32.mrf.mxu0
  %696 = vdwg.mxu0
  %697 = vmatpush.bf16.msra.mxu0 %v551
  %698 = vmatpush.bf16.msra.mxu0 %v550
  %699 = vmatpush.bf16.msra.mxu0 %v549
  %700 = vmatpush.bf16.msra.mxu0 %v548
  %701 = vmatpush.bf16.msra.mxu0 %v547
  %702 = vmatpush.bf16.msra.mxu0 %v546
  %703 = vmatpush.bf16.msra.mxu0 %v545
  %704 = vmatpush.bf16.msra.mxu0 %v544
  %705 = vmatmul.bf16.gmra.mxu0 %v113
  %v706 = vpop.f32.mrf.mxu0
  %v707 = vadd.f32 %v694, %v706
  %v708 = vpop.f32.mrf.mxu0
  %709 = vdwg.mxu0
  %710 = vmatpush.bf16.msra.mxu0 %v559
  %711 = vmatpush.bf16.msra.mxu0 %v558
  %712 = vmatpush.bf16.msra.mxu0 %v557
  %713 = vmatpush.bf16.msra.mxu0 %v556
  %714 = vmatpush.bf16.msra.mxu0 %v555
  %715 = vmatpush.bf16.msra.mxu0 %v554
  %716 = vmatpush.bf16.msra.mxu0 %v553
  %717 = vmatpush.bf16.msra.mxu0 %v552
  %718 = vmatmul.bf16.gmra.mxu0 %v114
  %v719 = vpop.f32.mrf.mxu0
  %v720 = vadd.f32 %v707, %v719
  %v721 = vpop.f32.mrf.mxu0
  %722 = vdwg.mxu0
  %723 = vmatpush.bf16.msra.mxu0 %v567
  %724 = vmatpush.bf16.msra.mxu0 %v566
  %725 = vmatpush.bf16.msra.mxu0 %v565
  %726 = vmatpush.bf16.msra.mxu0 %v564
  %727 = vmatpush.bf16.msra.mxu0 %v563
  %728 = vmatpush.bf16.msra.mxu0 %v562
  %729 = vmatpush.bf16.msra.mxu0 %v561
  %730 = vmatpush.bf16.msra.mxu0 %v560
  %731 = vmatmul.bf16.gmra.mxu0 %v115
  %v732 = vpop.f32.mrf.mxu0
  %v733 = vadd.f32 %v720, %v732
  %v734 = vpop.f32.mrf.mxu0
  %735 = vdwg.mxu0
  %736 = vst [vmem:[%s5] sm:$0xff] %v733
  // Predicated region
  $region22: #{discriminator_forward.9} parent=0 // pred_check
    _
  $region23: #{discriminator_forward.9} parent=0 // pred_check_branch
    %738 = sbr.rel (0) target = $region25
  $region24: #{discriminator_forward.9} parent=0 // pred_region
    _
  $region25: #{discriminator_forward.9} parent=0 // pred_fallthru
    _
  // Predicated region
  $region26: #{discriminator_forward.9} parent=0 // pred_check
    _
  $region27: #{discriminator_forward.9} parent=0 // pred_check_branch
    %740 = sbr.rel (0) target = $region29
  $region28: #{discriminator_forward.9} parent=0 // pred_region
    _
  $region29: #{discriminator_forward.9} parent=0 // pred_fallthru
    _

</llo_original>
